<compile_context>
chip_gen: v7x
topology: tpu7x:2x2x1
jax: 0.10.0
libtpu: 0.0.40
codegen_flags: <defaults>
</compile_context>

<pallas_src>
import functools
import jax
import jax.numpy as jnp
from jax import lax
from jax.experimental import pallas as pl
from jax.experimental.pallas import tpu as pltpu

_VMEM_LIMIT = 32 * 1024 * 1024   # explicit VMEM budget; actual use is ~2 MiB (safe on v5e/v6e/v7x)


# ----------------------------- conv5 Pallas kernel ---------------------------

def _conv5_kernel(x_ref, w_ref, o_ref):
    """w_ref: [E, C] bf16, x_ref block: [1, C, THW] bf16 -> o_ref[0]: [E, THW] f32."""
    o_ref[0] = jnp.dot(w_ref[...], x_ref[0],
                       preferred_element_type=jnp.float32).astype(o_ref.dtype)


def conv5_nchw(x, w):
    """1x1x1 Conv3d (no bias) computed directly from the NCTHW layout.
    x: [B, C, T, H, W], w: [C, E] -> channels-last [B, T, H, W, E] (f32)."""
    B, C, T, H, W = x.shape
    E = w.shape[1]
    THW = T * H * W
    xr = x.reshape(B, C, THW).astype(jnp.bfloat16)     # bf16 operands -> native MXU rate
    wT = jnp.transpose(w).astype(jnp.bfloat16)         # [E, C], constant under jit
    out = pl.pallas_call(
        _conv5_kernel,
        out_shape=jax.ShapeDtypeStruct((B, E, THW), jnp.float32),
        grid_spec=pltpu.PrefetchScalarGridSpec(
            num_scalar_prefetch=0,
            grid=(B,),
            in_specs=[pl.BlockSpec((1, C, THW), lambda b: (b, 0, 0)),
                      pl.BlockSpec((E, C), lambda b: (0, 0))],
            out_specs=pl.BlockSpec((1, E, THW), lambda b: (b, 0, 0))),
        compiler_params=pltpu.CompilerParams(
            dimension_semantics=("parallel",),
            vmem_limit_bytes=_VMEM_LIMIT),
    )(xr, wT)
    # tiny [B,E,THW] -> [B,T,H,W,E] relayout (~100 KiB); the full-size NCTHW input
    # transpose is fused away into the kernel's contraction, output stores are
    # lane-dense (THW = 128 lanes).
    return jnp.transpose(out.reshape(B, E, T, H, W), (0, 2, 3, 4, 1))


# ------------------- fused HO-reason + pool + classifier kernel --------------

def _ho_head_kernel(obj_v_ref, obj_p_ref, hand_v_ref, hand_p_ref,
                    lnq_g, lnq_b, lnkv_g, lnkv_b,
                    wq, bq, wk, bk, wv, bv, wo, bo,
                    ln2_g, ln2_b, w1, b1, w2, b2,
                    lnh_g, lnh_b, wc, bc,
                    o_ref, *, num_heads):
    f32, bf16 = jnp.float32, jnp.bfloat16

    def ln(z, g_ref, b_ref):                     # f32 stats, eps=1e-6 (matches module)
        mu = jnp.mean(z, axis=-1, keepdims=True)
        var = jnp.mean(jnp.square(z - mu), axis=-1, keepdims=True)
        return (z - mu) * lax.rsqrt(var + 1e-6) * g_ref[...] + b_ref[...]

    def dense(z, w_ref, b_ref):                  # bf16 dot operands, f32 accumulation
        return jnp.dot(z.astype(bf16), w_ref[...],
                       preferred_element_type=f32) + b_ref[...]

    obj_v = obj_v_ref[0].astype(f32)             # [Nq, E]
    obj_p = obj_p_ref[0].astype(f32)
    hand_v = hand_v_ref[0].astype(f32)           # [Nk, E]
    hand_p = hand_p_ref[0].astype(f32)

    Nq, E = obj_v.shape
    dh = E // num_heads
    scale = 1.0 / float(dh) ** 0.5

    qn = ln(obj_v, lnq_g, lnq_b)
    kn = ln(hand_v, lnkv_g, lnkv_b)

    # fold the 1/sqrt(dh) softmax scale into q once (saves one [Nq,Nk] mul per head)
    q = dense(qn + obj_p, wq, bq) * scale        # [Nq, E]
    k = dense(kn + hand_p, wk, bk)               # [Nk, E]
    v = dense(kn, wv, bv)                        # [Nk, E]

    # per-head cross attention; output projection accumulated head-by-head (no concat)
    wo_full = wo[...]                            # [E, E] bf16, VMEM-resident, read once
    o_proj = jnp.zeros((Nq, E), f32)
    for h in range(num_heads):
        lo, hi = h * dh, (h + 1) * dh
        qh = q[:, lo:hi].astype(bf16)
        kh = k[:, lo:hi].astype(bf16)
        vh = v[:, lo:hi].astype(bf16)
        s = lax.dot_general(qh, kh, (((1,), (1,)), ((), ())),
                            preferred_element_type=f32)                 # [Nq, Nk]
        s = s - jnp.max(s, axis=-1, keepdims=True)
        p = jnp.exp(s)                                                   # f32 softmax
        inv = pl.reciprocal(jnp.sum(p, axis=-1, keepdims=True), approx=True)
        oh = jnp.dot((p * inv).astype(bf16), vh, preferred_element_type=f32)
        o_proj = o_proj + jnp.dot(oh.astype(bf16), wo_full[lo:hi, :],
                                  preferred_element_type=f32)
    o_proj = o_proj + bo[...]

    xres = obj_v + o_proj                        # residual 1
    xn = ln(xres, ln2_g, ln2_b)
    h1 = jax.nn.gelu(dense(xn, w1, b1))          # tanh-approx GELU (EUP) - see TODO above
    y = xres + dense(h1, w2, b2)                 # residual 2          [Nq, E]

    pooled = jnp.mean(y, axis=0, keepdims=True)  # mean over tokens    [1, E]
    hn = ln(pooled, lnh_g, lnh_b)
    logits = dense(hn, wc, bc)                   # [1, NC] (NC % 128 == 0, lane-dense)
    # replicate across the 8-row sublane block -> single unmasked vst; row 0 is read back
    o_ref[0] = jnp.broadcast_to(logits, o_ref.shape[1:]).astype(o_ref.dtype)


def ho_head_forward(p, obj_vis, obj_pos, hand_vis, hand_pos, num_heads, num_classes):
    """Fused HOReasonSimp ('oh') block + mean pool + LayerNorm + classifier.
    One pallas_call, grid=(B,) 'parallel'; all weights VMEM-resident."""
    B, Nq, E = obj_vis.shape
    Nk = hand_vis.shape[1]
    f32, bf16 = jnp.float32, jnp.bfloat16

    # lane-dense classifier: pad the class dim up to a multiple of 128, slice after
    NC = ((num_classes + 127) // 128) * 128
    wc = jnp.pad(p["cls_w"].astype(bf16), ((0, 0), (0, NC - num_classes)))
    bc = jnp.pad(p["cls_b"].astype(f32), ((0, NC - num_classes),))

    row = lambda v: v.reshape(1, -1).astype(f32)
    weights = [
        row(p["ln_q_g"]), row(p["ln_q_b"]),
        row(p["ln_kv_g"]), row(p["ln_kv_b"]),
        p["wq"].astype(bf16), row(p["bq"]),
        p["wk"].astype(bf16), row(p["bk"]),
        p["wv"].astype(bf16), row(p["bv"]),
        p["wo"].astype(bf16), row(p["bo"]),
        row(p["ln2_g"]), row(p["ln2_b"]),
        p["mlp_w1"].astype(bf16), row(p["mlp_b1"]),
        p["mlp_w2"].astype(bf16), row(p["mlp_b2"]),
        row(p["ln_head_g"]), row(p["ln_head_b"]),
        wc, row(bc),
    ]

    def tok_spec(n):
        return pl.BlockSpec((1, n, E), lambda b: (b, 0, 0))

    w_specs = [pl.BlockSpec(w.shape, lambda b: (0, 0)) for w in weights]

    out = pl.pallas_call(
        functools.partial(_ho_head_kernel, num_heads=num_heads),
        out_shape=jax.ShapeDtypeStruct((B, 8, NC), jnp.float32),
        grid_spec=pltpu.PrefetchScalarGridSpec(
            num_scalar_prefetch=0,
            grid=(B,),
            in_specs=[tok_spec(Nq), tok_spec(Nq), tok_spec(Nk), tok_spec(Nk)] + w_specs,
            out_specs=pl.BlockSpec((1, 8, NC), lambda b: (b, 0, 0))),
        compiler_params=pltpu.CompilerParams(
            dimension_semantics=("parallel",),
            vmem_limit_bytes=_VMEM_LIMIT),
    )(obj_vis.astype(f32), obj_pos.astype(f32),
      hand_vis.astype(f32), hand_pos.astype(f32), *weights)
    return out[:, 0, :num_classes]


# ------------------------------- JAX glue ------------------------------------

def sine_pos_embed_3d(B, T, H, W, num_pos_feats, temperature=10000.0):
    """DETR-style 3D sine position embedding, channels-last [B,T,H,W,3*F]."""
    two_pi = 2.0 * jnp.pi
    eps = 1e-6
    t = (jnp.arange(1, T + 1, dtype=jnp.float32) / (T + eps)) * two_pi
    y = (jnp.arange(1, H + 1, dtype=jnp.float32) / (H + eps)) * two_pi
    x = (jnp.arange(1, W + 1, dtype=jnp.float32) / (W + eps)) * two_pi
    dim_t = temperature ** (2.0 * (jnp.arange(num_pos_feats) // 2) / num_pos_feats)

    def emb(vals):
        p = vals[:, None] / dim_t[None, :]
        return jnp.stack([jnp.sin(p[:, 0::2]), jnp.cos(p[:, 1::2])],
                         axis=-1).reshape(vals.shape[0], -1)

    pe_t, pe_y, pe_x = emb(t), emb(y), emb(x)
    pos = jnp.concatenate([
        jnp.broadcast_to(pe_t[:, None, None, :], (T, H, W, num_pos_feats)),
        jnp.broadcast_to(pe_y[None, :, None, :], (T, H, W, num_pos_feats)),
        jnp.broadcast_to(pe_x[None, None, :, :], (T, H, W, num_pos_feats)),
    ], axis=-1)
    return jnp.broadcast_to(pos[None], (B, T, H, W, 3 * num_pos_feats))


def roi_align(fm, boxes_xyxy, crop, img_size):
    """fm: [BT, H, W, C] channels-last, boxes in image-pixel xyxy.
    Returns [BT, nb, crop, crop, C] (one bilinear sample per bin center)."""
    BT, H, W, C = fm.shape
    scale = float(W) / float(img_size)
    b = boxes_xyxy * scale
    x1, y1, x2, y2 = b[..., 0], b[..., 1], b[..., 2], b[..., 3]
    roi_w = jnp.maximum(x2 - x1, 1.0)
    roi_h = jnp.maximum(y2 - y1, 1.0)
    centers = (jnp.arange(crop, dtype=jnp.float32) + 0.5) / crop
    xs = x1[..., None] + centers * roi_w[..., None]      # [BT, nb, crop]
    ys = y1[..., None] + centers * roi_h[..., None]
    xs = jnp.clip(xs, 0.0, W - 1.0)
    ys = jnp.clip(ys, 0.0, H - 1.0)
    nb = xs.shape[1]
    xsg = jnp.broadcast_to(xs[:, :, None, :], (BT, nb, crop, crop))
    ysg = jnp.broadcast_to(ys[:, :, :, None], (BT, nb, crop, crop))
    x0 = jnp.floor(xsg)
    y0 = jnp.floor(ysg)
    x1i = jnp.minimum(x0 + 1.0, W - 1.0)
    y1i = jnp.minimum(y0 + 1.0, H - 1.0)
    wx = (xsg - x0)[..., None]
    wy = (ysg - y0)[..., None]
    x0 = x0.astype(jnp.int32); x1i = x1i.astype(jnp.int32)
    y0 = y0.astype(jnp.int32); y1i = y1i.astype(jnp.int32)

    def gather(fmb, yi, xi):
        return fmb[yi, xi]                               # [nb,crop,crop,C]

    g = jax.vmap(gather)
    v00 = g(fm, y0, x0)
    v01 = g(fm, y0, x1i)
    v10 = g(fm, y1i, x0)
    v11 = g(fm, y1i, x1i)
    return (v00 * (1 - wy) * (1 - wx) + v01 * (1 - wy) * wx +
            v10 * wy * (1 - wx) + v11 * wy * wx)


# --------------------------- model parameters --------------------------------

def init_params(key, dim_in, embed_dim, mlp_ratio, num_classes):
    E = embed_dim
    Hm = int(E * mlp_ratio)
    ks = jax.random.split(key, 8)

    def w(k, shape, scale=0.02):
        # matmul weights stored in bf16 (MXU-native); accumulation stays f32 in-kernel
        return (scale * jax.random.normal(k, shape, jnp.float32)).astype(jnp.bfloat16)

    f32 = jnp.float32
    return {
        "conv5_w": w(ks[0], (dim_in, E)),
        "ln_q_g": jnp.ones((E,), f32), "ln_q_b": jnp.zeros((E,), f32),
        "ln_kv_g": jnp.ones((E,), f32), "ln_kv_b": jnp.zeros((E,), f32),
        "wq": w(ks[1], (E, E)), "bq": jnp.zeros((E,), f32),
        "wk": w(ks[2], (E, E)), "bk": jnp.zeros((E,), f32),
        "wv": w(ks[3], (E, E)), "bv": jnp.zeros((E,), f32),
        "wo": w(ks[4], (E, E)), "bo": jnp.zeros((E,), f32),
        "ln2_g": jnp.ones((E,), f32), "ln2_b": jnp.zeros((E,), f32),
        "mlp_w1": w(ks[5], (E, Hm)), "mlp_b1": jnp.zeros((Hm,), f32),
        "mlp_w2": w(ks[6], (Hm, E)), "mlp_b2": jnp.zeros((E,), f32),
        "ln_head_g": jnp.ones((E,), f32), "ln_head_b": jnp.zeros((E,), f32),
        "cls_w": w(ks[7], (E, num_classes)), "cls_b": jnp.zeros((num_classes,), f32),
    }


# ----------------------------- forward pass ----------------------------------

def region_semantic_header_forward(params, x, meta, cfg):
    """x: [B, C=2048, T, H, W] (same axis convention as the PyTorch module)."""
    B, C, T, H, W = x.shape
    E = cfg["embed_dim"]
    nh = cfg["num_heads"]
    nb = cfg["nr_boxes"]
    alpha = cfg["alpha"]
    crop = 3
    img = 224.0

    boxes = meta["object_boxes"][:, ::alpha]                       # [B, T, nb, 4]

    # conv5: 1x1x1 Conv3d (no bias), fused with the NCTHW -> channels-last relayout
    feat = conv5_nchw(x, params["conv5_w"])                        # [B,T,H,W,E] f32

    # 3D sine position embedding (parameter-free), concat on channel dim
    pos = sine_pos_embed_3d(B, T, H, W, E // 3)
    fm = jnp.concatenate([feat, pos], axis=-1).reshape(B * T, H, W, 2 * E)

    # box_to_normalized: normalized (cx,cy,w,h) -> pixel xyxy in 224-space
    boxes = boxes.reshape(B * T, nb, 4)
    cx, cy, bw, bh = boxes[..., 0], boxes[..., 1], boxes[..., 2], boxes[..., 3]
    boxes_xyxy = jnp.stack([(cx - bw / 2) * img, (cy - bh / 2) * img,
                            (cx + bw / 2) * img, (cy + bh / 2) * img], axis=-1)

    # build_region_feas: ROI align of the concatenated map (3x3 crops)
    region = roi_align(fm, boxes_xyxy, crop=crop, img_size=img)    # [BT,nb,3,3,2E]

    vis = region[..., :E].reshape(B, T, nb, crop * crop, E)
    rpos = region[..., E:].reshape(B, T, nb, crop * crop, E)
    hand_vis = vis[:, :, :2].reshape(B, -1, E)
    obj_vis = vis[:, :, 2:].reshape(B, -1, E)
    hand_pos = rpos[:, :, :2].reshape(B, -1, E)
    obj_pos = rpos[:, :, 2:].reshape(B, -1, E)

    # fused HOReason('oh') block + mean pool + composition head (LN + classifier)
    return ho_head_forward(params, obj_vis, obj_pos, hand_vis, hand_pos,
                           nh, cfg["num_classes"])


# --------------------------------- main ---------------------------------------

if __name__ == "__main__":
    key = jax.random.PRNGKey(0)
    B, C, T, Hs, Ws = 2, 2048, 2, 8, 8         # dim_in=2048 is fixed in the module
    E, nh, nb, alpha, ncls = 96, 3, 4, 2, 16   # embed_dim divisible by 3 and by heads
    cfg = dict(embed_dim=E, num_heads=nh, nr_boxes=nb, alpha=alpha,
               num_classes=ncls, mlp_ratio=4.0)

    kx, kb, kp = jax.random.split(key, 3)
    x = jax.random.normal(kx, (B, C, T, Hs, Ws), jnp.float32)
    # object_boxes over the un-strided temporal axis (T * alpha), normalized cxcywh
    cxy = jax.random.uniform(kb, (B, T * alpha, nb, 2), minval=0.3, maxval=0.7)
    wh = jax.random.uniform(jax.random.fold_in(kb, 1), (B, T * alpha, nb, 2),
                            minval=0.1, maxval=0.3)
    meta = {"object_boxes": jnp.concatenate([cxy, wh], axis=-1)}

    params = init_params(kp, C, E, cfg["mlp_ratio"], ncls)

    fwd = jax.jit(functools.partial(region_semantic_header_forward, cfg=cfg))
    logits = fwd(params, x, meta)
    jax.block_until_ready(logits)
    assert logits.shape == (B, ncls) and logits.dtype == jnp.float32
    print("KERNEL_OK")
</pallas_src>

<mosaic_0001>
module attributes {stable_mosaic.version = 11 : i64} {
  func.func @_conv5_kernel(%arg0: i32, %arg1: memref<1x2048x128xbf16, #tpu.memory_space<vmem>>, %arg2: memref<96x2048xbf16, #tpu.memory_space<vmem>>, %arg3: memref<1x96x128xf32, #tpu.memory_space<vmem>>) attributes {dimension_semantics = [#tpu.dimension_semantics<parallel>], iteration_bounds = array<i64: 2>, scalar_prefetch = 0 : i64, scratch_operands = 0 : i64, tpu.core_type = #tpu.core_type<tc>, window_params = [{transform_indices = @transform_0, window_bounds = array<i64: 1, 2048, 128>}, {pipeline_mode = #tpu.pipeline_mode<synchronous>, transform_indices = @transform_1, window_bounds = array<i64: 96, 2048>}, {transform_indices = @transform_2, window_bounds = array<i64: 1, 96, 128>}]} {
    %c0 = arith.constant 0 : index
    %c0_0 = arith.constant 0 : index
    %0 = vector.load %arg2[%c0, %c0_0] : memref<96x2048xbf16, #tpu.memory_space<vmem>>, vector<96x2048xbf16>
    %c0_1 = arith.constant 0 : index
    %c0_2 = arith.constant 0 : index
    %c0_3 = arith.constant 0 : index
    %1 = vector.load %arg1[%c0_1, %c0_2, %c0_3] : memref<1x2048x128xbf16, #tpu.memory_space<vmem>>, vector<1x2048x128xbf16>
    %2 = vector.shape_cast %1 : vector<1x2048x128xbf16> to vector<2048x128xbf16>
    %cst = arith.constant dense<0.000000e+00> : vector<96x128xf32>
    %3 = tpu.matmul %0, %2, %cst {dimension_numbers = #tpu.dot_dimension_numbers<[1], [0], [0], [1], [0, 0, 1, 1], [], []>} : vector<96x2048xbf16>, vector<2048x128xbf16>, vector<96x128xf32> -> vector<96x128xf32>
    %c0_4 = arith.constant 0 : index
    %c0_5 = arith.constant 0 : index
    %c0_6 = arith.constant 0 : index
    %4 = vector.load %arg3[%c0_4, %c0_5, %c0_6] : memref<1x96x128xf32, #tpu.memory_space<vmem>>, vector<1x96x128xf32>
    %5 = vector.shape_cast %4 : vector<1x96x128xf32> to vector<96x128xf32>
    %6 = vector.shape_cast %3 : vector<96x128xf32> to vector<1x96x128xf32>
    tpu.vector_store %arg3[%c0_4, %c0_5, %c0_6], %6 {strides = array<i32>} : memref<1x96x128xf32, #tpu.memory_space<vmem>>, vector<1x96x128xf32>,
    return
  }
  func.func @transform_0(%arg0: i32) -> (i32, i32, i32) {
    %c0_i32 = arith.constant 0 : i32
    %c0_i32_0 = arith.constant 0 : i32
    %c0_i32_1 = arith.constant 0 : i32
    return %arg0, %c0_i32, %c0_i32_0 : i32, i32, i32
  }
  func.func @transform_1(%arg0: i32) -> (i32, i32) {
    %c0_i32 = arith.constant 0 : i32
    %c0_i32_0 = arith.constant 0 : i32
    %c0_i32_1 = arith.constant 0 : i32
    return %c0_i32, %c0_i32_0 : i32, i32
  }
  func.func @transform_2(%arg0: i32) -> (i32, i32, i32) {
    %c0_i32 = arith.constant 0 : i32
    %c0_i32_0 = arith.constant 0 : i32
    %c0_i32_1 = arith.constant 0 : i32
    return %arg0, %c0_i32, %c0_i32_0 : i32, i32, i32
  }
}

module attributes {stable_mosaic.version = 11 : i64} {
  func.func @_ho_head_kernel(%arg0: i32, %arg1: memref<1x36x96xf32, #tpu.memory_space<vmem>>, %arg2: memref<1x36x96xf32, #tpu.memory_space<vmem>>, %arg3: memref<1x36x96xf32, #tpu.memory_space<vmem>>, %arg4: memref<1x36x96xf32, #tpu.memory_space<vmem>>, %arg5: memref<1x96xf32, #tpu.memory_space<vmem>>, %arg6: memref<1x96xf32, #tpu.memory_space<vmem>>, %arg7: memref<1x96xf32, #tpu.memory_space<vmem>>, %arg8: memref<1x96xf32, #tpu.memory_space<vmem>>, %arg9: memref<96x96xbf16, #tpu.memory_space<vmem>>, %arg10: memref<1x96xf32, #tpu.memory_space<vmem>>, %arg11: memref<96x96xbf16, #tpu.memory_space<vmem>>, %arg12: memref<1x96xf32, #tpu.memory_space<vmem>>, %arg13: memref<96x96xbf16, #tpu.memory_space<vmem>>, %arg14: memref<1x96xf32, #tpu.memory_space<vmem>>, %arg15: memref<96x96xbf16, #tpu.memory_space<vmem>>, %arg16: memref<1x96xf32, #tpu.memory_space<vmem>>, %arg17: memref<1x96xf32, #tpu.memory_space<vmem>>, %arg18: memref<1x96xf32, #tpu.memory_space<vmem>>, %arg19: memref<96x384xbf16, #tpu.memory_space<vmem>>, %arg20: memref<1x384xf32, #tpu.memory_space<vmem>>, %arg21: memref<384x96xbf16, #tpu.memory_space<vmem>>, %arg22: memref<1x96xf32, #tpu.memory_space<vmem>>, %arg23: memref<1x96xf32, #tpu.memory_space<vmem>>, %arg24: memref<1x96xf32, #tpu.memory_space<vmem>>, %arg25: memref<96x128xbf16, #tpu.memory_space<vmem>>, %arg26: memref<1x128xf32, #tpu.memory_space<vmem>>, %arg27: memref<1x8x128xf32, #tpu.memory_space<vmem>>) attributes {dimension_semantics = [#tpu.dimension_semantics<parallel>], iteration_bounds = array<i64: 2>, scalar_prefetch = 0 : i64, scratch_operands = 0 : i64, tpu.core_type = #tpu.core_type<tc>, window_params = [{transform_indices = @transform_0, window_bounds = array<i64: 1, 36, 96>}, {transform_indices = @transform_1, window_bounds = array<i64: 1, 36, 96>}, {transform_indices = @transform_2, window_bounds = array<i64: 1, 36, 96>}, {transform_indices = @transform_3, window_bounds = array<i64: 1, 36, 96>}, {pipeline_mode = #tpu.pipeline_mode<synchronous>, transform_indices = @transform_4, window_bounds = array<i64: 1, 96>}, {pipeline_mode = #tpu.pipeline_mode<synchronous>, transform_indices = @transform_5, window_bounds = array<i64: 1, 96>}, {pipeline_mode = #tpu.pipeline_mode<synchronous>, transform_indices = @transform_6, window_bounds = array<i64: 1, 96>}, {pipeline_mode = #tpu.pipeline_mode<synchronous>, transform_indices = @transform_7, window_bounds = array<i64: 1, 96>}, {pipeline_mode = #tpu.pipeline_mode<synchronous>, transform_indices = @transform_8, window_bounds = array<i64: 96, 96>}, {pipeline_mode = #tpu.pipeline_mode<synchronous>, transform_indices = @transform_9, window_bounds = array<i64: 1, 96>}, {pipeline_mode = #tpu.pipeline_mode<synchronous>, transform_indices = @transform_10, window_bounds = array<i64: 96, 96>}, {pipeline_mode = #tpu.pipeline_mode<synchronous>, transform_indices = @transform_11, window_bounds = array<i64: 1, 96>}, {pipeline_mode = #tpu.pipeline_mode<synchronous>, transform_indices = @transform_12, window_bounds = array<i64: 96, 96>}, {pipeline_mode = #tpu.pipeline_mode<synchronous>, transform_indices = @transform_13, window_bounds = array<i64: 1, 96>}, {pipeline_mode = #tpu.pipeline_mode<synchronous>, transform_indices = @transform_14, window_bounds = array<i64: 96, 96>}, {pipeline_mode = #tpu.pipeline_mode<synchronous>, transform_indices = @transform_15, window_bounds = array<i64: 1, 96>}, {pipeline_mode = #tpu.pipeline_mode<synchronous>, transform_indices = @transform_16, window_bounds = array<i64: 1, 96>}, {pipeline_mode = #tpu.pipeline_mode<synchronous>, transform_indices = @transform_17, window_bounds = array<i64: 1, 96>}, {pipeline_mode = #tpu.pipeline_mode<synchronous>, transform_indices = @transform_18, window_bounds = array<i64: 96, 384>}, {pipeline_mode = #tpu.pipeline_mode<synchronous>, transform_indices = @transform_19, window_bounds = array<i64: 1, 384>}, {pipeline_mode = #tpu.pipeline_mode<synchronous>, transform_indices = @transform_20, window_bounds = array<i64: 384, 96>}, {pipeline_mode = #tpu.pipeline_mode<synchronous>, transform_indices = @transform_21, window_bounds = array<i64: 1, 96>}, {pipeline_mode = #tpu.pipeline_mode<synchronous>, transform_indices = @transform_22, window_bounds = array<i64: 1, 96>}, {pipeline_mode = #tpu.pipeline_mode<synchronous>, transform_indices = @transform_23, window_bounds = array<i64: 1, 96>}, {pipeline_mode = #tpu.pipeline_mode<synchronous>, transform_indices = @transform_24, window_bounds = array<i64: 96, 128>}, {pipeline_mode = #tpu.pipeline_mode<synchronous>, transform_indices = @transform_25, window_bounds = array<i64: 1, 128>}, {transform_indices = @transform_26, window_bounds = array<i64: 1, 8, 128>}]} {
    %c0 = arith.constant 0 : index
    %c0_0 = arith.constant 0 : index
    %c0_1 = arith.constant 0 : index
    %0 = vector.load %arg1[%c0, %c0_0, %c0_1] : memref<1x36x96xf32, #tpu.memory_space<vmem>>, vector<1x36x96xf32>
    %1 = vector.shape_cast %0 : vector<1x36x96xf32> to vector<36x96xf32>
    %c0_2 = arith.constant 0 : index
    %c0_3 = arith.constant 0 : index
    %c0_4 = arith.constant 0 : index
    %2 = vector.load %arg2[%c0_2, %c0_3, %c0_4] : memref<1x36x96xf32, #tpu.memory_space<vmem>>, vector<1x36x96xf32>
    %3 = vector.shape_cast %2 : vector<1x36x96xf32> to vector<36x96xf32>
    %c0_5 = arith.constant 0 : index
    %c0_6 = arith.constant 0 : index
    %c0_7 = arith.constant 0 : index
    %4 = vector.load %arg3[%c0_5, %c0_6, %c0_7] : memref<1x36x96xf32, #tpu.memory_space<vmem>>, vector<1x36x96xf32>
    %5 = vector.shape_cast %4 : vector<1x36x96xf32> to vector<36x96xf32>
    %c0_8 = arith.constant 0 : index
    %c0_9 = arith.constant 0 : index
    %c0_10 = arith.constant 0 : index
    %6 = vector.load %arg4[%c0_8, %c0_9, %c0_10] : memref<1x36x96xf32, #tpu.memory_space<vmem>>, vector<1x36x96xf32>
    %7 = vector.shape_cast %6 : vector<1x36x96xf32> to vector<36x96xf32>
    %cst = arith.constant dense<0.000000e+00> : vector<36xf32>
    %8 = vector.multi_reduction <add>, %1, %cst [1] : vector<36x96xf32> to vector<36xf32>
    %9 = vector.shape_cast %8 : vector<36xf32> to vector<36x1xf32>
    %cst_11 = arith.constant 9.600000e+01 : f32
    %10 = vector.broadcast %cst_11 : f32 to vector<36x1xf32>
    %11 = arith.divf %9, %10 : vector<36x1xf32>
    %12 = vector.broadcast %11 : vector<36x1xf32> to vector<36x96xf32>
    %13 = arith.subf %1, %12 : vector<36x96xf32>
    %14 = arith.mulf %13, %13 : vector<36x96xf32>
    %cst_12 = arith.constant dense<0.000000e+00> : vector<36xf32>
    %15 = vector.multi_reduction <add>, %14, %cst_12 [1] : vector<36x96xf32> to vector<36xf32>
    %16 = vector.shape_cast %15 : vector<36xf32> to vector<36x1xf32>
    %cst_13 = arith.constant 9.600000e+01 : f32
    %17 = vector.broadcast %cst_13 : f32 to vector<36x1xf32>
    %18 = arith.divf %16, %17 : vector<36x1xf32>
    %19 = vector.broadcast %11 : vector<36x1xf32> to vector<36x96xf32>
    %20 = arith.subf %1, %19 : vector<36x96xf32>
    %cst_14 = arith.constant 9.99999997E-7 : f32
    %21 = vector.broadcast %cst_14 : f32 to vector<36x1xf32>
    %22 = arith.addf %18, %21 : vector<36x1xf32>
    %23 = math.rsqrt %22 : vector<36x1xf32>
    %24 = vector.broadcast %23 : vector<36x1xf32> to vector<36x96xf32>
    %25 = arith.mulf %20, %24 : vector<36x96xf32>
    %c0_15 = arith.constant 0 : index
    %c0_16 = arith.constant 0 : index
    %26 = vector.load %arg5[%c0_15, %c0_16] : memref<1x96xf32, #tpu.memory_space<vmem>>, vector<1x96xf32>
    %27 = vector.broadcast %26 : vector<1x96xf32> to vector<36x96xf32>
    %28 = arith.mulf %25, %27 : vector<36x96xf32>
    %c0_17 = arith.constant 0 : index
    %c0_18 = arith.constant 0 : index
    %29 = vector.load %arg6[%c0_17, %c0_18] : memref<1x96xf32, #tpu.memory_space<vmem>>, vector<1x96xf32>
    %30 = vector.broadcast %29 : vector<1x96xf32> to vector<36x96xf32>
    %31 = arith.addf %28, %30 : vector<36x96xf32>
    %cst_19 = arith.constant dense<0.000000e+00> : vector<36xf32>
    %32 = vector.multi_reduction <add>, %5, %cst_19 [1] : vector<36x96xf32> to vector<36xf32>
    %33 = vector.shape_cast %32 : vector<36xf32> to vector<36x1xf32>
    %cst_20 = arith.constant 9.600000e+01 : f32
    %34 = vector.broadcast %cst_20 : f32 to vector<36x1xf32>
    %35 = arith.divf %33, %34 : vector<36x1xf32>
    %36 = vector.broadcast %35 : vector<36x1xf32> to vector<36x96xf32>
    %37 = arith.subf %5, %36 : vector<36x96xf32>
    %38 = arith.mulf %37, %37 : vector<36x96xf32>
    %cst_21 = arith.constant dense<0.000000e+00> : vector<36xf32>
    %39 = vector.multi_reduction <add>, %38, %cst_21 [1] : vector<36x96xf32> to vector<36xf32>
    %40 = vector.shape_cast %39 : vector<36xf32> to vector<36x1xf32>
    %cst_22 = arith.constant 9.600000e+01 : f32
    %41 = vector.broadcast %cst_22 : f32 to vector<36x1xf32>
    %42 = arith.divf %40, %41 : vector<36x1xf32>
    %43 = vector.broadcast %35 : vector<36x1xf32> to vector<36x96xf32>
    %44 = arith.subf %5, %43 : vector<36x96xf32>
    %cst_23 = arith.constant 9.99999997E-7 : f32
    %45 = vector.broadcast %cst_23 : f32 to vector<36x1xf32>
    %46 = arith.addf %42, %45 : vector<36x1xf32>
    %47 = math.rsqrt %46 : vector<36x1xf32>
    %48 = vector.broadcast %47 : vector<36x1xf32> to vector<36x96xf32>
    %49 = arith.mulf %44, %48 : vector<36x96xf32>
    %c0_24 = arith.constant 0 : index
    %c0_25 = arith.constant 0 : index
    %50 = vector.load %arg7[%c0_24, %c0_25] : memref<1x96xf32, #tpu.memory_space<vmem>>, vector<1x96xf32>
    %51 = vector.broadcast %50 : vector<1x96xf32> to vector<36x96xf32>
    %52 = arith.mulf %49, %51 : vector<36x96xf32>
    %c0_26 = arith.constant 0 : index
    %c0_27 = arith.constant 0 : index
    %53 = vector.load %arg8[%c0_26, %c0_27] : memref<1x96xf32, #tpu.memory_space<vmem>>, vector<1x96xf32>
    %54 = vector.broadcast %53 : vector<1x96xf32> to vector<36x96xf32>
    %55 = arith.addf %52, %54 : vector<36x96xf32>
    %56 = arith.addf %31, %3 : vector<36x96xf32>
    %57 = arith.truncf %56 : vector<36x96xf32> to vector<36x96xbf16>
    %c0_28 = arith.constant 0 : index
    %c0_29 = arith.constant 0 : index
    %58 = vector.load %arg9[%c0_28, %c0_29] : memref<96x96xbf16, #tpu.memory_space<vmem>>, vector<96x96xbf16>
    %cst_30 = arith.constant dense<0.000000e+00> : vector<36x96xf32>
    %59 = tpu.matmul %57, %58, %cst_30 {dimension_numbers = #tpu.dot_dimension_numbers<[1], [0], [0], [1], [0, 0, 1, 1], [], []>} : vector<36x96xbf16>, vector<96x96xbf16>, vector<36x96xf32> -> vector<36x96xf32>
    %c0_31 = arith.constant 0 : index
    %c0_32 = arith.constant 0 : index
    %60 = vector.load %arg10[%c0_31, %c0_32] : memref<1x96xf32, #tpu.memory_space<vmem>>, vector<1x96xf32>
    %61 = vector.broadcast %60 : vector<1x96xf32> to vector<36x96xf32>
    %62 = arith.addf %59, %61 : vector<36x96xf32>
    %cst_33 = arith.constant 0.176776692 : f32
    %63 = vector.broadcast %cst_33 : f32 to vector<36x96xf32>
    %64 = arith.mulf %62, %63 : vector<36x96xf32>
    %65 = arith.addf %55, %7 : vector<36x96xf32>
    %66 = arith.truncf %65 : vector<36x96xf32> to vector<36x96xbf16>
    %c0_34 = arith.constant 0 : index
    %c0_35 = arith.constant 0 : index
    %67 = vector.load %arg11[%c0_34, %c0_35] : memref<96x96xbf16, #tpu.memory_space<vmem>>, vector<96x96xbf16>
    %cst_36 = arith.constant dense<0.000000e+00> : vector<36x96xf32>
    %68 = tpu.matmul %66, %67, %cst_36 {dimension_numbers = #tpu.dot_dimension_numbers<[1], [0], [0], [1], [0, 0, 1, 1], [], []>} : vector<36x96xbf16>, vector<96x96xbf16>, vector<36x96xf32> -> vector<36x96xf32>
    %c0_37 = arith.constant 0 : index
    %c0_38 = arith.constant 0 : index
    %69 = vector.load %arg12[%c0_37, %c0_38] : memref<1x96xf32, #tpu.memory_space<vmem>>, vector<1x96xf32>
    %70 = vector.broadcast %69 : vector<1x96xf32> to vector<36x96xf32>
    %71 = arith.addf %68, %70 : vector<36x96xf32>
    %72 = arith.truncf %55 : vector<36x96xf32> to vector<36x96xbf16>
    %c0_39 = arith.constant 0 : index
    %c0_40 = arith.constant 0 : index
    %73 = vector.load %arg13[%c0_39, %c0_40] : memref<96x96xbf16, #tpu.memory_space<vmem>>, vector<96x96xbf16>
    %cst_41 = arith.constant dense<0.000000e+00> : vector<36x96xf32>
    %74 = tpu.matmul %72, %73, %cst_41 {dimension_numbers = #tpu.dot_dimension_numbers<[1], [0], [0], [1], [0, 0, 1, 1], [], []>} : vector<36x96xbf16>, vector<96x96xbf16>, vector<36x96xf32> -> vector<36x96xf32>
    %c0_42 = arith.constant 0 : index
    %c0_43 = arith.constant 0 : index
    %75 = vector.load %arg14[%c0_42, %c0_43] : memref<1x96xf32, #tpu.memory_space<vmem>>, vector<1x96xf32>
    %76 = vector.broadcast %75 : vector<1x96xf32> to vector<36x96xf32>
    %77 = arith.addf %74, %76 : vector<36x96xf32>
    %c0_44 = arith.constant 0 : index
    %c0_45 = arith.constant 0 : index
    %78 = vector.load %arg15[%c0_44, %c0_45] : memref<96x96xbf16, #tpu.memory_space<vmem>>, vector<96x96xbf16>
    %cst_46 = arith.constant 0.000000e+00 : f32
    %79 = vector.broadcast %cst_46 : f32 to vector<36x96xf32>
    %80 = vector.extract_strided_slice %64 {offsets = [0, 0], sizes = [36, 32], strides = [1, 1]} : vector<36x96xf32> to vector<36x32xf32>
    %81 = arith.truncf %80 : vector<36x32xf32> to vector<36x32xbf16>
    %82 = vector.extract_strided_slice %71 {offsets = [0, 0], sizes = [36, 32], strides = [1, 1]} : vector<36x96xf32> to vector<36x32xf32>
    %83 = arith.truncf %82 : vector<36x32xf32> to vector<36x32xbf16>
    %84 = vector.extract_strided_slice %77 {offsets = [0, 0], sizes = [36, 32], strides = [1, 1]} : vector<36x96xf32> to vector<36x32xf32>
    %85 = arith.truncf %84 : vector<36x32xf32> to vector<36x32xbf16>
    %cst_47 = arith.constant dense<0.000000e+00> : vector<36x36xf32>
    %86 = tpu.matmul %81, %83, %cst_47 {dimension_numbers = #tpu.dot_dimension_numbers<[1], [1], [0], [0], [0, 0, 1, 0], [], []>} : vector<36x32xbf16>, vector<36x32xbf16>, vector<36x36xf32> -> vector<36x36xf32>
    %cst_48 = arith.constant dense<0xFF800000> : vector<36xf32>
    %87 = vector.multi_reduction <maximumf>, %86, %cst_48 [1] : vector<36x36xf32> to vector<36xf32>
    %88 = vector.shape_cast %87 : vector<36xf32> to vector<36x1xf32>
    %89 = vector.broadcast %88 : vector<36x1xf32> to vector<36x36xf32>
    %90 = arith.subf %86, %89 : vector<36x36xf32>
    %91 = math.exp %90 : vector<36x36xf32>
    %cst_49 = arith.constant dense<0.000000e+00> : vector<36xf32>
    %92 = vector.multi_reduction <add>, %91, %cst_49 [1] : vector<36x36xf32> to vector<36xf32>
    %93 = vector.shape_cast %92 : vector<36xf32> to vector<36x1xf32>
    %94 = tpu.reciprocal %93 {approx = true} : vector<36x1xf32> -> vector<36x1xf32>
    %95 = vector.broadcast %94 : vector<36x1xf32> to vector<36x36xf32>
    %96 = arith.mulf %91, %95 : vector<36x36xf32>
    %97 = arith.truncf %96 : vector<36x36xf32> to vector<36x36xbf16>
    %cst_50 = arith.constant dense<0.000000e+00> : vector<36x32xf32>
    %98 = tpu.matmul %97, %85, %cst_50 {dimension_numbers = #tpu.dot_dimension_numbers<[1], [0], [0], [1], [0, 0, 1, 1], [], []>} : vector<36x36xbf16>, vector<36x32xbf16>, vector<36x32xf32> -> vector<36x32xf32>
    %99 = arith.truncf %98 : vector<36x32xf32> to vector<36x32xbf16>
    %100 = vector.extract_strided_slice %78 {offsets = [0, 0], sizes = [32, 96], strides = [1, 1]} : vector<96x96xbf16> to vector<32x96xbf16>
    %cst_51 = arith.constant dense<0.000000e+00> : vector<36x96xf32>
    %101 = tpu.matmul %99, %100, %cst_51 {dimension_numbers = #tpu.dot_dimension_numbers<[1], [0], [0], [1], [0, 0, 1, 1], [], []>} : vector<36x32xbf16>, vector<32x96xbf16>, vector<36x96xf32> -> vector<36x96xf32>
    %102 = arith.addf %79, %101 : vector<36x96xf32>
    %103 = vector.extract_strided_slice %64 {offsets = [0, 32], sizes = [36, 32], strides = [1, 1]} : vector<36x96xf32> to vector<36x32xf32>
    %104 = arith.truncf %103 : vector<36x32xf32> to vector<36x32xbf16>
    %105 = vector.extract_strided_slice %71 {offsets = [0, 32], sizes = [36, 32], strides = [1, 1]} : vector<36x96xf32> to vector<36x32xf32>
    %106 = arith.truncf %105 : vector<36x32xf32> to vector<36x32xbf16>
    %107 = vector.extract_strided_slice %77 {offsets = [0, 32], sizes = [36, 32], strides = [1, 1]} : vector<36x96xf32> to vector<36x32xf32>
    %108 = arith.truncf %107 : vector<36x32xf32> to vector<36x32xbf16>
    %cst_52 = arith.constant dense<0.000000e+00> : vector<36x36xf32>
    %109 = tpu.matmul %104, %106, %cst_52 {dimension_numbers = #tpu.dot_dimension_numbers<[1], [1], [0], [0], [0, 0, 1, 0], [], []>} : vector<36x32xbf16>, vector<36x32xbf16>, vector<36x36xf32> -> vector<36x36xf32>
    %cst_53 = arith.constant dense<0xFF800000> : vector<36xf32>
    %110 = vector.multi_reduction <maximumf>, %109, %cst_53 [1] : vector<36x36xf32> to vector<36xf32>
    %111 = vector.shape_cast %110 : vector<36xf32> to vector<36x1xf32>
    %112 = vector.broadcast %111 : vector<36x1xf32> to vector<36x36xf32>
    %113 = arith.subf %109, %112 : vector<36x36xf32>
    %114 = math.exp %113 : vector<36x36xf32>
    %cst_54 = arith.constant dense<0.000000e+00> : vector<36xf32>
    %115 = vector.multi_reduction <add>, %114, %cst_54 [1] : vector<36x36xf32> to vector<36xf32>
    %116 = vector.shape_cast %115 : vector<36xf32> to vector<36x1xf32>
    %117 = tpu.reciprocal %116 {approx = true} : vector<36x1xf32> -> vector<36x1xf32>
    %118 = vector.broadcast %117 : vector<36x1xf32> to vector<36x36xf32>
    %119 = arith.mulf %114, %118 : vector<36x36xf32>
    %120 = arith.truncf %119 : vector<36x36xf32> to vector<36x36xbf16>
    %cst_55 = arith.constant dense<0.000000e+00> : vector<36x32xf32>
    %121 = tpu.matmul %120, %108, %cst_55 {dimension_numbers = #tpu.dot_dimension_numbers<[1], [0], [0], [1], [0, 0, 1, 1], [], []>} : vector<36x36xbf16>, vector<36x32xbf16>, vector<36x32xf32> -> vector<36x32xf32>
    %122 = arith.truncf %121 : vector<36x32xf32> to vector<36x32xbf16>
    %123 = vector.extract_strided_slice %78 {offsets = [32, 0], sizes = [32, 96], strides = [1, 1]} : vector<96x96xbf16> to vector<32x96xbf16>
    %cst_56 = arith.constant dense<0.000000e+00> : vector<36x96xf32>
    %124 = tpu.matmul %122, %123, %cst_56 {dimension_numbers = #tpu.dot_dimension_numbers<[1], [0], [0], [1], [0, 0, 1, 1], [], []>} : vector<36x32xbf16>, vector<32x96xbf16>, vector<36x96xf32> -> vector<36x96xf32>
    %125 = arith.addf %102, %124 : vector<36x96xf32>
    %126 = vector.extract_strided_slice %64 {offsets = [0, 64], sizes = [36, 32], strides = [1, 1]} : vector<36x96xf32> to vector<36x32xf32>
    %127 = arith.truncf %126 : vector<36x32xf32> to vector<36x32xbf16>
    %128 = vector.extract_strided_slice %71 {offsets = [0, 64], sizes = [36, 32], strides = [1, 1]} : vector<36x96xf32> to vector<36x32xf32>
    %129 = arith.truncf %128 : vector<36x32xf32> to vector<36x32xbf16>
    %130 = vector.extract_strided_slice %77 {offsets = [0, 64], sizes = [36, 32], strides = [1, 1]} : vector<36x96xf32> to vector<36x32xf32>
    %131 = arith.truncf %130 : vector<36x32xf32> to vector<36x32xbf16>
    %cst_57 = arith.constant dense<0.000000e+00> : vector<36x36xf32>
    %132 = tpu.matmul %127, %129, %cst_57 {dimension_numbers = #tpu.dot_dimension_numbers<[1], [1], [0], [0], [0, 0, 1, 0], [], []>} : vector<36x32xbf16>, vector<36x32xbf16>, vector<36x36xf32> -> vector<36x36xf32>
    %cst_58 = arith.constant dense<0xFF800000> : vector<36xf32>
    %133 = vector.multi_reduction <maximumf>, %132, %cst_58 [1] : vector<36x36xf32> to vector<36xf32>
    %134 = vector.shape_cast %133 : vector<36xf32> to vector<36x1xf32>
    %135 = vector.broadcast %134 : vector<36x1xf32> to vector<36x36xf32>
    %136 = arith.subf %132, %135 : vector<36x36xf32>
    %137 = math.exp %136 : vector<36x36xf32>
    %cst_59 = arith.constant dense<0.000000e+00> : vector<36xf32>
    %138 = vector.multi_reduction <add>, %137, %cst_59 [1] : vector<36x36xf32> to vector<36xf32>
    %139 = vector.shape_cast %138 : vector<36xf32> to vector<36x1xf32>
    %140 = tpu.reciprocal %139 {approx = true} : vector<36x1xf32> -> vector<36x1xf32>
    %141 = vector.broadcast %140 : vector<36x1xf32> to vector<36x36xf32>
    %142 = arith.mulf %137, %141 : vector<36x36xf32>
    %143 = arith.truncf %142 : vector<36x36xf32> to vector<36x36xbf16>
    %cst_60 = arith.constant dense<0.000000e+00> : vector<36x32xf32>
    %144 = tpu.matmul %143, %131, %cst_60 {dimension_numbers = #tpu.dot_dimension_numbers<[1], [0], [0], [1], [0, 0, 1, 1], [], []>} : vector<36x36xbf16>, vector<36x32xbf16>, vector<36x32xf32> -> vector<36x32xf32>
    %145 = arith.truncf %144 : vector<36x32xf32> to vector<36x32xbf16>
    %146 = vector.extract_strided_slice %78 {offsets = [64, 0], sizes = [32, 96], strides = [1, 1]} : vector<96x96xbf16> to vector<32x96xbf16>
    %cst_61 = arith.constant dense<0.000000e+00> : vector<36x96xf32>
    %147 = tpu.matmul %145, %146, %cst_61 {dimension_numbers = #tpu.dot_dimension_numbers<[1], [0], [0], [1], [0, 0, 1, 1], [], []>} : vector<36x32xbf16>, vector<32x96xbf16>, vector<36x96xf32> -> vector<36x96xf32>
    %148 = arith.addf %125, %147 : vector<36x96xf32>
    %c0_62 = arith.constant 0 : index
    %c0_63 = arith.constant 0 : index
    %149 = vector.load %arg16[%c0_62, %c0_63] : memref<1x96xf32, #tpu.memory_space<vmem>>, vector<1x96xf32>
    %150 = vector.broadcast %149 : vector<1x96xf32> to vector<36x96xf32>
    %151 = arith.addf %148, %150 : vector<36x96xf32>
    %152 = arith.addf %1, %151 : vector<36x96xf32>
    %cst_64 = arith.constant dense<0.000000e+00> : vector<36xf32>
    %153 = vector.multi_reduction <add>, %152, %cst_64 [1] : vector<36x96xf32> to vector<36xf32>
    %154 = vector.shape_cast %153 : vector<36xf32> to vector<36x1xf32>
    %cst_65 = arith.constant 9.600000e+01 : f32
    %155 = vector.broadcast %cst_65 : f32 to vector<36x1xf32>
    %156 = arith.divf %154, %155 : vector<36x1xf32>
    %157 = vector.broadcast %156 : vector<36x1xf32> to vector<36x96xf32>
    %158 = arith.subf %152, %157 : vector<36x96xf32>
    %159 = arith.mulf %158, %158 : vector<36x96xf32>
    %cst_66 = arith.constant dense<0.000000e+00> : vector<36xf32>
    %160 = vector.multi_reduction <add>, %159, %cst_66 [1] : vector<36x96xf32> to vector<36xf32>
    %161 = vector.shape_cast %160 : vector<36xf32> to vector<36x1xf32>
    %cst_67 = arith.constant 9.600000e+01 : f32
    %162 = vector.broadcast %cst_67 : f32 to vector<36x1xf32>
    %163 = arith.divf %161, %162 : vector<36x1xf32>
    %164 = vector.broadcast %156 : vector<36x1xf32> to vector<36x96xf32>
    %165 = arith.subf %152, %164 : vector<36x96xf32>
    %cst_68 = arith.constant 9.99999997E-7 : f32
    %166 = vector.broadcast %cst_68 : f32 to vector<36x1xf32>
    %167 = arith.addf %163, %166 : vector<36x1xf32>
    %168 = math.rsqrt %167 : vector<36x1xf32>
    %169 = vector.broadcast %168 : vector<36x1xf32> to vector<36x96xf32>
    %170 = arith.mulf %165, %169 : vector<36x96xf32>
    %c0_69 = arith.constant 0 : index
    %c0_70 = arith.constant 0 : index
    %171 = vector.load %arg17[%c0_69, %c0_70] : memref<1x96xf32, #tpu.memory_space<vmem>>, vector<1x96xf32>
    %172 = vector.broadcast %171 : vector<1x96xf32> to vector<36x96xf32>
    %173 = arith.mulf %170, %172 : vector<36x96xf32>
    %c0_71 = arith.constant 0 : index
    %c0_72 = arith.constant 0 : index
    %174 = vector.load %arg18[%c0_71, %c0_72] : memref<1x96xf32, #tpu.memory_space<vmem>>, vector<1x96xf32>
    %175 = vector.broadcast %174 : vector<1x96xf32> to vector<36x96xf32>
    %176 = arith.addf %173, %175 : vector<36x96xf32>
    %177 = arith.truncf %176 : vector<36x96xf32> to vector<36x96xbf16>
    %c0_73 = arith.constant 0 : index
    %c0_74 = arith.constant 0 : index
    %178 = vector.load %arg19[%c0_73, %c0_74] : memref<96x384xbf16, #tpu.memory_space<vmem>>, vector<96x384xbf16>
    %cst_75 = arith.constant dense<0.000000e+00> : vector<36x384xf32>
    %179 = tpu.matmul %177, %178, %cst_75 {dimension_numbers = #tpu.dot_dimension_numbers<[1], [0], [0], [1], [0, 0, 1, 1], [], []>} : vector<36x96xbf16>, vector<96x384xbf16>, vector<36x384xf32> -> vector<36x384xf32>
    %c0_76 = arith.constant 0 : index
    %c0_77 = arith.constant 0 : index
    %180 = vector.load %arg20[%c0_76, %c0_77] : memref<1x384xf32, #tpu.memory_space<vmem>>, vector<1x384xf32>
    %181 = vector.broadcast %180 : vector<1x384xf32> to vector<36x384xf32>
    %182 = arith.addf %179, %181 : vector<36x384xf32>
    %183 = arith.mulf %182, %182 : vector<36x384xf32>
    %184 = arith.mulf %182, %183 : vector<36x384xf32>
    %cst_78 = arith.constant 4.471500e-02 : f32
    %185 = vector.broadcast %cst_78 : f32 to vector<36x384xf32>
    %186 = arith.mulf %185, %184 : vector<36x384xf32>
    %187 = arith.addf %182, %186 : vector<36x384xf32>
    %cst_79 = arith.constant 0.797884583 : f32
    %188 = vector.broadcast %cst_79 : f32 to vector<36x384xf32>
    %189 = arith.mulf %188, %187 : vector<36x384xf32>
    %190 = math.tanh %189 : vector<36x384xf32>
    %cst_80 = arith.constant 1.000000e+00 : f32
    %191 = vector.broadcast %cst_80 : f32 to vector<36x384xf32>
    %192 = arith.addf %191, %190 : vector<36x384xf32>
    %cst_81 = arith.constant 5.000000e-01 : f32
    %193 = vector.broadcast %cst_81 : f32 to vector<36x384xf32>
    %194 = arith.mulf %193, %192 : vector<36x384xf32>
    %195 = arith.mulf %182, %194 : vector<36x384xf32>
    %196 = arith.truncf %195 : vector<36x384xf32> to vector<36x384xbf16>
    %c0_82 = arith.constant 0 : index
    %c0_83 = arith.constant 0 : index
    %197 = vector.load %arg21[%c0_82, %c0_83] : memref<384x96xbf16, #tpu.memory_space<vmem>>, vector<384x96xbf16>
    %cst_84 = arith.constant dense<0.000000e+00> : vector<36x96xf32>
    %198 = tpu.matmul %196, %197, %cst_84 {dimension_numbers = #tpu.dot_dimension_numbers<[1], [0], [0], [1], [0, 0, 1, 1], [], []>} : vector<36x384xbf16>, vector<384x96xbf16>, vector<36x96xf32> -> vector<36x96xf32>
    %c0_85 = arith.constant 0 : index
    %c0_86 = arith.constant 0 : index
    %199 = vector.load %arg22[%c0_85, %c0_86] : memref<1x96xf32, #tpu.memory_space<vmem>>, vector<1x96xf32>
    %200 = vector.broadcast %199 : vector<1x96xf32> to vector<36x96xf32>
    %201 = arith.addf %198, %200 : vector<36x96xf32>
    %202 = arith.addf %152, %201 : vector<36x96xf32>
    %cst_87 = arith.constant dense<0.000000e+00> : vector<96xf32>
    %203 = vector.multi_reduction <add>, %202, %cst_87 [0] : vector<36x96xf32> to vector<96xf32>
    %204 = vector.shape_cast %203 : vector<96xf32> to vector<1x96xf32>
    %cst_88 = arith.constant 3.600000e+01 : f32
    %205 = vector.broadcast %cst_88 : f32 to vector<1x96xf32>
    %206 = arith.divf %204, %205 : vector<1x96xf32>
    %cst_89 = arith.constant dense<0.000000e+00> : vector<1xf32>
    %207 = vector.multi_reduction <add>, %206, %cst_89 [1] : vector<1x96xf32> to vector<1xf32>
    %208 = vector.shape_cast %207 : vector<1xf32> to vector<1x1xf32>
    %cst_90 = arith.constant 9.600000e+01 : f32
    %209 = vector.broadcast %cst_90 : f32 to vector<1x1xf32>
    %210 = arith.divf %208, %209 : vector<1x1xf32>
    %211 = vector.broadcast %210 : vector<1x1xf32> to vector<1x96xf32>
    %212 = arith.subf %206, %211 : vector<1x96xf32>
    %213 = arith.mulf %212, %212 : vector<1x96xf32>
    %cst_91 = arith.constant dense<0.000000e+00> : vector<1xf32>
    %214 = vector.multi_reduction <add>, %213, %cst_91 [1] : vector<1x96xf32> to vector<1xf32>
    %215 = vector.shape_cast %214 : vector<1xf32> to vector<1x1xf32>
    %cst_92 = arith.constant 9.600000e+01 : f32
    %216 = vector.broadcast %cst_92 : f32 to vector<1x1xf32>
    %217 = arith.divf %215, %216 : vector<1x1xf32>
    %218 = vector.broadcast %210 : vector<1x1xf32> to vector<1x96xf32>
    %219 = arith.subf %206, %218 : vector<1x96xf32>
    %cst_93 = arith.constant 9.99999997E-7 : f32
    %220 = vector.broadcast %cst_93 : f32 to vector<1x1xf32>
    %221 = arith.addf %217, %220 : vector<1x1xf32>
    %222 = math.rsqrt %221 : vector<1x1xf32>
    %223 = vector.broadcast %222 : vector<1x1xf32> to vector<1x96xf32>
    %224 = arith.mulf %219, %223 : vector<1x96xf32>
    %c0_94 = arith.constant 0 : index
    %c0_95 = arith.constant 0 : index
    %225 = vector.load %arg23[%c0_94, %c0_95] : memref<1x96xf32, #tpu.memory_space<vmem>>, vector<1x96xf32>
    %226 = arith.mulf %224, %225 : vector<1x96xf32>
    %c0_96 = arith.constant 0 : index
    %c0_97 = arith.constant 0 : index
    %227 = vector.load %arg24[%c0_96, %c0_97] : memref<1x96xf32, #tpu.memory_space<vmem>>, vector<1x96xf32>
    %228 = arith.addf %226, %227 : vector<1x96xf32>
    %229 = arith.truncf %228 : vector<1x96xf32> to vector<1x96xbf16>
    %c0_98 = arith.constant 0 : index
    %c0_99 = arith.constant 0 : index
    %230 = vector.load %arg25[%c0_98, %c0_99] : memref<96x128xbf16, #tpu.memory_space<vmem>>, vector<96x128xbf16>
    %cst_100 = arith.constant dense<0.000000e+00> : vector<1x128xf32>
    %231 = tpu.matmul %229, %230, %cst_100 {dimension_numbers = #tpu.dot_dimension_numbers<[1], [0], [0], [1], [0, 0, 1, 1], [], []>} : vector<1x96xbf16>, vector<96x128xbf16>, vector<1x128xf32> -> vector<1x128xf32>
    %c0_101 = arith.constant 0 : index
    %c0_102 = arith.constant 0 : index
    %232 = vector.load %arg26[%c0_101, %c0_102] : memref<1x128xf32, #tpu.memory_space<vmem>>, vector<1x128xf32>
    %233 = arith.addf %231, %232 : vector<1x128xf32>
    %234 = vector.shape_cast %233 : vector<1x128xf32> to vector<1x128xf32>
    %235 = vector.broadcast %234 : vector<1x128xf32> to vector<8x128xf32>
    %c0_103 = arith.constant 0 : index
    %c0_104 = arith.constant 0 : index
    %c0_105 = arith.constant 0 : index
    %236 = vector.load %arg27[%c0_103, %c0_104, %c0_105] : memref<1x8x128xf32, #tpu.memory_space<vmem>>, vector<1x8x128xf32>
    %237 = vector.shape_cast %236 : vector<1x8x128xf32> to vector<8x128xf32>
    %238 = vector.shape_cast %235 : vector<8x128xf32> to vector<1x8x128xf32>
    tpu.vector_store %arg27[%c0_103, %c0_104, %c0_105], %238 {strides = array<i32>} : memref<1x8x128xf32, #tpu.memory_space<vmem>>, vector<1x8x128xf32>,
    return
  }
  func.func @transform_0(%arg0: i32) -> (i32, i32, i32) {
    %c0_i32 = arith.constant 0 : i32
    %c0_i32_0 = arith.constant 0 : i32
    %c0_i32_1 = arith.constant 0 : i32
    return %arg0, %c0_i32, %c0_i32_0 : i32, i32, i32
  }
  func.func @transform_1(%arg0: i32) -> (i32, i32, i32) {
    %c0_i32 = arith.constant 0 : i32
    %c0_i32_0 = arith.constant 0 : i32
    %c0_i32_1 = arith.constant 0 : i32
    return %arg0, %c0_i32, %c0_i32_0 : i32, i32, i32
  }
  func.func @transform_2(%arg0: i32) -> (i32, i32, i32) {
    %c0_i32 = arith.constant 0 : i32
    %c0_i32_0 = arith.constant 0 : i32
    %c0_i32_1 = arith.constant 0 : i32
    return %arg0, %c0_i32, %c0_i32_0 : i32, i32, i32
  }
  func.func @transform_3(%arg0: i32) -> (i32, i32, i32) {
    %c0_i32 = arith.constant 0 : i32
    %c0_i32_0 = arith.constant 0 : i32
    %c0_i32_1 = arith.constant 0 : i32
    return %arg0, %c0_i32, %c0_i32_0 : i32, i32, i32
  }
  func.func @transform_4(%arg0: i32) -> (i32, i32) {
    %c0_i32 = arith.constant 0 : i32
    %c0_i32_0 = arith.constant 0 : i32
    %c0_i32_1 = arith.constant 0 : i32
    return %c0_i32, %c0_i32_0 : i32, i32
  }
  func.func @transform_5(%arg0: i32) -> (i32, i32) {
    %c0_i32 = arith.constant 0 : i32
    %c0_i32_0 = arith.constant 0 : i32
    %c0_i32_1 = arith.constant 0 : i32
    return %c0_i32, %c0_i32_0 : i32, i32
  }
  func.func @transform_6(%arg0: i32) -> (i32, i32) {
    %c0_i32 = arith.constant 0 : i32
    %c0_i32_0 = arith.constant 0 : i32
    %c0_i32_1 = arith.constant 0 : i32
    return %c0_i32, %c0_i32_0 : i32, i32
  }
  func.func @transform_7(%arg0: i32) -> (i32, i32) {
    %c0_i32 = arith.constant 0 : i32
    %c0_i32_0 = arith.constant 0 : i32
    %c0_i32_1 = arith.constant 0 : i32
    return %c0_i32, %c0_i32_0 : i32, i32
  }
  func.func @transform_8(%arg0: i32) -> (i32, i32) {
    %c0_i32 = arith.constant 0 : i32
    %c0_i32_0 = arith.constant 0 : i32
    %c0_i32_1 = arith.constant 0 : i32
    return %c0_i32, %c0_i32_0 : i32, i32
  }
  func.func @transform_9(%arg0: i32) -> (i32, i32) {
    %c0_i32 = arith.constant 0 : i32
    %c0_i32_0 = arith.constant 0 : i32
    %c0_i32_1 = arith.constant 0 : i32
    return %c0_i32, %c0_i32_0 : i32, i32
  }
  func.func @transform_10(%arg0: i32) -> (i32, i32) {
    %c0_i32 = arith.constant 0 : i32
    %c0_i32_0 = arith.constant 0 : i32
    %c0_i32_1 = arith.constant 0 : i32
    return %c0_i32, %c0_i32_0 : i32, i32
  }
  func.func @transform_11(%arg0: i32) -> (i32, i32) {
    %c0_i32 = arith.constant 0 : i32
    %c0_i32_0 = arith.constant 0 : i32
    %c0_i32_1 = arith.constant 0 : i32
    return %c0_i32, %c0_i32_0 : i32, i32
  }
  func.func @transform_12(%arg0: i32) -> (i32, i32) {
    %c0_i32 = arith.constant 0 : i32
    %c0_i32_0 = arith.constant 0 : i32
    %c0_i32_1 = arith.constant 0 : i32
    return %c0_i32, %c0_i32_0 : i32, i32
  }
  func.func @transform_13(%arg0: i32) -> (i32, i32) {
    %c0_i32 = arith.constant 0 : i32
    %c0_i32_0 = arith.constant 0 : i32
    %c0_i32_1 = arith.constant 0 : i32
    return %c0_i32, %c0_i32_0 : i32, i32
  }
  func.func @transform_14(%arg0: i32) -> (i32, i32) {
    %c0_i32 = arith.constant 0 : i32
    %c0_i32_0 = arith.constant 0 : i32
    %c0_i32_1 = arith.constant 0 : i32
    return %c0_i32, %c0_i32_0 : i32, i32
  }
  func.func @transform_15(%arg0: i32) -> (i32, i32) {
    %c0_i32 = arith.constant 0 : i32
    %c0_i32_0 = arith.constant 0 : i32
    %c0_i32_1 = arith.constant 0 : i32
    return %c0_i32, %c0_i32_0 : i32, i32
  }
  func.func @transform_16(%arg0: i32) -> (i32, i32) {
    %c0_i32 = arith.constant 0 : i32
    %c0_i32_0 = arith.constant 0 : i32
    %c0_i32_1 = arith.constant 0 : i32
    return %c0_i32, %c0_i32_0 : i32, i32
  }
  func.func @transform_17(%arg0: i32) -> (i32, i32) {
    %c0_i32 = arith.constant 0 : i32
    %c0_i32_0 = arith.constant 0 : i32
    %c0_i32_1 = arith.constant 0 : i32
    return %c0_i32, %c0_i32_0 : i32, i32
  }
  func.func @transform_18(%arg0: i32) -> (i32, i32) {
    %c0_i32 = arith.constant 0 : i32
    %c0_i32_0 = arith.constant 0 : i32
    %c0_i32_1 = arith.constant 0 : i32
    return %c0_i32, %c0_i32_0 : i32, i32
  }
  func.func @transform_19(%arg0: i32) -> (i32, i32) {
    %c0_i32 = arith.constant 0 : i32
    %c0_i32_0 = arith.constant 0 : i32
    %c0_i32_1 = arith.constant 0 : i32
    return %c0_i32, %c0_i32_0 : i32, i32
  }
  func.func @transform_20(%arg0: i32) -> (i32, i32) {
    %c0_i32 = arith.constant 0 : i32
    %c0_i32_0 = arith.constant 0 : i32
    %c0_i32_1 = arith.constant 0 : i32
    return %c0_i32, %c0_i32_0 : i32, i32
  }
  func.func @transform_21(%arg0: i32) -> (i32, i32) {
    %c0_i32 = arith.constant 0 : i32
    %c0_i32_0 = arith.constant 0 : i32
    %c0_i32_1 = arith.constant 0 : i32
    return %c0_i32, %c0_i32_0 : i32, i32
  }
  func.func @transform_22(%arg0: i32) -> (i32, i32) {
    %c0_i32 = arith.constant 0 : i32
    %c0_i32_0 = arith.constant 0 : i32
    %c0_i32_1 = arith.constant 0 : i32
    return %c0_i32, %c0_i32_0 : i32, i32
  }
  func.func @transform_23(%arg0: i32) -> (i32, i32) {
    %c0_i32 = arith.constant 0 : i32
    %c0_i32_0 = arith.constant 0 : i32
    %c0_i32_1 = arith.constant 0 : i32
    return %c0_i32, %c0_i32_0 : i32, i32
  }
  func.func @transform_24(%arg0: i32) -> (i32, i32) {
    %c0_i32 = arith.constant 0 : i32
    %c0_i32_0 = arith.constant 0 : i32
    %c0_i32_1 = arith.constant 0 : i32
    return %c0_i32, %c0_i32_0 : i32, i32
  }
  func.func @transform_25(%arg0: i32) -> (i32, i32) {
    %c0_i32 = arith.constant 0 : i32
    %c0_i32_0 = arith.constant 0 : i32
    %c0_i32_1 = arith.constant 0 : i32
    return %c0_i32, %c0_i32_0 : i32, i32
  }
  func.func @transform_26(%arg0: i32) -> (i32, i32, i32) {
    %c0_i32 = arith.constant 0 : i32
    %c0_i32_0 = arith.constant 0 : i32
    %c0_i32_1 = arith.constant 0 : i32
    return %arg0, %c0_i32, %c0_i32_0 : i32, i32, i32
  }
}

</mosaic_0001>

<llo_original>
// kernel: region_semantic_header_forward.2
$region0: #{region_semantic_header_forward.2}
  #allocation0 [shape = 'u32[]', space=smem, size = 0x4, offset = 0x4, fixed_abs, tag = 'smem constant byte address 0x4 - core index']
  #allocation1 [shape = 'u32[144,128]{1,0:T(1,128)}', space=vmem, size = 0x12000, scoped, tag = 'internal scratch']
  %s0 = inlined_call_operand.vmem [shape: bf16[2,2048,128], index: 0, kind: input, shape index: {}]
  %s1 = inlined_call_operand.vmem [shape: bf16[96,2048], index: 1, kind: input, shape index: {}]
  %s2 = inlined_call_operand.vmem [shape: f32[2,96,128], index: 2, kind: output, shape index: {}]
  %s3 = sld [smem:[#allocation0]]
  $region41: #{region_semantic_header_forward.2} parent=0
    _
  %s5 = ssub.s32 1, %s3
  %s6 = scalar_select 0, %s5, %s3
  loop: start=0, step=1, limit=4
  $region2: #{region_semantic_header_forward.2} parent=0 // loop_pre_header
    _
  $region3: #{region_semantic_header_forward.2} parent=0 // loop_header
    %s8 = sphi 0, %s12
    %p9 = scmp.ge.s32.totalorder %s8, 4
    %s18 = sphi 0, %s20
    %s21 = sphi 0, %s18
    %s22 = sphi 0, %s21
    %s38 = sphi 0, %s22
    %s42 = sphi 0, %s42
    %s44 = sphi 0, %s42
    %s45 = sphi 0, %s44
    %s59 = sphi 0, %s45
    %s65 = sphi 0, %s67
    %s68 = sphi 0, %s65
    %s69 = sphi 0, %s68
    %s85 = sphi 0, %s69
  $region4: #{region_semantic_header_forward.2} parent=0 // loop_header_branch
    %11 = sbr.rel (%p9) target = $region8
  $region5: #{region_semantic_header_forward.2} parent=0 // loop_body
    %s13 = ssub.s32 %s8, 1
    %s14 = ssub.s32 %s8, 2
    %s15 = sadd.s32 %s8, 1
    %s16 = ssub.s32 %s8, %s15
    %p17 = scmp.eq.s32.totalorder %s16, 0
    %s19 = sadd.s32 %s18, 1
    %s20 = scalar_select %p17, %s18, %s19
    %p23 = pneg %p17
    %p24 = scmp.eq.s32.totalorder %s8, 1
    %p25 = por %p23, %p24
    %p26 = scmp.ne.s32.totalorder %s18, %s21
    %p27 = scmp.eq.s32.totalorder %s8, 0
    %p28 = por %p26, %p27
    %p29 = scmp.ne.s32.totalorder %s18, %s21
    %p30 = scmp.eq.s32.totalorder %s13, 1
    %p31 = por %p29, %p30
    %p32 = scmp.ne.s32.totalorder %s21, %s22
    %p33 = scmp.eq.s32.totalorder %s13, 0
    %p34 = por %p32, %p33
    %p35 = scmp.ne.s32.totalorder %s21, %s22
    %p36 = scmp.eq.s32.totalorder %s14, 1
    %p37 = por %p35, %p36
    %p39 = scmp.ne.s32.totalorder %s22, %s38
    %p40 = scmp.eq.s32.totalorder %s14, 0
    %p41 = por %p39, %p40
    %s43 = sadd.s32 %s42, 1
    %p46 = scmp.eq.s32.totalorder %s8, 1
    %p47 = scmp.ne.s32.totalorder %s42, %s44
    %p48 = scmp.eq.s32.totalorder %s8, 0
    %p49 = por %p47, %p48
    %p50 = scmp.ne.s32.totalorder %s42, %s44
    %p51 = scmp.eq.s32.totalorder %s13, 1
    %p52 = por %p50, %p51
    %p53 = scmp.ne.s32.totalorder %s44, %s45
    %p54 = scmp.eq.s32.totalorder %s13, 0
    %p55 = por %p53, %p54
    %p56 = scmp.ne.s32.totalorder %s44, %s45
    %p57 = scmp.eq.s32.totalorder %s14, 1
    %p58 = por %p56, %p57
    %p60 = scmp.ne.s32.totalorder %s45, %s59
    %p61 = scmp.eq.s32.totalorder %s14, 0
    %p62 = por %p60, %p61
    %s63 = ssub.s32 %s8, %s15
    %p64 = scmp.eq.s32.totalorder %s63, 0
    %s66 = sadd.s32 %s65, 1
    %s67 = scalar_select %p64, %s65, %s66
    %p70 = pneg %p64
    %p71 = scmp.eq.s32.totalorder %s8, 1
    %p72 = por %p70, %p71
    %p73 = scmp.ne.s32.totalorder %s65, %s68
    %p74 = scmp.eq.s32.totalorder %s8, 0
    %p75 = por %p73, %p74
    %p76 = scmp.ne.s32.totalorder %s65, %s68
    %p77 = scmp.eq.s32.totalorder %s13, 1
    %p78 = por %p76, %p77
    %p79 = scmp.ne.s32.totalorder %s68, %s69
    %p80 = scmp.eq.s32.totalorder %s13, 0
    %p81 = por %p79, %p80
    %p82 = scmp.ne.s32.totalorder %s68, %s69
    %p83 = scmp.eq.s32.totalorder %s14, 1
    %p84 = por %p82, %p83
    %p86 = scmp.ne.s32.totalorder %s69, %s85
    %p87 = scmp.eq.s32.totalorder %s14, 0
    %p88 = por %p86, %p87
    %p89 = scmp.le.s32.totalorder 1, %s8
    %p90 = scmp.lt.s32.totalorder %s8, 3
    %p91 = pnand %p89, %p90
    %p92 = pneg %p91
    // Predicated region
    $region9: #{region_semantic_header_forward.2} parent=5 // pred_check
      _
    $region10: #{region_semantic_header_forward.2} parent=5 // pred_check_branch
      %94 = sbr.rel (%p91) target = $region12
    $region11: #{region_semantic_header_forward.2} parent=5 // pred_region
      %s95 = ssub.s32 %s8, 1
      // Predicated region
      $region13: #{region_semantic_header_forward.2} parent=11 // pred_check
        %p96 = pneg %p55
      $region14: #{region_semantic_header_forward.2} parent=11 // pred_check_branch
        %98 = sbr.rel (%p96) target = $region16
      $region15: #{region_semantic_header_forward.2} parent=11 // pred_region
        _
      $region16: #{region_semantic_header_forward.2} parent=11 // pred_fallthru
        _
    $region12: #{region_semantic_header_forward.2} parent=5 // pred_fallthru
      _
    %p99 = scmp.lt.s32.totalorder %s8, 2
    // Predicated region
    $region17: #{region_semantic_header_forward.2} parent=5 // pred_check
      %p100 = pneg %p99
    $region18: #{region_semantic_header_forward.2} parent=5 // pred_check_branch
      %102 = sbr.rel (%p100) target = $region20
    $region19: #{region_semantic_header_forward.2} parent=5 // pred_region
      // Predicated region
      $region21: #{region_semantic_header_forward.2} parent=19 // pred_check
        %p103 = pneg %p28
      $region22: #{region_semantic_header_forward.2} parent=19 // pred_check_branch
        %105 = sbr.rel (%p103) target = $region24
      $region23: #{region_semantic_header_forward.2} parent=19 // pred_region
        %p106 = scmp.lt.s32.totalorder %s8, 1
        %s107 = scalar_select %p106, %s8, 1
        %s108 = smul.addr %s107, 256
        %s109 = smul.addr %s108, 4
        %s110 = scalar_lea.vmem %s0, %s109
      $region24: #{region_semantic_header_forward.2} parent=19 // pred_fallthru
        _
    $region20: #{region_semantic_header_forward.2} parent=5 // pred_fallthru
      _
    %p111 = scmp.le.s32.totalorder 1, %s8
    %p112 = scmp.lt.s32.totalorder %s8, 3
    %p113 = pnand %p111, %p112
    %p114 = pneg %p113
    // Predicated region
    $region25: #{region_semantic_header_forward.2} parent=5 // pred_check
      _
    $region26: #{region_semantic_header_forward.2} parent=5 // pred_check_branch
      %116 = sbr.rel (%p113) target = $region28
    $region27: #{region_semantic_header_forward.2} parent=5 // pred_region
      %s117 = ssub.s32 %s8, 1
      %p118 = scmp.lt.s32.totalorder %s13, 1
      %s119 = scalar_select %p118, %s13, 1
      %s120 = smul.addr %s119, 256
      %s121 = smul.addr %s120, 4
      %s122 = scalar_lea.vmem %s0, %s121
      %p123 = pneg %p34
      %p124 = pneg %p31
      %p125 = pneg %p55
      %p126 = pneg %p52
      %p127 = pneg %p81
      %p128 = pneg %p78
      %p129 = scmp.lt.s32.totalorder %s13, 1
      %s130 = scalar_select %p129, %s13, 1
      %s131 = smul.addr %s130, 12
      %s132 = smul.addr %s131, 8
      %s133 = scalar_lea.vmem %s2, %s132
      %p134 = scmp.lt.s32.totalorder %s13, 1
      %s135 = scalar_select %p134, %s13, 1
      %s136 = smul.addr %s135, 256
      %s137 = smul.addr %s136, 4
      %s138 = scalar_lea.vmem %s0, %s137
      %p139 = scmp.lt.s32.totalorder %s13, 1
      %s140 = scalar_select %p139, %s13, 1
      %s141 = smul.addr %s140, 12
      %s142 = smul.addr %s141, 8
      %s143 = scalar_lea.vmem %s2, %s142
      %v145 = vld [vmem:[%s1] sm:$0xff]
      %v146 = vld [vmem:[%s1 + $0x8] sm:$0xff]
      %v147 = vld [vmem:[%s1 + $0x10] sm:$0xff]
      %v148 = vld [vmem:[%s1 + $0x18] sm:$0xff]
      %v149 = vld [vmem:[%s1 + $0x20] sm:$0xff]
      %v150 = vld [vmem:[%s1 + $0x28] sm:$0xff]
      %v151 = vld [vmem:[%s1 + $0x30] sm:$0xff]
      %v152 = vld [vmem:[%s1 + $0x38] sm:$0xff]
      %v153 = vld [vmem:[%s1 + $0x40] sm:$0xff]
      %v154 = vld [vmem:[%s1 + $0x48] sm:$0xff]
      %v155 = vld [vmem:[%s1 + $0x50] sm:$0xff]
      %v156 = vld [vmem:[%s1 + $0x58] sm:$0xff]
      %v157 = vld [vmem:[%s1 + $0x60] sm:$0xff]
      %v158 = vld [vmem:[%s1 + $0x68] sm:$0xff]
      %v159 = vld [vmem:[%s1 + $0x70] sm:$0xff]
      %v160 = vld [vmem:[%s1 + $0x78] sm:$0xff]
      %v161 = vld [vmem:[%s1 + $0x80] sm:$0xff]
      %v162 = vld [vmem:[%s1 + $0x88] sm:$0xff]
      %v163 = vld [vmem:[%s1 + $0x90] sm:$0xff]
      %v164 = vld [vmem:[%s1 + $0x98] sm:$0xff]
      %v165 = vld [vmem:[%s1 + $0xa0] sm:$0xff]
      %v166 = vld [vmem:[%s1 + $0xa8] sm:$0xff]
      %v167 = vld [vmem:[%s1 + $0xb0] sm:$0xff]
      %v168 = vld [vmem:[%s1 + $0xb8] sm:$0xff]
      %v169 = vld [vmem:[%s1 + $0xc0] sm:$0xff]
      %v170 = vld [vmem:[%s1 + $0xc8] sm:$0xff]
      %v171 = vld [vmem:[%s1 + $0xd0] sm:$0xff]
      %v172 = vld [vmem:[%s1 + $0xd8] sm:$0xff]
      %v173 = vld [vmem:[%s1 + $0xe0] sm:$0xff]
      %v174 = vld [vmem:[%s1 + $0xe8] sm:$0xff]
      %v175 = vld [vmem:[%s1 + $0xf0] sm:$0xff]
      %v176 = vld [vmem:[%s1 + $0xf8] sm:$0xff]
      %v177 = vld [vmem:[%s1 + $0x100] sm:$0xff]
      %v178 = vld [vmem:[%s1 + $0x108] sm:$0xff]
      %v179 = vld [vmem:[%s1 + $0x110] sm:$0xff]
      %v180 = vld [vmem:[%s1 + $0x118] sm:$0xff]
      %v181 = vld [vmem:[%s1 + $0x120] sm:$0xff]
      %v182 = vld [vmem:[%s1 + $0x128] sm:$0xff]
      %v183 = vld [vmem:[%s1 + $0x130] sm:$0xff]
      %v184 = vld [vmem:[%s1 + $0x138] sm:$0xff]
      %v185 = vld [vmem:[%s1 + $0x140] sm:$0xff]
      %v186 = vld [vmem:[%s1 + $0x148] sm:$0xff]
      %v187 = vld [vmem:[%s1 + $0x150] sm:$0xff]
      %v188 = vld [vmem:[%s1 + $0x158] sm:$0xff]
      %v189 = vld [vmem:[%s1 + $0x160] sm:$0xff]
      %v190 = vld [vmem:[%s1 + $0x168] sm:$0xff]
      %v191 = vld [vmem:[%s1 + $0x170] sm:$0xff]
      %v192 = vld [vmem:[%s1 + $0x178] sm:$0xff]
      %v193 = vld [vmem:[%s1 + $0x180] sm:$0xff]
      %v194 = vld [vmem:[%s1 + $0x188] sm:$0xff]
      %v195 = vld [vmem:[%s1 + $0x190] sm:$0xff]
      %v196 = vld [vmem:[%s1 + $0x198] sm:$0xff]
      %v197 = vld [vmem:[%s1 + $0x1a0] sm:$0xff]
      %v198 = vld [vmem:[%s1 + $0x1a8] sm:$0xff]
      %v199 = vld [vmem:[%s1 + $0x1b0] sm:$0xff]
      %v200 = vld [vmem:[%s1 + $0x1b8] sm:$0xff]
      %v201 = vld [vmem:[%s1 + $0x1c0] sm:$0xff]
      %v202 = vld [vmem:[%s1 + $0x1c8] sm:$0xff]
      %v203 = vld [vmem:[%s1 + $0x1d0] sm:$0xff]
      %v204 = vld [vmem:[%s1 + $0x1d8] sm:$0xff]
      %v205 = vld [vmem:[%s1 + $0x1e0] sm:$0xff]
      %v206 = vld [vmem:[%s1 + $0x1e8] sm:$0xff]
      %v207 = vld [vmem:[%s1 + $0x1f0] sm:$0xff]
      %v208 = vld [vmem:[%s1 + $0x1f8] sm:$0xff]
      %v209 = vld [vmem:[%s1 + $0x200] sm:$0xff]
      %v210 = vld [vmem:[%s1 + $0x208] sm:$0xff]
      %v211 = vld [vmem:[%s1 + $0x210] sm:$0xff]
      %v212 = vld [vmem:[%s1 + $0x218] sm:$0xff]
      %v213 = vld [vmem:[%s1 + $0x220] sm:$0xff]
      %v214 = vld [vmem:[%s1 + $0x228] sm:$0xff]
      %v215 = vld [vmem:[%s1 + $0x230] sm:$0xff]
      %v216 = vld [vmem:[%s1 + $0x238] sm:$0xff]
      %v217 = vld [vmem:[%s1 + $0x240] sm:$0xff]
      %v218 = vld [vmem:[%s1 + $0x248] sm:$0xff]
      %v219 = vld [vmem:[%s1 + $0x250] sm:$0xff]
      %v220 = vld [vmem:[%s1 + $0x258] sm:$0xff]
      %v221 = vld [vmem:[%s1 + $0x260] sm:$0xff]
      %v222 = vld [vmem:[%s1 + $0x268] sm:$0xff]
      %v223 = vld [vmem:[%s1 + $0x270] sm:$0xff]
      %v224 = vld [vmem:[%s1 + $0x278] sm:$0xff]
      %v225 = vld [vmem:[%s1 + $0x280] sm:$0xff]
      %v226 = vld [vmem:[%s1 + $0x288] sm:$0xff]
      %v227 = vld [vmem:[%s1 + $0x290] sm:$0xff]
      %v228 = vld [vmem:[%s1 + $0x298] sm:$0xff]
      %v229 = vld [vmem:[%s1 + $0x2a0] sm:$0xff]
      %v230 = vld [vmem:[%s1 + $0x2a8] sm:$0xff]
      %v231 = vld [vmem:[%s1 + $0x2b0] sm:$0xff]
      %v232 = vld [vmem:[%s1 + $0x2b8] sm:$0xff]
      %v233 = vld [vmem:[%s1 + $0x2c0] sm:$0xff]
      %v234 = vld [vmem:[%s1 + $0x2c8] sm:$0xff]
      %v235 = vld [vmem:[%s1 + $0x2d0] sm:$0xff]
      %v236 = vld [vmem:[%s1 + $0x2d8] sm:$0xff]
      %v237 = vld [vmem:[%s1 + $0x2e0] sm:$0xff]
      %v238 = vld [vmem:[%s1 + $0x2e8] sm:$0xff]
      %v239 = vld [vmem:[%s1 + $0x2f0] sm:$0xff]
      %v240 = vld [vmem:[%s1 + $0x2f8] sm:$0xff]
      %v241 = vld [vmem:[%s138] sm:$0xf]
      %v242 = vld [vmem:[%s138 + $0x4] sm:$0xf]
      %v243 = vld [vmem:[%s138 + $0x8] sm:$0xf]
      %v244 = vld [vmem:[%s138 + $0xc] sm:$0xf]
      %v245 = vld [vmem:[%s138 + $0x10] sm:$0xf]
      %v246 = vld [vmem:[%s138 + $0x14] sm:$0xf]
      %v247 = vld [vmem:[%s138 + $0x18] sm:$0xf]
      %v248 = vld [vmem:[%s138 + $0x1c] sm:$0xf]
      %v249 = vld [vmem:[%s138 + $0x20] sm:$0xf]
      %v250 = vld [vmem:[%s138 + $0x24] sm:$0xf]
      %v251 = vld [vmem:[%s138 + $0x28] sm:$0xf]
      %v252 = vld [vmem:[%s138 + $0x2c] sm:$0xf]
      %v253 = vld [vmem:[%s138 + $0x30] sm:$0xf]
      %v254 = vld [vmem:[%s138 + $0x34] sm:$0xf]
      %v255 = vld [vmem:[%s138 + $0x38] sm:$0xf]
      %v256 = vld [vmem:[%s138 + $0x3c] sm:$0xf]
      %v257 = vld [vmem:[%s138 + $0x40] sm:$0xf]
      %v258 = vld [vmem:[%s138 + $0x44] sm:$0xf]
      %v259 = vld [vmem:[%s138 + $0x48] sm:$0xf]
      %v260 = vld [vmem:[%s138 + $0x4c] sm:$0xf]
      %v261 = vld [vmem:[%s138 + $0x50] sm:$0xf]
      %v262 = vld [vmem:[%s138 + $0x54] sm:$0xf]
      %v263 = vld [vmem:[%s138 + $0x58] sm:$0xf]
      %v264 = vld [vmem:[%s138 + $0x5c] sm:$0xf]
      %v265 = vld [vmem:[%s138 + $0x60] sm:$0xf]
      %v266 = vld [vmem:[%s138 + $0x64] sm:$0xf]
      %v267 = vld [vmem:[%s138 + $0x68] sm:$0xf]
      %v268 = vld [vmem:[%s138 + $0x6c] sm:$0xf]
      %v269 = vld [vmem:[%s138 + $0x70] sm:$0xf]
      %v270 = vld [vmem:[%s138 + $0x74] sm:$0xf]
      %v271 = vld [vmem:[%s138 + $0x78] sm:$0xf]
      %v272 = vld [vmem:[%s138 + $0x7c] sm:$0xf]
      %v273 = vld [vmem:[%s138 + $0x80] sm:$0xf]
      %v274 = vld [vmem:[%s138 + $0x84] sm:$0xf]
      %v275 = vld [vmem:[%s138 + $0x88] sm:$0xf]
      %v276 = vld [vmem:[%s138 + $0x8c] sm:$0xf]
      %v277 = vld [vmem:[%s138 + $0x90] sm:$0xf]
      %v278 = vld [vmem:[%s138 + $0x94] sm:$0xf]
      %v279 = vld [vmem:[%s138 + $0x98] sm:$0xf]
      %v280 = vld [vmem:[%s138 + $0x9c] sm:$0xf]
      %v281 = vld [vmem:[%s138 + $0xa0] sm:$0xf]
      %v282 = vld [vmem:[%s138 + $0xa4] sm:$0xf]
      %v283 = vld [vmem:[%s138 + $0xa8] sm:$0xf]
      %v284 = vld [vmem:[%s138 + $0xac] sm:$0xf]
      %v285 = vld [vmem:[%s138 + $0xb0] sm:$0xf]
      %v286 = vld [vmem:[%s138 + $0xb4] sm:$0xf]
      %v287 = vld [vmem:[%s138 + $0xb8] sm:$0xf]
      %v288 = vld [vmem:[%s138 + $0xbc] sm:$0xf]
      %v289 = vld [vmem:[%s138 + $0xc0] sm:$0xf]
      %v290 = vld [vmem:[%s138 + $0xc4] sm:$0xf]
      %v291 = vld [vmem:[%s138 + $0xc8] sm:$0xf]
      %v292 = vld [vmem:[%s138 + $0xcc] sm:$0xf]
      %v293 = vld [vmem:[%s138 + $0xd0] sm:$0xf]
      %v294 = vld [vmem:[%s138 + $0xd4] sm:$0xf]
      %v295 = vld [vmem:[%s138 + $0xd8] sm:$0xf]
      %v296 = vld [vmem:[%s138 + $0xdc] sm:$0xf]
      %v297 = vld [vmem:[%s138 + $0xe0] sm:$0xf]
      %v298 = vld [vmem:[%s138 + $0xe4] sm:$0xf]
      %v299 = vld [vmem:[%s138 + $0xe8] sm:$0xf]
      %v300 = vld [vmem:[%s138 + $0xec] sm:$0xf]
      %v301 = vld [vmem:[%s138 + $0xf0] sm:$0xf]
      %v302 = vld [vmem:[%s138 + $0xf4] sm:$0xf]
      %v303 = vld [vmem:[%s138 + $0xf8] sm:$0xf]
      %v304 = vld [vmem:[%s138 + $0xfc] sm:$0xf]
      %v305 = vld [vmem:[%s138 + $0x100] sm:$0xf]
      %v306 = vld [vmem:[%s138 + $0x104] sm:$0xf]
      %v307 = vld [vmem:[%s138 + $0x108] sm:$0xf]
      %v308 = vld [vmem:[%s138 + $0x10c] sm:$0xf]
      %v309 = vld [vmem:[%s138 + $0x110] sm:$0xf]
      %v310 = vld [vmem:[%s138 + $0x114] sm:$0xf]
      %v311 = vld [vmem:[%s138 + $0x118] sm:$0xf]
      %v312 = vld [vmem:[%s138 + $0x11c] sm:$0xf]
      %v313 = vld [vmem:[%s138 + $0x120] sm:$0xf]
      %v314 = vld [vmem:[%s138 + $0x124] sm:$0xf]
      %v315 = vld [vmem:[%s138 + $0x128] sm:$0xf]
      %v316 = vld [vmem:[%s138 + $0x12c] sm:$0xf]
      %v317 = vld [vmem:[%s138 + $0x130] sm:$0xf]
      %v318 = vld [vmem:[%s138 + $0x134] sm:$0xf]
      %v319 = vld [vmem:[%s138 + $0x138] sm:$0xf]
      %v320 = vld [vmem:[%s138 + $0x13c] sm:$0xf]
      %v321 = vld [vmem:[%s138 + $0x140] sm:$0xf]
      %v322 = vld [vmem:[%s138 + $0x144] sm:$0xf]
      %v323 = vld [vmem:[%s138 + $0x148] sm:$0xf]
      %v324 = vld [vmem:[%s138 + $0x14c] sm:$0xf]
      %v325 = vld [vmem:[%s138 + $0x150] sm:$0xf]
      %v326 = vld [vmem:[%s138 + $0x154] sm:$0xf]
      %v327 = vld [vmem:[%s138 + $0x158] sm:$0xf]
      %v328 = vld [vmem:[%s138 + $0x15c] sm:$0xf]
      %v329 = vld [vmem:[%s138 + $0x160] sm:$0xf]
      %v330 = vld [vmem:[%s138 + $0x164] sm:$0xf]
      %v331 = vld [vmem:[%s138 + $0x168] sm:$0xf]
      %v332 = vld [vmem:[%s138 + $0x16c] sm:$0xf]
      %v333 = vld [vmem:[%s138 + $0x170] sm:$0xf]
      %v334 = vld [vmem:[%s138 + $0x174] sm:$0xf]
      %v335 = vld [vmem:[%s138 + $0x178] sm:$0xf]
      %v336 = vld [vmem:[%s138 + $0x17c] sm:$0xf]
      %v337 = vld [vmem:[%s138 + $0x180] sm:$0xf]
      %v338 = vld [vmem:[%s138 + $0x184] sm:$0xf]
      %v339 = vld [vmem:[%s138 + $0x188] sm:$0xf]
      %v340 = vld [vmem:[%s138 + $0x18c] sm:$0xf]
      %v341 = vld [vmem:[%s138 + $0x190] sm:$0xf]
      %v342 = vld [vmem:[%s138 + $0x194] sm:$0xf]
      %v343 = vld [vmem:[%s138 + $0x198] sm:$0xf]
      %v344 = vld [vmem:[%s138 + $0x19c] sm:$0xf]
      %v345 = vld [vmem:[%s138 + $0x1a0] sm:$0xf]
      %v346 = vld [vmem:[%s138 + $0x1a4] sm:$0xf]
      %v347 = vld [vmem:[%s138 + $0x1a8] sm:$0xf]
      %v348 = vld [vmem:[%s138 + $0x1ac] sm:$0xf]
      %v349 = vld [vmem:[%s138 + $0x1b0] sm:$0xf]
      %v350 = vld [vmem:[%s138 + $0x1b4] sm:$0xf]
      %v351 = vld [vmem:[%s138 + $0x1b8] sm:$0xf]
      %v352 = vld [vmem:[%s138 + $0x1bc] sm:$0xf]
      %v353 = vld [vmem:[%s138 + $0x1c0] sm:$0xf]
      %v354 = vld [vmem:[%s138 + $0x1c4] sm:$0xf]
      %v355 = vld [vmem:[%s138 + $0x1c8] sm:$0xf]
      %v356 = vld [vmem:[%s138 + $0x1cc] sm:$0xf]
      %v357 = vld [vmem:[%s138 + $0x1d0] sm:$0xf]
      %v358 = vld [vmem:[%s138 + $0x1d4] sm:$0xf]
      %v359 = vld [vmem:[%s138 + $0x1d8] sm:$0xf]
      %v360 = vld [vmem:[%s138 + $0x1dc] sm:$0xf]
      %v361 = vld [vmem:[%s138 + $0x1e0] sm:$0xf]
      %v362 = vld [vmem:[%s138 + $0x1e4] sm:$0xf]
      %v363 = vld [vmem:[%s138 + $0x1e8] sm:$0xf]
      %v364 = vld [vmem:[%s138 + $0x1ec] sm:$0xf]
      %v365 = vld [vmem:[%s138 + $0x1f0] sm:$0xf]
      %v366 = vld [vmem:[%s138 + $0x1f4] sm:$0xf]
      %v367 = vld [vmem:[%s138 + $0x1f8] sm:$0xf]
      %v368 = vld [vmem:[%s138 + $0x1fc] sm:$0xf]
      %v369 = vld [vmem:[%s138 + $0x200] sm:$0xf]
      %v370 = vld [vmem:[%s138 + $0x204] sm:$0xf]
      %v371 = vld [vmem:[%s138 + $0x208] sm:$0xf]
      %v372 = vld [vmem:[%s138 + $0x20c] sm:$0xf]
      %v373 = vld [vmem:[%s138 + $0x210] sm:$0xf]
      %v374 = vld [vmem:[%s138 + $0x214] sm:$0xf]
      %v375 = vld [vmem:[%s138 + $0x218] sm:$0xf]
      %v376 = vld [vmem:[%s138 + $0x21c] sm:$0xf]
      %v377 = vld [vmem:[%s138 + $0x220] sm:$0xf]
      %v378 = vld [vmem:[%s138 + $0x224] sm:$0xf]
      %v379 = vld [vmem:[%s138 + $0x228] sm:$0xf]
      %v380 = vld [vmem:[%s138 + $0x22c] sm:$0xf]
      %v381 = vld [vmem:[%s138 + $0x230] sm:$0xf]
      %v382 = vld [vmem:[%s138 + $0x234] sm:$0xf]
      %v383 = vld [vmem:[%s138 + $0x238] sm:$0xf]
      %v384 = vld [vmem:[%s138 + $0x23c] sm:$0xf]
      %v385 = vld [vmem:[%s138 + $0x240] sm:$0xf]
      %v386 = vld [vmem:[%s138 + $0x244] sm:$0xf]
      %v387 = vld [vmem:[%s138 + $0x248] sm:$0xf]
      %v388 = vld [vmem:[%s138 + $0x24c] sm:$0xf]
      %v389 = vld [vmem:[%s138 + $0x250] sm:$0xf]
      %v390 = vld [vmem:[%s138 + $0x254] sm:$0xf]
      %v391 = vld [vmem:[%s138 + $0x258] sm:$0xf]
      %v392 = vld [vmem:[%s138 + $0x25c] sm:$0xf]
      %v393 = vld [vmem:[%s138 + $0x260] sm:$0xf]
      %v394 = vld [vmem:[%s138 + $0x264] sm:$0xf]
      %v395 = vld [vmem:[%s138 + $0x268] sm:$0xf]
      %v396 = vld [vmem:[%s138 + $0x26c] sm:$0xf]
      %v397 = vld [vmem:[%s138 + $0x270] sm:$0xf]
      %v398 = vld [vmem:[%s138 + $0x274] sm:$0xf]
      %v399 = vld [vmem:[%s138 + $0x278] sm:$0xf]
      %v400 = vld [vmem:[%s138 + $0x27c] sm:$0xf]
      %v401 = vld [vmem:[%s138 + $0x280] sm:$0xf]
      %v402 = vld [vmem:[%s138 + $0x284] sm:$0xf]
      %v403 = vld [vmem:[%s138 + $0x288] sm:$0xf]
      %v404 = vld [vmem:[%s138 + $0x28c] sm:$0xf]
      %v405 = vld [vmem:[%s138 + $0x290] sm:$0xf]
      %v406 = vld [vmem:[%s138 + $0x294] sm:$0xf]
      %v407 = vld [vmem:[%s138 + $0x298] sm:$0xf]
      %v408 = vld [vmem:[%s138 + $0x29c] sm:$0xf]
      %v409 = vld [vmem:[%s138 + $0x2a0] sm:$0xf]
      %v410 = vld [vmem:[%s138 + $0x2a4] sm:$0xf]
      %v411 = vld [vmem:[%s138 + $0x2a8] sm:$0xf]
      %v412 = vld [vmem:[%s138 + $0x2ac] sm:$0xf]
      %v413 = vld [vmem:[%s138 + $0x2b0] sm:$0xf]
      %v414 = vld [vmem:[%s138 + $0x2b4] sm:$0xf]
      %v415 = vld [vmem:[%s138 + $0x2b8] sm:$0xf]
      %v416 = vld [vmem:[%s138 + $0x2bc] sm:$0xf]
      %v417 = vld [vmem:[%s138 + $0x2c0] sm:$0xf]
      %v418 = vld [vmem:[%s138 + $0x2c4] sm:$0xf]
      %v419 = vld [vmem:[%s138 + $0x2c8] sm:$0xf]
      %v420 = vld [vmem:[%s138 + $0x2cc] sm:$0xf]
      %v421 = vld [vmem:[%s138 + $0x2d0] sm:$0xf]
      %v422 = vld [vmem:[%s138 + $0x2d4] sm:$0xf]
      %v423 = vld [vmem:[%s138 + $0x2d8] sm:$0xf]
      %v424 = vld [vmem:[%s138 + $0x2dc] sm:$0xf]
      %v425 = vld [vmem:[%s138 + $0x2e0] sm:$0xf]
      %v426 = vld [vmem:[%s138 + $0x2e4] sm:$0xf]
      %v427 = vld [vmem:[%s138 + $0x2e8] sm:$0xf]
      %v428 = vld [vmem:[%s138 + $0x2ec] sm:$0xf]
      %v429 = vld [vmem:[%s138 + $0x2f0] sm:$0xf]
      %v430 = vld [vmem:[%s138 + $0x2f4] sm:$0xf]
      %v431 = vld [vmem:[%s138 + $0x2f8] sm:$0xf]
      %v432 = vld [vmem:[%s138 + $0x2fc] sm:$0xf]
      %v433 = vld [vmem:[%s138 + $0x300] sm:$0xf]
      %v434 = vld [vmem:[%s138 + $0x304] sm:$0xf]
      %v435 = vld [vmem:[%s138 + $0x308] sm:$0xf]
      %v436 = vld [vmem:[%s138 + $0x30c] sm:$0xf]
      %v437 = vld [vmem:[%s138 + $0x310] sm:$0xf]
      %v438 = vld [vmem:[%s138 + $0x314] sm:$0xf]
      %v439 = vld [vmem:[%s138 + $0x318] sm:$0xf]
      %v440 = vld [vmem:[%s138 + $0x31c] sm:$0xf]
      %v441 = vld [vmem:[%s138 + $0x320] sm:$0xf]
      %v442 = vld [vmem:[%s138 + $0x324] sm:$0xf]
      %v443 = vld [vmem:[%s138 + $0x328] sm:$0xf]
      %v444 = vld [vmem:[%s138 + $0x32c] sm:$0xf]
      %v445 = vld [vmem:[%s138 + $0x330] sm:$0xf]
      %v446 = vld [vmem:[%s138 + $0x334] sm:$0xf]
      %v447 = vld [vmem:[%s138 + $0x338] sm:$0xf]
      %v448 = vld [vmem:[%s138 + $0x33c] sm:$0xf]
      %v449 = vld [vmem:[%s138 + $0x340] sm:$0xf]
      %v450 = vld [vmem:[%s138 + $0x344] sm:$0xf]
      %v451 = vld [vmem:[%s138 + $0x348] sm:$0xf]
      %v452 = vld [vmem:[%s138 + $0x34c] sm:$0xf]
      %v453 = vld [vmem:[%s138 + $0x350] sm:$0xf]
      %v454 = vld [vmem:[%s138 + $0x354] sm:$0xf]
      %v455 = vld [vmem:[%s138 + $0x358] sm:$0xf]
      %v456 = vld [vmem:[%s138 + $0x35c] sm:$0xf]
      %v457 = vld [vmem:[%s138 + $0x360] sm:$0xf]
      %v458 = vld [vmem:[%s138 + $0x364] sm:$0xf]
      %v459 = vld [vmem:[%s138 + $0x368] sm:$0xf]
      %v460 = vld [vmem:[%s138 + $0x36c] sm:$0xf]
      %v461 = vld [vmem:[%s138 + $0x370] sm:$0xf]
      %v462 = vld [vmem:[%s138 + $0x374] sm:$0xf]
      %v463 = vld [vmem:[%s138 + $0x378] sm:$0xf]
      %v464 = vld [vmem:[%s138 + $0x37c] sm:$0xf]
      %v465 = vld [vmem:[%s138 + $0x380] sm:$0xf]
      %v466 = vld [vmem:[%s138 + $0x384] sm:$0xf]
      %v467 = vld [vmem:[%s138 + $0x388] sm:$0xf]
      %v468 = vld [vmem:[%s138 + $0x38c] sm:$0xf]
      %v469 = vld [vmem:[%s138 + $0x390] sm:$0xf]
      %v470 = vld [vmem:[%s138 + $0x394] sm:$0xf]
      %v471 = vld [vmem:[%s138 + $0x398] sm:$0xf]
      %v472 = vld [vmem:[%s138 + $0x39c] sm:$0xf]
      %v473 = vld [vmem:[%s138 + $0x3a0] sm:$0xf]
      %v474 = vld [vmem:[%s138 + $0x3a4] sm:$0xf]
      %v475 = vld [vmem:[%s138 + $0x3a8] sm:$0xf]
      %v476 = vld [vmem:[%s138 + $0x3ac] sm:$0xf]
      %v477 = vld [vmem:[%s138 + $0x3b0] sm:$0xf]
      %v478 = vld [vmem:[%s138 + $0x3b4] sm:$0xf]
      %v479 = vld [vmem:[%s138 + $0x3b8] sm:$0xf]
      %v480 = vld [vmem:[%s138 + $0x3bc] sm:$0xf]
      %v481 = vld [vmem:[%s138 + $0x3c0] sm:$0xf]
      %v482 = vld [vmem:[%s138 + $0x3c4] sm:$0xf]
      %v483 = vld [vmem:[%s138 + $0x3c8] sm:$0xf]
      %v484 = vld [vmem:[%s138 + $0x3cc] sm:$0xf]
      %v485 = vld [vmem:[%s138 + $0x3d0] sm:$0xf]
      %v486 = vld [vmem:[%s138 + $0x3d4] sm:$0xf]
      %v487 = vld [vmem:[%s138 + $0x3d8] sm:$0xf]
      %v488 = vld [vmem:[%s138 + $0x3dc] sm:$0xf]
      %v489 = vld [vmem:[%s138 + $0x3e0] sm:$0xf]
      %v490 = vld [vmem:[%s138 + $0x3e4] sm:$0xf]
      %v491 = vld [vmem:[%s138 + $0x3e8] sm:$0xf]
      %v492 = vld [vmem:[%s138 + $0x3ec] sm:$0xf]
      %v493 = vld [vmem:[%s138 + $0x3f0] sm:$0xf]
      %v494 = vld [vmem:[%s138 + $0x3f4] sm:$0xf]
      %v495 = vld [vmem:[%s138 + $0x3f8] sm:$0xf]
      %v496 = vld [vmem:[%s138 + $0x3fc] sm:$0xf]
      %v593 = vunpack.c.l.b16 %v145
      %v594 = vunpack.c.h.b16 %v145
      %v595 = vunpack.c.l.b16 %v146
      %v596 = vunpack.c.h.b16 %v146
      %v597 = vunpack.c.l.b16 %v147
      %v598 = vunpack.c.h.b16 %v147
      %v599 = vunpack.c.l.b16 %v148
      %v600 = vunpack.c.h.b16 %v148
      %v601 = vunpack.c.l.b16 %v149
      %v602 = vunpack.c.h.b16 %v149
      %v603 = vunpack.c.l.b16 %v150
      %v604 = vunpack.c.h.b16 %v150
      %v605 = vunpack.c.l.b16 %v151
      %v606 = vunpack.c.h.b16 %v151
      %v607 = vunpack.c.l.b16 %v152
      %v608 = vunpack.c.h.b16 %v152
      %v609 = vunpack.c.l.b16 %v153
      %v610 = vunpack.c.h.b16 %v153
      %v611 = vunpack.c.l.b16 %v154
      %v612 = vunpack.c.h.b16 %v154
      %v613 = vunpack.c.l.b16 %v155
      %v614 = vunpack.c.h.b16 %v155
      %v615 = vunpack.c.l.b16 %v156
      %v616 = vunpack.c.h.b16 %v156
      %v617 = vunpack.c.l.b16 %v157
      %v618 = vunpack.c.h.b16 %v157
      %v619 = vunpack.c.l.b16 %v158
      %v620 = vunpack.c.h.b16 %v158
      %v621 = vunpack.c.l.b16 %v159
      %v622 = vunpack.c.h.b16 %v159
      %v623 = vunpack.c.l.b16 %v160
      %v624 = vunpack.c.h.b16 %v160
      %v625 = vunpack.c.l.b16 %v161
      %v626 = vunpack.c.h.b16 %v161
      %v627 = vunpack.c.l.b16 %v162
      %v628 = vunpack.c.h.b16 %v162
      %v629 = vunpack.c.l.b16 %v163
      %v630 = vunpack.c.h.b16 %v163
      %v631 = vunpack.c.l.b16 %v164
      %v632 = vunpack.c.h.b16 %v164
      %v633 = vunpack.c.l.b16 %v165
      %v634 = vunpack.c.h.b16 %v165
      %v635 = vunpack.c.l.b16 %v166
      %v636 = vunpack.c.h.b16 %v166
      %v637 = vunpack.c.l.b16 %v167
      %v638 = vunpack.c.h.b16 %v167
      %v639 = vunpack.c.l.b16 %v168
      %v640 = vunpack.c.h.b16 %v168
      %v641 = vunpack.c.l.b16 %v169
      %v642 = vunpack.c.h.b16 %v169
      %v643 = vunpack.c.l.b16 %v170
      %v644 = vunpack.c.h.b16 %v170
      %v645 = vunpack.c.l.b16 %v171
      %v646 = vunpack.c.h.b16 %v171
      %v647 = vunpack.c.l.b16 %v172
      %v648 = vunpack.c.h.b16 %v172
      %v649 = vunpack.c.l.b16 %v173
      %v650 = vunpack.c.h.b16 %v173
      %v651 = vunpack.c.l.b16 %v174
      %v652 = vunpack.c.h.b16 %v174
      %v653 = vunpack.c.l.b16 %v175
      %v654 = vunpack.c.h.b16 %v175
      %v655 = vunpack.c.l.b16 %v176
      %v656 = vunpack.c.h.b16 %v176
      %v657 = vunpack.c.l.b16 %v177
      %v658 = vunpack.c.h.b16 %v177
      %v659 = vunpack.c.l.b16 %v178
      %v660 = vunpack.c.h.b16 %v178
      %v661 = vunpack.c.l.b16 %v179
      %v662 = vunpack.c.h.b16 %v179
      %v663 = vunpack.c.l.b16 %v180
      %v664 = vunpack.c.h.b16 %v180
      %v665 = vunpack.c.l.b16 %v181
      %v666 = vunpack.c.h.b16 %v181
      %v667 = vunpack.c.l.b16 %v182
      %v668 = vunpack.c.h.b16 %v182
      %v669 = vunpack.c.l.b16 %v183
      %v670 = vunpack.c.h.b16 %v183
      %v671 = vunpack.c.l.b16 %v184
      %v672 = vunpack.c.h.b16 %v184
      %v673 = vunpack.c.l.b16 %v185
      %v674 = vunpack.c.h.b16 %v185
      %v675 = vunpack.c.l.b16 %v186
      %v676 = vunpack.c.h.b16 %v186
      %v677 = vunpack.c.l.b16 %v187
      %v678 = vunpack.c.h.b16 %v187
      %v679 = vunpack.c.l.b16 %v188
      %v680 = vunpack.c.h.b16 %v188
      %v681 = vunpack.c.l.b16 %v189
      %v682 = vunpack.c.h.b16 %v189
      %v683 = vunpack.c.l.b16 %v190
      %v684 = vunpack.c.h.b16 %v190
      %v685 = vunpack.c.l.b16 %v191
      %v686 = vunpack.c.h.b16 %v191
      %v687 = vunpack.c.l.b16 %v192
      %v688 = vunpack.c.h.b16 %v192
      %v689 = vunpack.c.l.b16 %v193
      %v690 = vunpack.c.h.b16 %v193
      %v691 = vunpack.c.l.b16 %v194
      %v692 = vunpack.c.h.b16 %v194
      %v693 = vunpack.c.l.b16 %v195
      %v694 = vunpack.c.h.b16 %v195
      %v695 = vunpack.c.l.b16 %v196
      %v696 = vunpack.c.h.b16 %v196
      %v697 = vunpack.c.l.b16 %v197
      %v698 = vunpack.c.h.b16 %v197
      %v699 = vunpack.c.l.b16 %v198
      %v700 = vunpack.c.h.b16 %v198
      %v701 = vunpack.c.l.b16 %v199
      %v702 = vunpack.c.h.b16 %v199
      %v703 = vunpack.c.l.b16 %v200
      %v704 = vunpack.c.h.b16 %v200
      %v705 = vunpack.c.l.b16 %v201
      %v706 = vunpack.c.h.b16 %v201
      %v707 = vunpack.c.l.b16 %v202
      %v708 = vunpack.c.h.b16 %v202
      %v709 = vunpack.c.l.b16 %v203
      %v710 = vunpack.c.h.b16 %v203
      %v711 = vunpack.c.l.b16 %v204
      %v712 = vunpack.c.h.b16 %v204
      %v713 = vunpack.c.l.b16 %v205
      %v714 = vunpack.c.h.b16 %v205
      %v715 = vunpack.c.l.b16 %v206
      %v716 = vunpack.c.h.b16 %v206
      %v717 = vunpack.c.l.b16 %v207
      %v718 = vunpack.c.h.b16 %v207
      %v719 = vunpack.c.l.b16 %v208
      %v720 = vunpack.c.h.b16 %v208
      %v721 = vunpack.c.l.b16 %v209
      %v722 = vunpack.c.h.b16 %v209
      %v723 = vunpack.c.l.b16 %v210
      %v724 = vunpack.c.h.b16 %v210
      %v725 = vunpack.c.l.b16 %v211
      %v726 = vunpack.c.h.b16 %v211
      %v727 = vunpack.c.l.b16 %v212
      %v728 = vunpack.c.h.b16 %v212
      %v729 = vunpack.c.l.b16 %v213
      %v730 = vunpack.c.h.b16 %v213
      %v731 = vunpack.c.l.b16 %v214
      %v732 = vunpack.c.h.b16 %v214
      %v733 = vunpack.c.l.b16 %v215
      %v734 = vunpack.c.h.b16 %v215
      %v735 = vunpack.c.l.b16 %v216
      %v736 = vunpack.c.h.b16 %v216
      %v737 = vunpack.c.l.b16 %v217
      %v738 = vunpack.c.h.b16 %v217
      %v739 = vunpack.c.l.b16 %v218
      %v740 = vunpack.c.h.b16 %v218
      %v741 = vunpack.c.l.b16 %v219
      %v742 = vunpack.c.h.b16 %v219
      %v743 = vunpack.c.l.b16 %v220
      %v744 = vunpack.c.h.b16 %v220
      %v745 = vunpack.c.l.b16 %v221
      %v746 = vunpack.c.h.b16 %v221
      %v747 = vunpack.c.l.b16 %v222
      %v748 = vunpack.c.h.b16 %v222
      %v749 = vunpack.c.l.b16 %v223
      %v750 = vunpack.c.h.b16 %v223
      %v751 = vunpack.c.l.b16 %v224
      %v752 = vunpack.c.h.b16 %v224
      %v753 = vunpack.c.l.b16 %v225
      %v754 = vunpack.c.h.b16 %v225
      %v755 = vunpack.c.l.b16 %v226
      %v756 = vunpack.c.h.b16 %v226
      %v757 = vunpack.c.l.b16 %v227
      %v758 = vunpack.c.h.b16 %v227
      %v759 = vunpack.c.l.b16 %v228
      %v760 = vunpack.c.h.b16 %v228
      %v761 = vunpack.c.l.b16 %v229
      %v762 = vunpack.c.h.b16 %v229
      %v763 = vunpack.c.l.b16 %v230
      %v764 = vunpack.c.h.b16 %v230
      %v765 = vunpack.c.l.b16 %v231
      %v766 = vunpack.c.h.b16 %v231
      %v767 = vunpack.c.l.b16 %v232
      %v768 = vunpack.c.h.b16 %v232
      %v769 = vunpack.c.l.b16 %v233
      %v770 = vunpack.c.h.b16 %v233
      %v771 = vunpack.c.l.b16 %v234
      %v772 = vunpack.c.h.b16 %v234
      %v773 = vunpack.c.l.b16 %v235
      %v774 = vunpack.c.h.b16 %v235
      %v775 = vunpack.c.l.b16 %v236
      %v776 = vunpack.c.h.b16 %v236
      %v777 = vunpack.c.l.b16 %v237
      %v778 = vunpack.c.h.b16 %v237
      %v779 = vunpack.c.l.b16 %v238
      %v780 = vunpack.c.h.b16 %v238
      %v781 = vunpack.c.l.b16 %v239
      %v782 = vunpack.c.h.b16 %v239
      %v783 = vunpack.c.l.b16 %v240
      %v784 = vunpack.c.h.b16 %v240
      %v785 = vpack.c.b16 %v609, %v593
      %v786 = vpack.c.b16 %v610, %v594
      %v787 = vpack.c.b16 %v611, %v595
      %v788 = vpack.c.b16 %v612, %v596
      %v789 = vpack.c.b16 %v613, %v597
      %v790 = vpack.c.b16 %v614, %v598
      %v791 = vpack.c.b16 %v615, %v599
      %v792 = vpack.c.b16 %v616, %v600
      %v793 = vpack.c.b16 %v617, %v601
      %v794 = vpack.c.b16 %v618, %v602
      %v795 = vpack.c.b16 %v619, %v603
      %v796 = vpack.c.b16 %v620, %v604
      %v797 = vpack.c.b16 %v621, %v605
      %v798 = vpack.c.b16 %v622, %v606
      %v799 = vpack.c.b16 %v623, %v607
      %v800 = vpack.c.b16 %v624, %v608
      %v801 = vpack.c.b16 %v641, %v625
      %v802 = vpack.c.b16 %v642, %v626
      %v803 = vpack.c.b16 %v643, %v627
      %v804 = vpack.c.b16 %v644, %v628
      %v805 = vpack.c.b16 %v645, %v629
      %v806 = vpack.c.b16 %v646, %v630
      %v807 = vpack.c.b16 %v647, %v631
      %v808 = vpack.c.b16 %v648, %v632
      %v809 = vpack.c.b16 %v649, %v633
      %v810 = vpack.c.b16 %v650, %v634
      %v811 = vpack.c.b16 %v651, %v635
      %v812 = vpack.c.b16 %v652, %v636
      %v813 = vpack.c.b16 %v653, %v637
      %v814 = vpack.c.b16 %v654, %v638
      %v815 = vpack.c.b16 %v655, %v639
      %v816 = vpack.c.b16 %v656, %v640
      %v817 = vpack.c.b16 %v673, %v657
      %v818 = vpack.c.b16 %v674, %v658
      %v819 = vpack.c.b16 %v675, %v659
      %v820 = vpack.c.b16 %v676, %v660
      %v821 = vpack.c.b16 %v677, %v661
      %v822 = vpack.c.b16 %v678, %v662
      %v823 = vpack.c.b16 %v679, %v663
      %v824 = vpack.c.b16 %v680, %v664
      %v825 = vpack.c.b16 %v681, %v665
      %v826 = vpack.c.b16 %v682, %v666
      %v827 = vpack.c.b16 %v683, %v667
      %v828 = vpack.c.b16 %v684, %v668
      %v829 = vpack.c.b16 %v685, %v669
      %v830 = vpack.c.b16 %v686, %v670
      %v831 = vpack.c.b16 %v687, %v671
      %v832 = vpack.c.b16 %v688, %v672
      %v833 = vpack.c.b16 %v705, %v689
      %v834 = vpack.c.b16 %v706, %v690
      %v835 = vpack.c.b16 %v707, %v691
      %v836 = vpack.c.b16 %v708, %v692
      %v837 = vpack.c.b16 %v709, %v693
      %v838 = vpack.c.b16 %v710, %v694
      %v839 = vpack.c.b16 %v711, %v695
      %v840 = vpack.c.b16 %v712, %v696
      %v841 = vpack.c.b16 %v713, %v697
      %v842 = vpack.c.b16 %v714, %v698
      %v843 = vpack.c.b16 %v715, %v699
      %v844 = vpack.c.b16 %v716, %v700
      %v845 = vpack.c.b16 %v717, %v701
      %v846 = vpack.c.b16 %v718, %v702
      %v847 = vpack.c.b16 %v719, %v703
      %v848 = vpack.c.b16 %v720, %v704
      %v849 = vpack.c.b16 %v737, %v721
      %v850 = vpack.c.b16 %v738, %v722
      %v851 = vpack.c.b16 %v739, %v723
      %v852 = vpack.c.b16 %v740, %v724
      %v853 = vpack.c.b16 %v741, %v725
      %v854 = vpack.c.b16 %v742, %v726
      %v855 = vpack.c.b16 %v743, %v727
      %v856 = vpack.c.b16 %v744, %v728
      %v857 = vpack.c.b16 %v745, %v729
      %v858 = vpack.c.b16 %v746, %v730
      %v859 = vpack.c.b16 %v747, %v731
      %v860 = vpack.c.b16 %v748, %v732
      %v861 = vpack.c.b16 %v749, %v733
      %v862 = vpack.c.b16 %v750, %v734
      %v863 = vpack.c.b16 %v751, %v735
      %v864 = vpack.c.b16 %v752, %v736
      %v865 = vpack.c.b16 %v769, %v753
      %v866 = vpack.c.b16 %v770, %v754
      %v867 = vpack.c.b16 %v771, %v755
      %v868 = vpack.c.b16 %v772, %v756
      %v869 = vpack.c.b16 %v773, %v757
      %v870 = vpack.c.b16 %v774, %v758
      %v871 = vpack.c.b16 %v775, %v759
      %v872 = vpack.c.b16 %v776, %v760
      %v873 = vpack.c.b16 %v777, %v761
      %v874 = vpack.c.b16 %v778, %v762
      %v875 = vpack.c.b16 %v779, %v763
      %v876 = vpack.c.b16 %v780, %v764
      %v877 = vpack.c.b16 %v781, %v765
      %v878 = vpack.c.b16 %v782, %v766
      %v879 = vpack.c.b16 %v783, %v767
      %v880 = vpack.c.b16 %v784, %v768
      %v1233 = vunpack.c.l.b16 %v241
      %v1234 = vunpack.c.l.b16 %v242
      %v1235 = vunpack.c.l.b16 %v243
      %v1236 = vunpack.c.l.b16 %v244
      %v1237 = vunpack.c.l.b16 %v245
      %v1238 = vunpack.c.l.b16 %v246
      %v1239 = vunpack.c.l.b16 %v247
      %v1240 = vunpack.c.l.b16 %v248
      %v1241 = vunpack.c.l.b16 %v249
      %v1242 = vunpack.c.l.b16 %v250
      %v1243 = vunpack.c.l.b16 %v251
      %v1244 = vunpack.c.l.b16 %v252
      %v1245 = vunpack.c.l.b16 %v253
      %v1246 = vunpack.c.l.b16 %v254
      %v1247 = vunpack.c.l.b16 %v255
      %v1248 = vunpack.c.l.b16 %v256
      %v1249 = vunpack.c.l.b16 %v257
      %v1250 = vunpack.c.l.b16 %v258
      %v1251 = vunpack.c.l.b16 %v259
      %v1252 = vunpack.c.l.b16 %v260
      %v1253 = vunpack.c.l.b16 %v261
      %v1254 = vunpack.c.l.b16 %v262
      %v1255 = vunpack.c.l.b16 %v263
      %v1256 = vunpack.c.l.b16 %v264
      %v1257 = vunpack.c.l.b16 %v265
      %v1258 = vunpack.c.l.b16 %v266
      %v1259 = vunpack.c.l.b16 %v267
      %v1260 = vunpack.c.l.b16 %v268
      %v1261 = vunpack.c.l.b16 %v269
      %v1262 = vunpack.c.l.b16 %v270
      %v1263 = vunpack.c.l.b16 %v271
      %v1264 = vunpack.c.l.b16 %v272
      %v1265 = vunpack.c.l.b16 %v273
      %v1266 = vunpack.c.l.b16 %v274
      %v1267 = vunpack.c.l.b16 %v275
      %v1268 = vunpack.c.l.b16 %v276
      %v1269 = vunpack.c.l.b16 %v277
      %v1270 = vunpack.c.l.b16 %v278
      %v1271 = vunpack.c.l.b16 %v279
      %v1272 = vunpack.c.l.b16 %v280
      %v1273 = vunpack.c.l.b16 %v281
      %v1274 = vunpack.c.l.b16 %v282
      %v1275 = vunpack.c.l.b16 %v283
      %v1276 = vunpack.c.l.b16 %v284
      %v1277 = vunpack.c.l.b16 %v285
      %v1278 = vunpack.c.l.b16 %v286
      %v1279 = vunpack.c.l.b16 %v287
      %v1280 = vunpack.c.l.b16 %v288
      %v1281 = vunpack.c.l.b16 %v289
      %v1282 = vunpack.c.l.b16 %v290
      %v1283 = vunpack.c.l.b16 %v291
      %v1284 = vunpack.c.l.b16 %v292
      %v1285 = vunpack.c.l.b16 %v293
      %v1286 = vunpack.c.l.b16 %v294
      %v1287 = vunpack.c.l.b16 %v295
      %v1288 = vunpack.c.l.b16 %v296
      %v1289 = vunpack.c.l.b16 %v297
      %v1290 = vunpack.c.l.b16 %v298
      %v1291 = vunpack.c.l.b16 %v299
      %v1292 = vunpack.c.l.b16 %v300
      %v1293 = vunpack.c.l.b16 %v301
      %v1294 = vunpack.c.l.b16 %v302
      %v1295 = vunpack.c.l.b16 %v303
      %v1296 = vunpack.c.l.b16 %v304
      %v1297 = vunpack.c.l.b16 %v305
      %v1298 = vunpack.c.l.b16 %v306
      %v1299 = vunpack.c.l.b16 %v307
      %v1300 = vunpack.c.l.b16 %v308
      %v1301 = vunpack.c.l.b16 %v309
      %v1302 = vunpack.c.l.b16 %v310
      %v1303 = vunpack.c.l.b16 %v311
      %v1304 = vunpack.c.l.b16 %v312
      %v1305 = vunpack.c.l.b16 %v313
      %v1306 = vunpack.c.l.b16 %v314
      %v1307 = vunpack.c.l.b16 %v315
      %v1308 = vunpack.c.l.b16 %v316
      %v1309 = vunpack.c.l.b16 %v317
      %v1310 = vunpack.c.l.b16 %v318
      %v1311 = vunpack.c.l.b16 %v319
      %v1312 = vunpack.c.l.b16 %v320
      %v1313 = vunpack.c.l.b16 %v321
      %v1314 = vunpack.c.l.b16 %v322
      %v1315 = vunpack.c.l.b16 %v323
      %v1316 = vunpack.c.l.b16 %v324
      %v1317 = vunpack.c.l.b16 %v325
      %v1318 = vunpack.c.l.b16 %v326
      %v1319 = vunpack.c.l.b16 %v327
      %v1320 = vunpack.c.l.b16 %v328
      %v1321 = vunpack.c.l.b16 %v329
      %v1322 = vunpack.c.l.b16 %v330
      %v1323 = vunpack.c.l.b16 %v331
      %v1324 = vunpack.c.l.b16 %v332
      %v1325 = vunpack.c.l.b16 %v333
      %v1326 = vunpack.c.l.b16 %v334
      %v1327 = vunpack.c.l.b16 %v335
      %v1328 = vunpack.c.l.b16 %v336
      %v1329 = vunpack.c.l.b16 %v337
      %v1330 = vunpack.c.l.b16 %v338
      %v1331 = vunpack.c.l.b16 %v339
      %v1332 = vunpack.c.l.b16 %v340
      %v1333 = vunpack.c.l.b16 %v341
      %v1334 = vunpack.c.l.b16 %v342
      %v1335 = vunpack.c.l.b16 %v343
      %v1336 = vunpack.c.l.b16 %v344
      %v1337 = vunpack.c.l.b16 %v345
      %v1338 = vunpack.c.l.b16 %v346
      %v1339 = vunpack.c.l.b16 %v347
      %v1340 = vunpack.c.l.b16 %v348
      %v1341 = vunpack.c.l.b16 %v349
      %v1342 = vunpack.c.l.b16 %v350
      %v1343 = vunpack.c.l.b16 %v351
      %v1344 = vunpack.c.l.b16 %v352
      %v1345 = vunpack.c.l.b16 %v353
      %v1346 = vunpack.c.l.b16 %v354
      %v1347 = vunpack.c.l.b16 %v355
      %v1348 = vunpack.c.l.b16 %v356
      %v1349 = vunpack.c.l.b16 %v357
      %v1350 = vunpack.c.l.b16 %v358
      %v1351 = vunpack.c.l.b16 %v359
      %v1352 = vunpack.c.l.b16 %v360
      %v1353 = vunpack.c.l.b16 %v361
      %v1354 = vunpack.c.l.b16 %v362
      %v1355 = vunpack.c.l.b16 %v363
      %v1356 = vunpack.c.l.b16 %v364
      %v1357 = vunpack.c.l.b16 %v365
      %v1358 = vunpack.c.l.b16 %v366
      %v1359 = vunpack.c.l.b16 %v367
      %v1360 = vunpack.c.l.b16 %v368
      %v1361 = vunpack.c.l.b16 %v369
      %v1362 = vunpack.c.l.b16 %v370
      %v1363 = vunpack.c.l.b16 %v371
      %v1364 = vunpack.c.l.b16 %v372
      %v1365 = vunpack.c.l.b16 %v373
      %v1366 = vunpack.c.l.b16 %v374
      %v1367 = vunpack.c.l.b16 %v375
      %v1368 = vunpack.c.l.b16 %v376
      %v1369 = vunpack.c.l.b16 %v377
      %v1370 = vunpack.c.l.b16 %v378
      %v1371 = vunpack.c.l.b16 %v379
      %v1372 = vunpack.c.l.b16 %v380
      %v1373 = vunpack.c.l.b16 %v381
      %v1374 = vunpack.c.l.b16 %v382
      %v1375 = vunpack.c.l.b16 %v383
      %v1376 = vunpack.c.l.b16 %v384
      %v1377 = vunpack.c.l.b16 %v385
      %v1378 = vunpack.c.l.b16 %v386
      %v1379 = vunpack.c.l.b16 %v387
      %v1380 = vunpack.c.l.b16 %v388
      %v1381 = vunpack.c.l.b16 %v389
      %v1382 = vunpack.c.l.b16 %v390
      %v1383 = vunpack.c.l.b16 %v391
      %v1384 = vunpack.c.l.b16 %v392
      %v1385 = vunpack.c.l.b16 %v393
      %v1386 = vunpack.c.l.b16 %v394
      %v1387 = vunpack.c.l.b16 %v395
      %v1388 = vunpack.c.l.b16 %v396
      %v1389 = vunpack.c.l.b16 %v397
      %v1390 = vunpack.c.l.b16 %v398
      %v1391 = vunpack.c.l.b16 %v399
      %v1392 = vunpack.c.l.b16 %v400
      %v1393 = vunpack.c.l.b16 %v401
      %v1394 = vunpack.c.l.b16 %v402
      %v1395 = vunpack.c.l.b16 %v403
      %v1396 = vunpack.c.l.b16 %v404
      %v1397 = vunpack.c.l.b16 %v405
      %v1398 = vunpack.c.l.b16 %v406
      %v1399 = vunpack.c.l.b16 %v407
      %v1400 = vunpack.c.l.b16 %v408
      %v1401 = vunpack.c.l.b16 %v409
      %v1402 = vunpack.c.l.b16 %v410
      %v1403 = vunpack.c.l.b16 %v411
      %v1404 = vunpack.c.l.b16 %v412
      %v1405 = vunpack.c.l.b16 %v413
      %v1406 = vunpack.c.l.b16 %v414
      %v1407 = vunpack.c.l.b16 %v415
      %v1408 = vunpack.c.l.b16 %v416
      %v1409 = vunpack.c.l.b16 %v417
      %v1410 = vunpack.c.l.b16 %v418
      %v1411 = vunpack.c.l.b16 %v419
      %v1412 = vunpack.c.l.b16 %v420
      %v1413 = vunpack.c.l.b16 %v421
      %v1414 = vunpack.c.l.b16 %v422
      %v1415 = vunpack.c.l.b16 %v423
      %v1416 = vunpack.c.l.b16 %v424
      %v1417 = vunpack.c.l.b16 %v425
      %v1418 = vunpack.c.l.b16 %v426
      %v1419 = vunpack.c.l.b16 %v427
      %v1420 = vunpack.c.l.b16 %v428
      %v1421 = vunpack.c.l.b16 %v429
      %v1422 = vunpack.c.l.b16 %v430
      %v1423 = vunpack.c.l.b16 %v431
      %v1424 = vunpack.c.l.b16 %v432
      %v1425 = vunpack.c.l.b16 %v433
      %v1426 = vunpack.c.l.b16 %v434
      %v1427 = vunpack.c.l.b16 %v435
      %v1428 = vunpack.c.l.b16 %v436
      %v1429 = vunpack.c.l.b16 %v437
      %v1430 = vunpack.c.l.b16 %v438
      %v1431 = vunpack.c.l.b16 %v439
      %v1432 = vunpack.c.l.b16 %v440
      %v1433 = vunpack.c.l.b16 %v441
      %v1434 = vunpack.c.l.b16 %v442
      %v1435 = vunpack.c.l.b16 %v443
      %v1436 = vunpack.c.l.b16 %v444
      %v1437 = vunpack.c.l.b16 %v445
      %v1438 = vunpack.c.l.b16 %v446
      %v1439 = vunpack.c.l.b16 %v447
      %v1440 = vunpack.c.l.b16 %v448
      %v1441 = vunpack.c.l.b16 %v449
      %v1442 = vunpack.c.l.b16 %v450
      %v1443 = vunpack.c.l.b16 %v451
      %v1444 = vunpack.c.l.b16 %v452
      %v1445 = vunpack.c.l.b16 %v453
      %v1446 = vunpack.c.l.b16 %v454
      %v1447 = vunpack.c.l.b16 %v455
      %v1448 = vunpack.c.l.b16 %v456
      %v1449 = vunpack.c.l.b16 %v457
      %v1450 = vunpack.c.l.b16 %v458
      %v1451 = vunpack.c.l.b16 %v459
      %v1452 = vunpack.c.l.b16 %v460
      %v1453 = vunpack.c.l.b16 %v461
      %v1454 = vunpack.c.l.b16 %v462
      %v1455 = vunpack.c.l.b16 %v463
      %v1456 = vunpack.c.l.b16 %v464
      %v1457 = vunpack.c.l.b16 %v465
      %v1458 = vunpack.c.l.b16 %v466
      %v1459 = vunpack.c.l.b16 %v467
      %v1460 = vunpack.c.l.b16 %v468
      %v1461 = vunpack.c.l.b16 %v469
      %v1462 = vunpack.c.l.b16 %v470
      %v1463 = vunpack.c.l.b16 %v471
      %v1464 = vunpack.c.l.b16 %v472
      %v1465 = vunpack.c.l.b16 %v473
      %v1466 = vunpack.c.l.b16 %v474
      %v1467 = vunpack.c.l.b16 %v475
      %v1468 = vunpack.c.l.b16 %v476
      %v1469 = vunpack.c.l.b16 %v477
      %v1470 = vunpack.c.l.b16 %v478
      %v1471 = vunpack.c.l.b16 %v479
      %v1472 = vunpack.c.l.b16 %v480
      %v1473 = vunpack.c.l.b16 %v481
      %v1474 = vunpack.c.l.b16 %v482
      %v1475 = vunpack.c.l.b16 %v483
      %v1476 = vunpack.c.l.b16 %v484
      %v1477 = vunpack.c.l.b16 %v485
      %v1478 = vunpack.c.l.b16 %v486
      %v1479 = vunpack.c.l.b16 %v487
      %v1480 = vunpack.c.l.b16 %v488
      %v1481 = vunpack.c.l.b16 %v489
      %v1482 = vunpack.c.l.b16 %v490
      %v1483 = vunpack.c.l.b16 %v491
      %v1484 = vunpack.c.l.b16 %v492
      %v1485 = vunpack.c.l.b16 %v493
      %v1486 = vunpack.c.l.b16 %v494
      %v1487 = vunpack.c.l.b16 %v495
      %v1488 = vunpack.c.l.b16 %v496
      %v1489 = vpack.c.b16 %v1234, %v1233
      %v1490 = vpack.c.b16 %v1236, %v1235
      %v1491 = vpack.c.b16 %v1238, %v1237
      %v1492 = vpack.c.b16 %v1240, %v1239
      %v1493 = vpack.c.b16 %v1242, %v1241
      %v1494 = vpack.c.b16 %v1244, %v1243
      %v1495 = vpack.c.b16 %v1246, %v1245
      %v1496 = vpack.c.b16 %v1248, %v1247
      %v1497 = vpack.c.b16 %v1250, %v1249
      %v1498 = vpack.c.b16 %v1252, %v1251
      %v1499 = vpack.c.b16 %v1254, %v1253
      %v1500 = vpack.c.b16 %v1256, %v1255
      %v1501 = vpack.c.b16 %v1258, %v1257
      %v1502 = vpack.c.b16 %v1260, %v1259
      %v1503 = vpack.c.b16 %v1262, %v1261
      %v1504 = vpack.c.b16 %v1264, %v1263
      %v1505 = vpack.c.b16 %v1266, %v1265
      %v1506 = vpack.c.b16 %v1268, %v1267
      %v1507 = vpack.c.b16 %v1270, %v1269
      %v1508 = vpack.c.b16 %v1272, %v1271
      %v1509 = vpack.c.b16 %v1274, %v1273
      %v1510 = vpack.c.b16 %v1276, %v1275
      %v1511 = vpack.c.b16 %v1278, %v1277
      %v1512 = vpack.c.b16 %v1280, %v1279
      %v1513 = vpack.c.b16 %v1282, %v1281
      %v1514 = vpack.c.b16 %v1284, %v1283
      %v1515 = vpack.c.b16 %v1286, %v1285
      %v1516 = vpack.c.b16 %v1288, %v1287
      %v1517 = vpack.c.b16 %v1290, %v1289
      %v1518 = vpack.c.b16 %v1292, %v1291
      %v1519 = vpack.c.b16 %v1294, %v1293
      %v1520 = vpack.c.b16 %v1296, %v1295
      %v1521 = vpack.c.b16 %v1298, %v1297
      %v1522 = vpack.c.b16 %v1300, %v1299
      %v1523 = vpack.c.b16 %v1302, %v1301
      %v1524 = vpack.c.b16 %v1304, %v1303
      %v1525 = vpack.c.b16 %v1306, %v1305
      %v1526 = vpack.c.b16 %v1308, %v1307
      %v1527 = vpack.c.b16 %v1310, %v1309
      %v1528 = vpack.c.b16 %v1312, %v1311
      %v1529 = vpack.c.b16 %v1314, %v1313
      %v1530 = vpack.c.b16 %v1316, %v1315
      %v1531 = vpack.c.b16 %v1318, %v1317
      %v1532 = vpack.c.b16 %v1320, %v1319
      %v1533 = vpack.c.b16 %v1322, %v1321
      %v1534 = vpack.c.b16 %v1324, %v1323
      %v1535 = vpack.c.b16 %v1326, %v1325
      %v1536 = vpack.c.b16 %v1328, %v1327
      %v1537 = vpack.c.b16 %v1330, %v1329
      %v1538 = vpack.c.b16 %v1332, %v1331
      %v1539 = vpack.c.b16 %v1334, %v1333
      %v1540 = vpack.c.b16 %v1336, %v1335
      %v1541 = vpack.c.b16 %v1338, %v1337
      %v1542 = vpack.c.b16 %v1340, %v1339
      %v1543 = vpack.c.b16 %v1342, %v1341
      %v1544 = vpack.c.b16 %v1344, %v1343
      %v1545 = vpack.c.b16 %v1346, %v1345
      %v1546 = vpack.c.b16 %v1348, %v1347
      %v1547 = vpack.c.b16 %v1350, %v1349
      %v1548 = vpack.c.b16 %v1352, %v1351
      %v1549 = vpack.c.b16 %v1354, %v1353
      %v1550 = vpack.c.b16 %v1356, %v1355
      %v1551 = vpack.c.b16 %v1358, %v1357
      %v1552 = vpack.c.b16 %v1360, %v1359
      %v1553 = vpack.c.b16 %v1362, %v1361
      %v1554 = vpack.c.b16 %v1364, %v1363
      %v1555 = vpack.c.b16 %v1366, %v1365
      %v1556 = vpack.c.b16 %v1368, %v1367
      %v1557 = vpack.c.b16 %v1370, %v1369
      %v1558 = vpack.c.b16 %v1372, %v1371
      %v1559 = vpack.c.b16 %v1374, %v1373
      %v1560 = vpack.c.b16 %v1376, %v1375
      %v1561 = vpack.c.b16 %v1378, %v1377
      %v1562 = vpack.c.b16 %v1380, %v1379
      %v1563 = vpack.c.b16 %v1382, %v1381
      %v1564 = vpack.c.b16 %v1384, %v1383
      %v1565 = vpack.c.b16 %v1386, %v1385
      %v1566 = vpack.c.b16 %v1388, %v1387
      %v1567 = vpack.c.b16 %v1390, %v1389
      %v1568 = vpack.c.b16 %v1392, %v1391
      %v1569 = vpack.c.b16 %v1394, %v1393
      %v1570 = vpack.c.b16 %v1396, %v1395
      %v1571 = vpack.c.b16 %v1398, %v1397
      %v1572 = vpack.c.b16 %v1400, %v1399
      %v1573 = vpack.c.b16 %v1402, %v1401
      %v1574 = vpack.c.b16 %v1404, %v1403
      %v1575 = vpack.c.b16 %v1406, %v1405
      %v1576 = vpack.c.b16 %v1408, %v1407
      %v1577 = vpack.c.b16 %v1410, %v1409
      %v1578 = vpack.c.b16 %v1412, %v1411
      %v1579 = vpack.c.b16 %v1414, %v1413
      %v1580 = vpack.c.b16 %v1416, %v1415
      %v1581 = vpack.c.b16 %v1418, %v1417
      %v1582 = vpack.c.b16 %v1420, %v1419
      %v1583 = vpack.c.b16 %v1422, %v1421
      %v1584 = vpack.c.b16 %v1424, %v1423
      %v1585 = vpack.c.b16 %v1426, %v1425
      %v1586 = vpack.c.b16 %v1428, %v1427
      %v1587 = vpack.c.b16 %v1430, %v1429
      %v1588 = vpack.c.b16 %v1432, %v1431
      %v1589 = vpack.c.b16 %v1434, %v1433
      %v1590 = vpack.c.b16 %v1436, %v1435
      %v1591 = vpack.c.b16 %v1438, %v1437
      %v1592 = vpack.c.b16 %v1440, %v1439
      %v1593 = vpack.c.b16 %v1442, %v1441
      %v1594 = vpack.c.b16 %v1444, %v1443
      %v1595 = vpack.c.b16 %v1446, %v1445
      %v1596 = vpack.c.b16 %v1448, %v1447
      %v1597 = vpack.c.b16 %v1450, %v1449
      %v1598 = vpack.c.b16 %v1452, %v1451
      %v1599 = vpack.c.b16 %v1454, %v1453
      %v1600 = vpack.c.b16 %v1456, %v1455
      %v1601 = vpack.c.b16 %v1458, %v1457
      %v1602 = vpack.c.b16 %v1460, %v1459
      %v1603 = vpack.c.b16 %v1462, %v1461
      %v1604 = vpack.c.b16 %v1464, %v1463
      %v1605 = vpack.c.b16 %v1466, %v1465
      %v1606 = vpack.c.b16 %v1468, %v1467
      %v1607 = vpack.c.b16 %v1470, %v1469
      %v1608 = vpack.c.b16 %v1472, %v1471
      %v1609 = vpack.c.b16 %v1474, %v1473
      %v1610 = vpack.c.b16 %v1476, %v1475
      %v1611 = vpack.c.b16 %v1478, %v1477
      %v1612 = vpack.c.b16 %v1480, %v1479
      %v1613 = vpack.c.b16 %v1482, %v1481
      %v1614 = vpack.c.b16 %v1484, %v1483
      %v1615 = vpack.c.b16 %v1486, %v1485
      %v1616 = vpack.c.b16 %v1488, %v1487
      %1745 = vmatprep.subr.bf16.mxu0 0
      %1746 = vmatpush1.bf16.msra.mxu0 %v1489
      %1747 = vmatprep.subr.bf16.mxu0 0
      %1748 = vmatpush1.bf16.msra.mxu0 %v1490
      %1749 = vmatprep.subr.bf16.mxu0 0
      %1750 = vmatpush1.bf16.msra.mxu0 %v1491
      %1751 = vmatprep.subr.bf16.mxu0 0
      %1752 = vmatpush1.bf16.msra.mxu0 %v1492
      %1753 = vmatprep.subr.bf16.mxu0 0
      %1754 = vmatpush1.bf16.msra.mxu0 %v1493
      %1755 = vmatprep.subr.bf16.mxu0 0
      %1756 = vmatpush1.bf16.msra.mxu0 %v1494
      %1757 = vmatprep.subr.bf16.mxu0 0
      %1758 = vmatpush1.bf16.msra.mxu0 %v1495
      %1759 = vmatprep.subr.bf16.mxu0 0
      %1760 = vmatpush1.bf16.msra.mxu0 %v1496
      %1761 = vmatprep.subr.bf16.mxu0 0
      %1762 = vmatpush1.bf16.msra.mxu0 %v1497
      %1763 = vmatprep.subr.bf16.mxu0 0
      %1764 = vmatpush1.bf16.msra.mxu0 %v1498
      %1765 = vmatprep.subr.bf16.mxu0 0
      %1766 = vmatpush1.bf16.msra.mxu0 %v1499
      %1767 = vmatprep.subr.bf16.mxu0 0
      %1768 = vmatpush1.bf16.msra.mxu0 %v1500
      %1769 = vmatprep.subr.bf16.mxu0 0
      %1770 = vmatpush1.bf16.msra.mxu0 %v1501
      %1771 = vmatprep.subr.bf16.mxu0 0
      %1772 = vmatpush1.bf16.msra.mxu0 %v1502
      %1773 = vmatprep.subr.bf16.mxu0 0
      %1774 = vmatpush1.bf16.msra.mxu0 %v1503
      %1775 = vmatprep.subr.bf16.mxu0 0
      %1776 = vmatpush1.bf16.msra.mxu0 %v1504
      %1777 = vmatprep.mubr.bf16.mxu0 %v786
      %1778 = vmatmul.mubr.bf16.gmra.mrb[0].mxu0 %v785
      %v1779 = vpop.f32.mrb[0].mxu0
      %v1780 = vadd.f32 0.0, %v1779
      %v1781 = vpop.f32.mrb[0].mxu0
      %v1782 = vpop.f32.mrb[0].mxu0
      %v1783 = vadd.f32 0.0, %v1782
      %v1784 = vpop.f32.mrb[0].mxu0
      %1785 = vmatprep.mubr.bf16.mxu0 %v802
      %1786 = vmatmul.mubr.bf16.gmra.mrb[0].mxu0 %v801
      %v1787 = vpop.f32.mrb[0].mxu0
      %v1788 = vadd.f32 0.0, %v1787
      %v1789 = vpop.f32.mrb[0].mxu0
      %v1790 = vpop.f32.mrb[0].mxu0
      %v1791 = vadd.f32 0.0, %v1790
      %v1792 = vpop.f32.mrb[0].mxu0
      %1793 = vmatprep.mubr.bf16.mxu0 %v818
      %1794 = vmatmul.mubr.bf16.gmra.mrb[0].mxu0 %v817
      %v1795 = vpop.f32.mrb[0].mxu0
      %v1796 = vadd.f32 0.0, %v1795
      %v1797 = vpop.f32.mrb[0].mxu0
      %v1798 = vpop.f32.mrb[0].mxu0
      %v1799 = vadd.f32 0.0, %v1798
      %v1800 = vpop.f32.mrb[0].mxu0
      %1801 = vmatprep.mubr.bf16.mxu0 %v834
      %1802 = vmatmul.mubr.bf16.gmra.mrb[0].mxu0 %v833
      %v1803 = vpop.f32.mrb[0].mxu0
      %v1804 = vadd.f32 0.0, %v1803
      %v1805 = vpop.f32.mrb[0].mxu0
      %v1806 = vpop.f32.mrb[0].mxu0
      %v1807 = vadd.f32 0.0, %v1806
      %v1808 = vpop.f32.mrb[0].mxu0
      %1809 = vmatprep.mubr.bf16.mxu0 %v850
      %1810 = vmatmul.mubr.bf16.gmra.mrb[0].mxu0 %v849
      %v1811 = vpop.f32.mrb[0].mxu0
      %v1812 = vadd.f32 0.0, %v1811
      %v1813 = vpop.f32.mrb[0].mxu0
      %v1814 = vpop.f32.mrb[0].mxu0
      %v1815 = vadd.f32 0.0, %v1814
      %v1816 = vpop.f32.mrb[0].mxu0
      %1817 = vmatprep.mubr.bf16.mxu0 %v866
      %1818 = vmatmul.mubr.bf16.gmra.mrb[0].mxu0 %v865
      %v1819 = vpop.f32.mrb[0].mxu0
      %v1820 = vadd.f32 0.0, %v1819
      %v1821 = vpop.f32.mrb[0].mxu0
      %v1822 = vpop.f32.mrb[0].mxu0
      %v1823 = vadd.f32 0.0, %v1822
      %v1824 = vpop.f32.mrb[0].mxu0
      %1825 = vdwg.mxu0
      %1826 = vmatprep.subr.bf16.mxu0 0
      %1827 = vmatpush1.bf16.msra.mxu0 %v1505
      %1828 = vmatprep.subr.bf16.mxu0 0
      %1829 = vmatpush1.bf16.msra.mxu0 %v1506
      %1830 = vmatprep.subr.bf16.mxu0 0
      %1831 = vmatpush1.bf16.msra.mxu0 %v1507
      %1832 = vmatprep.subr.bf16.mxu0 0
      %1833 = vmatpush1.bf16.msra.mxu0 %v1508
      %1834 = vmatprep.subr.bf16.mxu0 0
      %1835 = vmatpush1.bf16.msra.mxu0 %v1509
      %1836 = vmatprep.subr.bf16.mxu0 0
      %1837 = vmatpush1.bf16.msra.mxu0 %v1510
      %1838 = vmatprep.subr.bf16.mxu0 0
      %1839 = vmatpush1.bf16.msra.mxu0 %v1511
      %1840 = vmatprep.subr.bf16.mxu0 0
      %1841 = vmatpush1.bf16.msra.mxu0 %v1512
      %1842 = vmatprep.subr.bf16.mxu0 0
      %1843 = vmatpush1.bf16.msra.mxu0 %v1513
      %1844 = vmatprep.subr.bf16.mxu0 0
      %1845 = vmatpush1.bf16.msra.mxu0 %v1514
      %1846 = vmatprep.subr.bf16.mxu0 0
      %1847 = vmatpush1.bf16.msra.mxu0 %v1515
      %1848 = vmatprep.subr.bf16.mxu0 0
      %1849 = vmatpush1.bf16.msra.mxu0 %v1516
      %1850 = vmatprep.subr.bf16.mxu0 0
      %1851 = vmatpush1.bf16.msra.mxu0 %v1517
      %1852 = vmatprep.subr.bf16.mxu0 0
      %1853 = vmatpush1.bf16.msra.mxu0 %v1518
      %1854 = vmatprep.subr.bf16.mxu0 0
      %1855 = vmatpush1.bf16.msra.mxu0 %v1519
      %1856 = vmatprep.subr.bf16.mxu0 0
      %1857 = vmatpush1.bf16.msra.mxu0 %v1520
      %1858 = vmatprep.mubr.bf16.mxu0 %v788
      %1859 = vmatmul.mubr.bf16.gmra.mrb[0].mxu0 %v787
      %v1860 = vpop.f32.mrb[0].mxu0
      %v1861 = vadd.f32 %v1780, %v1860
      %v1862 = vpop.f32.mrb[0].mxu0
      %v1863 = vpop.f32.mrb[0].mxu0
      %v1864 = vadd.f32 %v1783, %v1863
      %v1865 = vpop.f32.mrb[0].mxu0
      %1866 = vmatprep.mubr.bf16.mxu0 %v804
      %1867 = vmatmul.mubr.bf16.gmra.mrb[0].mxu0 %v803
      %v1868 = vpop.f32.mrb[0].mxu0
      %v1869 = vadd.f32 %v1788, %v1868
      %v1870 = vpop.f32.mrb[0].mxu0
      %v1871 = vpop.f32.mrb[0].mxu0
      %v1872 = vadd.f32 %v1791, %v1871
      %v1873 = vpop.f32.mrb[0].mxu0
      %1874 = vmatprep.mubr.bf16.mxu0 %v820
      %1875 = vmatmul.mubr.bf16.gmra.mrb[0].mxu0 %v819
      %v1876 = vpop.f32.mrb[0].mxu0
      %v1877 = vadd.f32 %v1796, %v1876
      %v1878 = vpop.f32.mrb[0].mxu0
      %v1879 = vpop.f32.mrb[0].mxu0
      %v1880 = vadd.f32 %v1799, %v1879
      %v1881 = vpop.f32.mrb[0].mxu0
      %1882 = vmatprep.mubr.bf16.mxu0 %v836
      %1883 = vmatmul.mubr.bf16.gmra.mrb[0].mxu0 %v835
      %v1884 = vpop.f32.mrb[0].mxu0
      %v1885 = vadd.f32 %v1804, %v1884
      %v1886 = vpop.f32.mrb[0].mxu0
      %v1887 = vpop.f32.mrb[0].mxu0
      %v1888 = vadd.f32 %v1807, %v1887
      %v1889 = vpop.f32.mrb[0].mxu0
      %1890 = vmatprep.mubr.bf16.mxu0 %v852
      %1891 = vmatmul.mubr.bf16.gmra.mrb[0].mxu0 %v851
      %v1892 = vpop.f32.mrb[0].mxu0
      %v1893 = vadd.f32 %v1812, %v1892
      %v1894 = vpop.f32.mrb[0].mxu0
      %v1895 = vpop.f32.mrb[0].mxu0
      %v1896 = vadd.f32 %v1815, %v1895
      %v1897 = vpop.f32.mrb[0].mxu0
      %1898 = vmatprep.mubr.bf16.mxu0 %v868
      %1899 = vmatmul.mubr.bf16.gmra.mrb[0].mxu0 %v867
      %v1900 = vpop.f32.mrb[0].mxu0
      %v1901 = vadd.f32 %v1820, %v1900
      %v1902 = vpop.f32.mrb[0].mxu0
      %v1903 = vpop.f32.mrb[0].mxu0
      %v1904 = vadd.f32 %v1823, %v1903
      %v1905 = vpop.f32.mrb[0].mxu0
      %1906 = vdwg.mxu0
      %1907 = vmatprep.subr.bf16.mxu0 0
      %1908 = vmatpush1.bf16.msra.mxu0 %v1521
      %1909 = vmatprep.subr.bf16.mxu0 0
      %1910 = vmatpush1.bf16.msra.mxu0 %v1522
      %1911 = vmatprep.subr.bf16.mxu0 0
      %1912 = vmatpush1.bf16.msra.mxu0 %v1523
      %1913 = vmatprep.subr.bf16.mxu0 0
      %1914 = vmatpush1.bf16.msra.mxu0 %v1524
      %1915 = vmatprep.subr.bf16.mxu0 0
      %1916 = vmatpush1.bf16.msra.mxu0 %v1525
      %1917 = vmatprep.subr.bf16.mxu0 0
      %1918 = vmatpush1.bf16.msra.mxu0 %v1526
      %1919 = vmatprep.subr.bf16.mxu0 0
      %1920 = vmatpush1.bf16.msra.mxu0 %v1527
      %1921 = vmatprep.subr.bf16.mxu0 0
      %1922 = vmatpush1.bf16.msra.mxu0 %v1528
      %1923 = vmatprep.subr.bf16.mxu0 0
      %1924 = vmatpush1.bf16.msra.mxu0 %v1529
      %1925 = vmatprep.subr.bf16.mxu0 0
      %1926 = vmatpush1.bf16.msra.mxu0 %v1530
      %1927 = vmatprep.subr.bf16.mxu0 0
      %1928 = vmatpush1.bf16.msra.mxu0 %v1531
      %1929 = vmatprep.subr.bf16.mxu0 0
      %1930 = vmatpush1.bf16.msra.mxu0 %v1532
      %1931 = vmatprep.subr.bf16.mxu0 0
      %1932 = vmatpush1.bf16.msra.mxu0 %v1533
      %1933 = vmatprep.subr.bf16.mxu0 0
      %1934 = vmatpush1.bf16.msra.mxu0 %v1534
      %1935 = vmatprep.subr.bf16.mxu0 0
      %1936 = vmatpush1.bf16.msra.mxu0 %v1535
      %1937 = vmatprep.subr.bf16.mxu0 0
      %1938 = vmatpush1.bf16.msra.mxu0 %v1536
      %1939 = vmatprep.mubr.bf16.mxu0 %v790
      %1940 = vmatmul.mubr.bf16.gmra.mrb[0].mxu0 %v789
      %v1941 = vpop.f32.mrb[0].mxu0
      %v1942 = vadd.f32 %v1861, %v1941
      %v1943 = vpop.f32.mrb[0].mxu0
      %v1944 = vpop.f32.mrb[0].mxu0
      %v1945 = vadd.f32 %v1864, %v1944
      %v1946 = vpop.f32.mrb[0].mxu0
      %1947 = vmatprep.mubr.bf16.mxu0 %v806
      %1948 = vmatmul.mubr.bf16.gmra.mrb[0].mxu0 %v805
      %v1949 = vpop.f32.mrb[0].mxu0
      %v1950 = vadd.f32 %v1869, %v1949
      %v1951 = vpop.f32.mrb[0].mxu0
      %v1952 = vpop.f32.mrb[0].mxu0
      %v1953 = vadd.f32 %v1872, %v1952
      %v1954 = vpop.f32.mrb[0].mxu0
      %1955 = vmatprep.mubr.bf16.mxu0 %v822
      %1956 = vmatmul.mubr.bf16.gmra.mrb[0].mxu0 %v821
      %v1957 = vpop.f32.mrb[0].mxu0
      %v1958 = vadd.f32 %v1877, %v1957
      %v1959 = vpop.f32.mrb[0].mxu0
      %v1960 = vpop.f32.mrb[0].mxu0
      %v1961 = vadd.f32 %v1880, %v1960
      %v1962 = vpop.f32.mrb[0].mxu0
      %1963 = vmatprep.mubr.bf16.mxu0 %v838
      %1964 = vmatmul.mubr.bf16.gmra.mrb[0].mxu0 %v837
      %v1965 = vpop.f32.mrb[0].mxu0
      %v1966 = vadd.f32 %v1885, %v1965
      %v1967 = vpop.f32.mrb[0].mxu0
      %v1968 = vpop.f32.mrb[0].mxu0
      %v1969 = vadd.f32 %v1888, %v1968
      %v1970 = vpop.f32.mrb[0].mxu0
      %1971 = vmatprep.mubr.bf16.mxu0 %v854
      %1972 = vmatmul.mubr.bf16.gmra.mrb[0].mxu0 %v853
      %v1973 = vpop.f32.mrb[0].mxu0
      %v1974 = vadd.f32 %v1893, %v1973
      %v1975 = vpop.f32.mrb[0].mxu0
      %v1976 = vpop.f32.mrb[0].mxu0
      %v1977 = vadd.f32 %v1896, %v1976
      %v1978 = vpop.f32.mrb[0].mxu0
      %1979 = vmatprep.mubr.bf16.mxu0 %v870
      %1980 = vmatmul.mubr.bf16.gmra.mrb[0].mxu0 %v869
      %v1981 = vpop.f32.mrb[0].mxu0
      %v1982 = vadd.f32 %v1901, %v1981
      %v1983 = vpop.f32.mrb[0].mxu0
      %v1984 = vpop.f32.mrb[0].mxu0
      %v1985 = vadd.f32 %v1904, %v1984
      %v1986 = vpop.f32.mrb[0].mxu0
      %1987 = vdwg.mxu0
      %1988 = vmatprep.subr.bf16.mxu0 0
      %1989 = vmatpush1.bf16.msra.mxu0 %v1537
      %1990 = vmatprep.subr.bf16.mxu0 0
      %1991 = vmatpush1.bf16.msra.mxu0 %v1538
      %1992 = vmatprep.subr.bf16.mxu0 0
      %1993 = vmatpush1.bf16.msra.mxu0 %v1539
      %1994 = vmatprep.subr.bf16.mxu0 0
      %1995 = vmatpush1.bf16.msra.mxu0 %v1540
      %1996 = vmatprep.subr.bf16.mxu0 0
      %1997 = vmatpush1.bf16.msra.mxu0 %v1541
      %1998 = vmatprep.subr.bf16.mxu0 0
      %1999 = vmatpush1.bf16.msra.mxu0 %v1542
      %2000 = vmatprep.subr.bf16.mxu0 0
      %2001 = vmatpush1.bf16.msra.mxu0 %v1543
      %2002 = vmatprep.subr.bf16.mxu0 0
      %2003 = vmatpush1.bf16.msra.mxu0 %v1544
      %2004 = vmatprep.subr.bf16.mxu0 0
      %2005 = vmatpush1.bf16.msra.mxu0 %v1545
      %2006 = vmatprep.subr.bf16.mxu0 0
      %2007 = vmatpush1.bf16.msra.mxu0 %v1546
      %2008 = vmatprep.subr.bf16.mxu0 0
      %2009 = vmatpush1.bf16.msra.mxu0 %v1547
      %2010 = vmatprep.subr.bf16.mxu0 0
      %2011 = vmatpush1.bf16.msra.mxu0 %v1548
      %2012 = vmatprep.subr.bf16.mxu0 0
      %2013 = vmatpush1.bf16.msra.mxu0 %v1549
      %2014 = vmatprep.subr.bf16.mxu0 0
      %2015 = vmatpush1.bf16.msra.mxu0 %v1550
      %2016 = vmatprep.subr.bf16.mxu0 0
      %2017 = vmatpush1.bf16.msra.mxu0 %v1551
      %2018 = vmatprep.subr.bf16.mxu0 0
      %2019 = vmatpush1.bf16.msra.mxu0 %v1552
      %2020 = vmatprep.mubr.bf16.mxu0 %v792
      %2021 = vmatmul.mubr.bf16.gmra.mrb[0].mxu0 %v791
      %v2022 = vpop.f32.mrb[0].mxu0
      %v2023 = vadd.f32 %v1942, %v2022
      %v2024 = vpop.f32.mrb[0].mxu0
      %v2025 = vpop.f32.mrb[0].mxu0
      %v2026 = vadd.f32 %v1945, %v2025
      %v2027 = vpop.f32.mrb[0].mxu0
      %2028 = vmatprep.mubr.bf16.mxu0 %v808
      %2029 = vmatmul.mubr.bf16.gmra.mrb[0].mxu0 %v807
      %v2030 = vpop.f32.mrb[0].mxu0
      %v2031 = vadd.f32 %v1950, %v2030
      %v2032 = vpop.f32.mrb[0].mxu0
      %v2033 = vpop.f32.mrb[0].mxu0
      %v2034 = vadd.f32 %v1953, %v2033
      %v2035 = vpop.f32.mrb[0].mxu0
      %2036 = vmatprep.mubr.bf16.mxu0 %v824
      %2037 = vmatmul.mubr.bf16.gmra.mrb[0].mxu0 %v823
      %v2038 = vpop.f32.mrb[0].mxu0
      %v2039 = vadd.f32 %v1958, %v2038
      %v2040 = vpop.f32.mrb[0].mxu0
      %v2041 = vpop.f32.mrb[0].mxu0
      %v2042 = vadd.f32 %v1961, %v2041
      %v2043 = vpop.f32.mrb[0].mxu0
      %2044 = vmatprep.mubr.bf16.mxu0 %v840
      %2045 = vmatmul.mubr.bf16.gmra.mrb[0].mxu0 %v839
      %v2046 = vpop.f32.mrb[0].mxu0
      %v2047 = vadd.f32 %v1966, %v2046
      %v2048 = vpop.f32.mrb[0].mxu0
      %v2049 = vpop.f32.mrb[0].mxu0
      %v2050 = vadd.f32 %v1969, %v2049
      %v2051 = vpop.f32.mrb[0].mxu0
      %2052 = vmatprep.mubr.bf16.mxu0 %v856
      %2053 = vmatmul.mubr.bf16.gmra.mrb[0].mxu0 %v855
      %v2054 = vpop.f32.mrb[0].mxu0
      %v2055 = vadd.f32 %v1974, %v2054
      %v2056 = vpop.f32.mrb[0].mxu0
      %v2057 = vpop.f32.mrb[0].mxu0
      %v2058 = vadd.f32 %v1977, %v2057
      %v2059 = vpop.f32.mrb[0].mxu0
      %2060 = vmatprep.mubr.bf16.mxu0 %v872
      %2061 = vmatmul.mubr.bf16.gmra.mrb[0].mxu0 %v871
      %v2062 = vpop.f32.mrb[0].mxu0
      %v2063 = vadd.f32 %v1982, %v2062
      %v2064 = vpop.f32.mrb[0].mxu0
      %v2065 = vpop.f32.mrb[0].mxu0
      %v2066 = vadd.f32 %v1985, %v2065
      %v2067 = vpop.f32.mrb[0].mxu0
      %2068 = vdwg.mxu0
      %2069 = vmatprep.subr.bf16.mxu0 0
      %2070 = vmatpush1.bf16.msra.mxu0 %v1553
      %2071 = vmatprep.subr.bf16.mxu0 0
      %2072 = vmatpush1.bf16.msra.mxu0 %v1554
      %2073 = vmatprep.subr.bf16.mxu0 0
      %2074 = vmatpush1.bf16.msra.mxu0 %v1555
      %2075 = vmatprep.subr.bf16.mxu0 0
      %2076 = vmatpush1.bf16.msra.mxu0 %v1556
      %2077 = vmatprep.subr.bf16.mxu0 0
      %2078 = vmatpush1.bf16.msra.mxu0 %v1557
      %2079 = vmatprep.subr.bf16.mxu0 0
      %2080 = vmatpush1.bf16.msra.mxu0 %v1558
      %2081 = vmatprep.subr.bf16.mxu0 0
      %2082 = vmatpush1.bf16.msra.mxu0 %v1559
      %2083 = vmatprep.subr.bf16.mxu0 0
      %2084 = vmatpush1.bf16.msra.mxu0 %v1560
      %2085 = vmatprep.subr.bf16.mxu0 0
      %2086 = vmatpush1.bf16.msra.mxu0 %v1561
      %2087 = vmatprep.subr.bf16.mxu0 0
      %2088 = vmatpush1.bf16.msra.mxu0 %v1562
      %2089 = vmatprep.subr.bf16.mxu0 0
      %2090 = vmatpush1.bf16.msra.mxu0 %v1563
      %2091 = vmatprep.subr.bf16.mxu0 0
      %2092 = vmatpush1.bf16.msra.mxu0 %v1564
      %2093 = vmatprep.subr.bf16.mxu0 0
      %2094 = vmatpush1.bf16.msra.mxu0 %v1565
      %2095 = vmatprep.subr.bf16.mxu0 0
      %2096 = vmatpush1.bf16.msra.mxu0 %v1566
      %2097 = vmatprep.subr.bf16.mxu0 0
      %2098 = vmatpush1.bf16.msra.mxu0 %v1567
      %2099 = vmatprep.subr.bf16.mxu0 0
      %2100 = vmatpush1.bf16.msra.mxu0 %v1568
      %2101 = vmatprep.mubr.bf16.mxu0 %v794
      %2102 = vmatmul.mubr.bf16.gmra.mrb[0].mxu0 %v793
      %v2103 = vpop.f32.mrb[0].mxu0
      %v2104 = vadd.f32 %v2023, %v2103
      %v2105 = vpop.f32.mrb[0].mxu0
      %v2106 = vpop.f32.mrb[0].mxu0
      %v2107 = vadd.f32 %v2026, %v2106
      %v2108 = vpop.f32.mrb[0].mxu0
      %2109 = vmatprep.mubr.bf16.mxu0 %v810
      %2110 = vmatmul.mubr.bf16.gmra.mrb[0].mxu0 %v809
      %v2111 = vpop.f32.mrb[0].mxu0
      %v2112 = vadd.f32 %v2031, %v2111
      %v2113 = vpop.f32.mrb[0].mxu0
      %v2114 = vpop.f32.mrb[0].mxu0
      %v2115 = vadd.f32 %v2034, %v2114
      %v2116 = vpop.f32.mrb[0].mxu0
      %2117 = vmatprep.mubr.bf16.mxu0 %v826
      %2118 = vmatmul.mubr.bf16.gmra.mrb[0].mxu0 %v825
      %v2119 = vpop.f32.mrb[0].mxu0
      %v2120 = vadd.f32 %v2039, %v2119
      %v2121 = vpop.f32.mrb[0].mxu0
      %v2122 = vpop.f32.mrb[0].mxu0
      %v2123 = vadd.f32 %v2042, %v2122
      %v2124 = vpop.f32.mrb[0].mxu0
      %2125 = vmatprep.mubr.bf16.mxu0 %v842
      %2126 = vmatmul.mubr.bf16.gmra.mrb[0].mxu0 %v841
      %v2127 = vpop.f32.mrb[0].mxu0
      %v2128 = vadd.f32 %v2047, %v2127
      %v2129 = vpop.f32.mrb[0].mxu0
      %v2130 = vpop.f32.mrb[0].mxu0
      %v2131 = vadd.f32 %v2050, %v2130
      %v2132 = vpop.f32.mrb[0].mxu0
      %2133 = vmatprep.mubr.bf16.mxu0 %v858
      %2134 = vmatmul.mubr.bf16.gmra.mrb[0].mxu0 %v857
      %v2135 = vpop.f32.mrb[0].mxu0
      %v2136 = vadd.f32 %v2055, %v2135
      %v2137 = vpop.f32.mrb[0].mxu0
      %v2138 = vpop.f32.mrb[0].mxu0
      %v2139 = vadd.f32 %v2058, %v2138
      %v2140 = vpop.f32.mrb[0].mxu0
      %2141 = vmatprep.mubr.bf16.mxu0 %v874
      %2142 = vmatmul.mubr.bf16.gmra.mrb[0].mxu0 %v873
      %v2143 = vpop.f32.mrb[0].mxu0
      %v2144 = vadd.f32 %v2063, %v2143
      %v2145 = vpop.f32.mrb[0].mxu0
      %v2146 = vpop.f32.mrb[0].mxu0
      %v2147 = vadd.f32 %v2066, %v2146
      %v2148 = vpop.f32.mrb[0].mxu0
      %2149 = vdwg.mxu0
      %2150 = vmatprep.subr.bf16.mxu0 0
      %2151 = vmatpush1.bf16.msra.mxu0 %v1569
      %2152 = vmatprep.subr.bf16.mxu0 0
      %2153 = vmatpush1.bf16.msra.mxu0 %v1570
      %2154 = vmatprep.subr.bf16.mxu0 0
      %2155 = vmatpush1.bf16.msra.mxu0 %v1571
      %2156 = vmatprep.subr.bf16.mxu0 0
      %2157 = vmatpush1.bf16.msra.mxu0 %v1572
      %2158 = vmatprep.subr.bf16.mxu0 0
      %2159 = vmatpush1.bf16.msra.mxu0 %v1573
      %2160 = vmatprep.subr.bf16.mxu0 0
      %2161 = vmatpush1.bf16.msra.mxu0 %v1574
      %2162 = vmatprep.subr.bf16.mxu0 0
      %2163 = vmatpush1.bf16.msra.mxu0 %v1575
      %2164 = vmatprep.subr.bf16.mxu0 0
      %2165 = vmatpush1.bf16.msra.mxu0 %v1576
      %2166 = vmatprep.subr.bf16.mxu0 0
      %2167 = vmatpush1.bf16.msra.mxu0 %v1577
      %2168 = vmatprep.subr.bf16.mxu0 0
      %2169 = vmatpush1.bf16.msra.mxu0 %v1578
      %2170 = vmatprep.subr.bf16.mxu0 0
      %2171 = vmatpush1.bf16.msra.mxu0 %v1579
      %2172 = vmatprep.subr.bf16.mxu0 0
      %2173 = vmatpush1.bf16.msra.mxu0 %v1580
      %2174 = vmatprep.subr.bf16.mxu0 0
      %2175 = vmatpush1.bf16.msra.mxu0 %v1581
      %2176 = vmatprep.subr.bf16.mxu0 0
      %2177 = vmatpush1.bf16.msra.mxu0 %v1582
      %2178 = vmatprep.subr.bf16.mxu0 0
      %2179 = vmatpush1.bf16.msra.mxu0 %v1583
      %2180 = vmatprep.subr.bf16.mxu0 0
      %2181 = vmatpush1.bf16.msra.mxu0 %v1584
      %2182 = vmatprep.mubr.bf16.mxu0 %v796
      %2183 = vmatmul.mubr.bf16.gmra.mrb[0].mxu0 %v795
      %v2184 = vpop.f32.mrb[0].mxu0
      %v2185 = vadd.f32 %v2104, %v2184
      %v2186 = vpop.f32.mrb[0].mxu0
      %v2187 = vpop.f32.mrb[0].mxu0
      %v2188 = vadd.f32 %v2107, %v2187
      %v2189 = vpop.f32.mrb[0].mxu0
      %2190 = vmatprep.mubr.bf16.mxu0 %v812
      %2191 = vmatmul.mubr.bf16.gmra.mrb[0].mxu0 %v811
      %v2192 = vpop.f32.mrb[0].mxu0
      %v2193 = vadd.f32 %v2112, %v2192
      %v2194 = vpop.f32.mrb[0].mxu0
      %v2195 = vpop.f32.mrb[0].mxu0
      %v2196 = vadd.f32 %v2115, %v2195
      %v2197 = vpop.f32.mrb[0].mxu0
      %2198 = vmatprep.mubr.bf16.mxu0 %v828
      %2199 = vmatmul.mubr.bf16.gmra.mrb[0].mxu0 %v827
      %v2200 = vpop.f32.mrb[0].mxu0
      %v2201 = vadd.f32 %v2120, %v2200
      %v2202 = vpop.f32.mrb[0].mxu0
      %v2203 = vpop.f32.mrb[0].mxu0
      %v2204 = vadd.f32 %v2123, %v2203
      %v2205 = vpop.f32.mrb[0].mxu0
      %2206 = vmatprep.mubr.bf16.mxu0 %v844
      %2207 = vmatmul.mubr.bf16.gmra.mrb[0].mxu0 %v843
      %v2208 = vpop.f32.mrb[0].mxu0
      %v2209 = vadd.f32 %v2128, %v2208
      %v2210 = vpop.f32.mrb[0].mxu0
      %v2211 = vpop.f32.mrb[0].mxu0
      %v2212 = vadd.f32 %v2131, %v2211
      %v2213 = vpop.f32.mrb[0].mxu0
      %2214 = vmatprep.mubr.bf16.mxu0 %v860
      %2215 = vmatmul.mubr.bf16.gmra.mrb[0].mxu0 %v859
      %v2216 = vpop.f32.mrb[0].mxu0
      %v2217 = vadd.f32 %v2136, %v2216
      %v2218 = vpop.f32.mrb[0].mxu0
      %v2219 = vpop.f32.mrb[0].mxu0
      %v2220 = vadd.f32 %v2139, %v2219
      %v2221 = vpop.f32.mrb[0].mxu0
      %2222 = vmatprep.mubr.bf16.mxu0 %v876
      %2223 = vmatmul.mubr.bf16.gmra.mrb[0].mxu0 %v875
      %v2224 = vpop.f32.mrb[0].mxu0
      %v2225 = vadd.f32 %v2144, %v2224
      %v2226 = vpop.f32.mrb[0].mxu0
      %v2227 = vpop.f32.mrb[0].mxu0
      %v2228 = vadd.f32 %v2147, %v2227
      %v2229 = vpop.f32.mrb[0].mxu0
      %2230 = vdwg.mxu0
      %2231 = vmatprep.subr.bf16.mxu0 0
      %2232 = vmatpush1.bf16.msra.mxu0 %v1585
      %2233 = vmatprep.subr.bf16.mxu0 0
      %2234 = vmatpush1.bf16.msra.mxu0 %v1586
      %2235 = vmatprep.subr.bf16.mxu0 0
      %2236 = vmatpush1.bf16.msra.mxu0 %v1587
      %2237 = vmatprep.subr.bf16.mxu0 0
      %2238 = vmatpush1.bf16.msra.mxu0 %v1588
      %2239 = vmatprep.subr.bf16.mxu0 0
      %2240 = vmatpush1.bf16.msra.mxu0 %v1589
      %2241 = vmatprep.subr.bf16.mxu0 0
      %2242 = vmatpush1.bf16.msra.mxu0 %v1590
      %2243 = vmatprep.subr.bf16.mxu0 0
      %2244 = vmatpush1.bf16.msra.mxu0 %v1591
      %2245 = vmatprep.subr.bf16.mxu0 0
      %2246 = vmatpush1.bf16.msra.mxu0 %v1592
      %2247 = vmatprep.subr.bf16.mxu0 0
      %2248 = vmatpush1.bf16.msra.mxu0 %v1593
      %2249 = vmatprep.subr.bf16.mxu0 0
      %2250 = vmatpush1.bf16.msra.mxu0 %v1594
      %2251 = vmatprep.subr.bf16.mxu0 0
      %2252 = vmatpush1.bf16.msra.mxu0 %v1595
      %2253 = vmatprep.subr.bf16.mxu0 0
      %2254 = vmatpush1.bf16.msra.mxu0 %v1596
      %2255 = vmatprep.subr.bf16.mxu0 0
      %2256 = vmatpush1.bf16.msra.mxu0 %v1597
      %2257 = vmatprep.subr.bf16.mxu0 0
      %2258 = vmatpush1.bf16.msra.mxu0 %v1598
      %2259 = vmatprep.subr.bf16.mxu0 0
      %2260 = vmatpush1.bf16.msra.mxu0 %v1599
      %2261 = vmatprep.subr.bf16.mxu0 0
      %2262 = vmatpush1.bf16.msra.mxu0 %v1600
      %2263 = vmatprep.mubr.bf16.mxu0 %v798
      %2264 = vmatmul.mubr.bf16.gmra.mrb[0].mxu0 %v797
      %v2265 = vpop.f32.mrb[0].mxu0
      %v2266 = vadd.f32 %v2185, %v2265
      %v2267 = vpop.f32.mrb[0].mxu0
      %v2268 = vpop.f32.mrb[0].mxu0
      %v2269 = vadd.f32 %v2188, %v2268
      %v2270 = vpop.f32.mrb[0].mxu0
      %2271 = vmatprep.mubr.bf16.mxu0 %v814
      %2272 = vmatmul.mubr.bf16.gmra.mrb[0].mxu0 %v813
      %v2273 = vpop.f32.mrb[0].mxu0
      %v2274 = vadd.f32 %v2193, %v2273
      %v2275 = vpop.f32.mrb[0].mxu0
      %v2276 = vpop.f32.mrb[0].mxu0
      %v2277 = vadd.f32 %v2196, %v2276
      %v2278 = vpop.f32.mrb[0].mxu0
      %2279 = vmatprep.mubr.bf16.mxu0 %v830
      %2280 = vmatmul.mubr.bf16.gmra.mrb[0].mxu0 %v829
      %v2281 = vpop.f32.mrb[0].mxu0
      %v2282 = vadd.f32 %v2201, %v2281
      %v2283 = vpop.f32.mrb[0].mxu0
      %v2284 = vpop.f32.mrb[0].mxu0
      %v2285 = vadd.f32 %v2204, %v2284
      %v2286 = vpop.f32.mrb[0].mxu0
      %2287 = vmatprep.mubr.bf16.mxu0 %v846
      %2288 = vmatmul.mubr.bf16.gmra.mrb[0].mxu0 %v845
      %v2289 = vpop.f32.mrb[0].mxu0
      %v2290 = vadd.f32 %v2209, %v2289
      %v2291 = vpop.f32.mrb[0].mxu0
      %v2292 = vpop.f32.mrb[0].mxu0
      %v2293 = vadd.f32 %v2212, %v2292
      %v2294 = vpop.f32.mrb[0].mxu0
      %2295 = vmatprep.mubr.bf16.mxu0 %v862
      %2296 = vmatmul.mubr.bf16.gmra.mrb[0].mxu0 %v861
      %v2297 = vpop.f32.mrb[0].mxu0
      %v2298 = vadd.f32 %v2217, %v2297
      %v2299 = vpop.f32.mrb[0].mxu0
      %v2300 = vpop.f32.mrb[0].mxu0
      %v2301 = vadd.f32 %v2220, %v2300
      %v2302 = vpop.f32.mrb[0].mxu0
      %2303 = vmatprep.mubr.bf16.mxu0 %v878
      %2304 = vmatmul.mubr.bf16.gmra.mrb[0].mxu0 %v877
      %v2305 = vpop.f32.mrb[0].mxu0
      %v2306 = vadd.f32 %v2225, %v2305
      %v2307 = vpop.f32.mrb[0].mxu0
      %v2308 = vpop.f32.mrb[0].mxu0
      %v2309 = vadd.f32 %v2228, %v2308
      %v2310 = vpop.f32.mrb[0].mxu0
      %2311 = vdwg.mxu0
      %2312 = vmatprep.subr.bf16.mxu0 0
      %2313 = vmatpush1.bf16.msra.mxu0 %v1601
      %2314 = vmatprep.subr.bf16.mxu0 0
      %2315 = vmatpush1.bf16.msra.mxu0 %v1602
      %2316 = vmatprep.subr.bf16.mxu0 0
      %2317 = vmatpush1.bf16.msra.mxu0 %v1603
      %2318 = vmatprep.subr.bf16.mxu0 0
      %2319 = vmatpush1.bf16.msra.mxu0 %v1604
      %2320 = vmatprep.subr.bf16.mxu0 0
      %2321 = vmatpush1.bf16.msra.mxu0 %v1605
      %2322 = vmatprep.subr.bf16.mxu0 0
      %2323 = vmatpush1.bf16.msra.mxu0 %v1606
      %2324 = vmatprep.subr.bf16.mxu0 0
      %2325 = vmatpush1.bf16.msra.mxu0 %v1607
      %2326 = vmatprep.subr.bf16.mxu0 0
      %2327 = vmatpush1.bf16.msra.mxu0 %v1608
      %2328 = vmatprep.subr.bf16.mxu0 0
      %2329 = vmatpush1.bf16.msra.mxu0 %v1609
      %2330 = vmatprep.subr.bf16.mxu0 0
      %2331 = vmatpush1.bf16.msra.mxu0 %v1610
      %2332 = vmatprep.subr.bf16.mxu0 0
      %2333 = vmatpush1.bf16.msra.mxu0 %v1611
      %2334 = vmatprep.subr.bf16.mxu0 0
      %2335 = vmatpush1.bf16.msra.mxu0 %v1612
      %2336 = vmatprep.subr.bf16.mxu0 0
      %2337 = vmatpush1.bf16.msra.mxu0 %v1613
      %2338 = vmatprep.subr.bf16.mxu0 0
      %2339 = vmatpush1.bf16.msra.mxu0 %v1614
      %2340 = vmatprep.subr.bf16.mxu0 0
      %2341 = vmatpush1.bf16.msra.mxu0 %v1615
      %2342 = vmatprep.subr.bf16.mxu0 0
      %2343 = vmatpush1.bf16.msra.mxu0 %v1616
      %2344 = vmatprep.mubr.bf16.mxu0 %v800
      %2345 = vmatmul.mubr.bf16.gmra.mrb[0].mxu0 %v799
      %v2346 = vpop.f32.mrb[0].mxu0
      %v2347 = vadd.f32 %v2266, %v2346
      %v2348 = vpop.f32.mrb[0].mxu0
      %v2349 = vpop.f32.mrb[0].mxu0
      %v2350 = vadd.f32 %v2269, %v2349
      %v2351 = vpop.f32.mrb[0].mxu0
      %2352 = vmatprep.mubr.bf16.mxu0 %v816
      %2353 = vmatmul.mubr.bf16.gmra.mrb[0].mxu0 %v815
      %v2354 = vpop.f32.mrb[0].mxu0
      %v2355 = vadd.f32 %v2274, %v2354
      %v2356 = vpop.f32.mrb[0].mxu0
      %v2357 = vpop.f32.mrb[0].mxu0
      %v2358 = vadd.f32 %v2277, %v2357
      %v2359 = vpop.f32.mrb[0].mxu0
      %2360 = vmatprep.mubr.bf16.mxu0 %v832
      %2361 = vmatmul.mubr.bf16.gmra.mrb[0].mxu0 %v831
      %v2362 = vpop.f32.mrb[0].mxu0
      %v2363 = vadd.f32 %v2282, %v2362
      %v2364 = vpop.f32.mrb[0].mxu0
      %v2365 = vpop.f32.mrb[0].mxu0
      %v2366 = vadd.f32 %v2285, %v2365
      %v2367 = vpop.f32.mrb[0].mxu0
      %2368 = vmatprep.mubr.bf16.mxu0 %v848
      %2369 = vmatmul.mubr.bf16.gmra.mrb[0].mxu0 %v847
      %v2370 = vpop.f32.mrb[0].mxu0
      %v2371 = vadd.f32 %v2290, %v2370
      %v2372 = vpop.f32.mrb[0].mxu0
      %v2373 = vpop.f32.mrb[0].mxu0
      %v2374 = vadd.f32 %v2293, %v2373
      %v2375 = vpop.f32.mrb[0].mxu0
      %2376 = vmatprep.mubr.bf16.mxu0 %v864
      %2377 = vmatmul.mubr.bf16.gmra.mrb[0].mxu0 %v863
      %v2378 = vpop.f32.mrb[0].mxu0
      %v2379 = vadd.f32 %v2298, %v2378
      %v2380 = vpop.f32.mrb[0].mxu0
      %v2381 = vpop.f32.mrb[0].mxu0
      %v2382 = vadd.f32 %v2301, %v2381
      %v2383 = vpop.f32.mrb[0].mxu0
      %2384 = vmatprep.mubr.bf16.mxu0 %v880
      %2385 = vmatmul.mubr.bf16.gmra.mrb[0].mxu0 %v879
      %v2386 = vpop.f32.mrb[0].mxu0
      %v2387 = vadd.f32 %v2306, %v2386
      %v2388 = vpop.f32.mrb[0].mxu0
      %v2389 = vpop.f32.mrb[0].mxu0
      %v2390 = vadd.f32 %v2309, %v2389
      %v2391 = vpop.f32.mrb[0].mxu0
      %2392 = vdwg.mxu0
      %2393 = vst [vmem:[%s143] sm:$0xff] %v2347
      %2394 = vst [vmem:[%s143 + $0x8] sm:$0xff] %v2350
      %2395 = vst [vmem:[%s143 + $0x10] sm:$0xff] %v2355
      %2396 = vst [vmem:[%s143 + $0x18] sm:$0xff] %v2358
      %2397 = vst [vmem:[%s143 + $0x20] sm:$0xff] %v2363
      %2398 = vst [vmem:[%s143 + $0x28] sm:$0xff] %v2366
      %2399 = vst [vmem:[%s143 + $0x30] sm:$0xff] %v2371
      %2400 = vst [vmem:[%s143 + $0x38] sm:$0xff] %v2374
      %2401 = vst [vmem:[%s143 + $0x40] sm:$0xff] %v2379
      %2402 = vst [vmem:[%s143 + $0x48] sm:$0xff] %v2382
      %2403 = vst [vmem:[%s143 + $0x50] sm:$0xff] %v2387
      %2404 = vst [vmem:[%s143 + $0x58] sm:$0xff] %v2390
      %p2405 = scmp.lt.s32.totalorder %s13, 1
      %s2406 = scalar_select %p2405, %s13, 1
      %s2407 = smul.addr %s2406, 12
      %s2408 = smul.addr %s2407, 8
      %s2409 = scalar_lea.vmem %s2, %s2408
      // Predicated region
      $region29: #{region_semantic_header_forward.2} parent=27 // pred_check
        %p2410 = pneg %p78
      $region30: #{region_semantic_header_forward.2} parent=27 // pred_check_branch
        %2412 = sbr.rel (%p2410) target = $region32
      $region31: #{region_semantic_header_forward.2} parent=27 // pred_region
        _
      $region32: #{region_semantic_header_forward.2} parent=27 // pred_fallthru
        _
    $region28: #{region_semantic_header_forward.2} parent=5 // pred_fallthru
      _
    %p2413 = scmp.le.s32.totalorder 2, %s8
    // Predicated region
    $region33: #{region_semantic_header_forward.2} parent=5 // pred_check
      %p2414 = pneg %p2413
    $region34: #{region_semantic_header_forward.2} parent=5 // pred_check_branch
      %2416 = sbr.rel (%p2414) target = $region36
    $region35: #{region_semantic_header_forward.2} parent=5 // pred_region
      %s2417 = ssub.s32 %s8, 2
      // Predicated region
      $region37: #{region_semantic_header_forward.2} parent=35 // pred_check
        %p2418 = pneg %p84
      $region38: #{region_semantic_header_forward.2} parent=35 // pred_check_branch
        %2420 = sbr.rel (%p2418) target = $region40
      $region39: #{region_semantic_header_forward.2} parent=35 // pred_region
        %p2421 = scmp.lt.s32.totalorder %s14, 1
        %s2422 = scalar_select %p2421, %s14, 1
        %s2423 = smul.addr %s2422, 12
        %s2424 = smul.addr %s2423, 8
        %s2425 = scalar_lea.vmem %s2, %s2424
      $region40: #{region_semantic_header_forward.2} parent=35 // pred_fallthru
        _
    $region36: #{region_semantic_header_forward.2} parent=5 // pred_fallthru
      _
  $region6: #{region_semantic_header_forward.2} parent=0 // loop_footer
    %s12 = sadd.s32 1, %s8
  $region7: #{region_semantic_header_forward.2} parent=0 // loop_footer_branch
    %7 = sbr.rel target = $region3
  $region8: #{region_semantic_header_forward.2} parent=0 // loop_exit
    _

// kernel: region_semantic_header_forward.3
$region0: #{region_semantic_header_forward.3}
  #allocation0 [shape = 'u32[]', space=smem, size = 0x4, offset = 0x4, fixed_abs, tag = 'smem constant byte address 0x4 - core index']
  #allocation1 [shape = 'u32[144,128]{1,0:T(1,128)}', space=vmem, size = 0x12000, scoped, tag = 'internal scratch']
  %s0 = inlined_call_operand.vmem [shape: f32[2,36,96], index: 0, kind: input, shape index: {}]
  %s1 = inlined_call_operand.vmem [shape: f32[2,36,96], index: 1, kind: input, shape index: {}]
  %s2 = inlined_call_operand.vmem [shape: f32[2,36,96], index: 2, kind: input, shape index: {}]
  %s3 = inlined_call_operand.vmem [shape: f32[2,36,96], index: 3, kind: input, shape index: {}]
  %s4 = inlined_call_operand.vmem [shape: f32[1,96], index: 4, kind: input, shape index: {}]
  %s5 = inlined_call_operand.vmem [shape: f32[1,96], index: 5, kind: input, shape index: {}]
  %s6 = inlined_call_operand.vmem [shape: f32[1,96], index: 6, kind: input, shape index: {}]
  %s7 = inlined_call_operand.vmem [shape: f32[1,96], index: 7, kind: input, shape index: {}]
  %s8 = inlined_call_operand.vmem [shape: bf16[96,96], index: 8, kind: input, shape index: {}]
  %s9 = inlined_call_operand.vmem [shape: f32[1,96], index: 9, kind: input, shape index: {}]
  %s10 = inlined_call_operand.vmem [shape: bf16[96,96], index: 10, kind: input, shape index: {}]
  %s11 = inlined_call_operand.vmem [shape: f32[1,96], index: 11, kind: input, shape index: {}]
  %s12 = inlined_call_operand.vmem [shape: bf16[96,96], index: 12, kind: input, shape index: {}]
  %s13 = inlined_call_operand.vmem [shape: f32[1,96], index: 13, kind: input, shape index: {}]
  %s14 = inlined_call_operand.vmem [shape: bf16[96,96], index: 14, kind: input, shape index: {}]
  %s15 = inlined_call_operand.vmem [shape: f32[1,96], index: 15, kind: input, shape index: {}]
  %s16 = inlined_call_operand.vmem [shape: f32[1,96], index: 16, kind: input, shape index: {}]
  %s17 = inlined_call_operand.vmem [shape: f32[1,96], index: 17, kind: input, shape index: {}]
  %s18 = inlined_call_operand.vmem [shape: bf16[96,384], index: 18, kind: input, shape index: {}]
  %s19 = inlined_call_operand.vmem [shape: f32[1,384], index: 19, kind: input, shape index: {}]
  %s20 = inlined_call_operand.vmem [shape: bf16[384,96], index: 20, kind: input, shape index: {}]
  %s21 = inlined_call_operand.vmem [shape: f32[1,96], index: 21, kind: input, shape index: {}]
  %s22 = inlined_call_operand.vmem [shape: f32[1,96], index: 22, kind: input, shape index: {}]
  %s23 = inlined_call_operand.vmem [shape: f32[1,96], index: 23, kind: input, shape index: {}]
  %s24 = inlined_call_operand.vmem [shape: bf16[96,128], index: 24, kind: input, shape index: {}]
  %s25 = inlined_call_operand.vmem [shape: f32[1,128], index: 25, kind: input, shape index: {}]
  %s26 = inlined_call_operand.vmem [shape: f32[2,8,128], index: 26, kind: output, shape index: {}]
  %s27 = sld [smem:[#allocation0]]
  $region137: #{region_semantic_header_forward.3} parent=0
    _
  %s29 = ssub.s32 1, %s27
  %s30 = scalar_select 0, %s29, %s27
  loop: start=0, step=1, limit=4
  $region2: #{region_semantic_header_forward.3} parent=0 // loop_pre_header
    _
  $region3: #{region_semantic_header_forward.3} parent=0 // loop_header
    %s32 = sphi 0, %s36
    %p33 = scmp.ge.s32.totalorder %s32, 4
    %s42 = sphi 0, %s44
    %s45 = sphi 0, %s42
    %s46 = sphi 0, %s45
    %s62 = sphi 0, %s46
    %s68 = sphi 0, %s70
    %s71 = sphi 0, %s68
    %s72 = sphi 0, %s71
    %s88 = sphi 0, %s72
    %s94 = sphi 0, %s96
    %s97 = sphi 0, %s94
    %s98 = sphi 0, %s97
    %s114 = sphi 0, %s98
    %s120 = sphi 0, %s122
    %s123 = sphi 0, %s120
    %s124 = sphi 0, %s123
    %s140 = sphi 0, %s124
    %s144 = sphi 0, %s144
    %s146 = sphi 0, %s144
    %s147 = sphi 0, %s146
    %s161 = sphi 0, %s147
    %s165 = sphi 0, %s165
    %s167 = sphi 0, %s165
    %s168 = sphi 0, %s167
    %s182 = sphi 0, %s168
    %s186 = sphi 0, %s186
    %s188 = sphi 0, %s186
    %s189 = sphi 0, %s188
    %s203 = sphi 0, %s189
    %s207 = sphi 0, %s207
    %s209 = sphi 0, %s207
    %s210 = sphi 0, %s209
    %s224 = sphi 0, %s210
    %s228 = sphi 0, %s228
    %s230 = sphi 0, %s228
    %s231 = sphi 0, %s230
    %s245 = sphi 0, %s231
    %s249 = sphi 0, %s249
    %s251 = sphi 0, %s249
    %s252 = sphi 0, %s251
    %s266 = sphi 0, %s252
    %s270 = sphi 0, %s270
    %s272 = sphi 0, %s270
    %s273 = sphi 0, %s272
    %s287 = sphi 0, %s273
    %s291 = sphi 0, %s291
    %s293 = sphi 0, %s291
    %s294 = sphi 0, %s293
    %s308 = sphi 0, %s294
    %s312 = sphi 0, %s312
    %s314 = sphi 0, %s312
    %s315 = sphi 0, %s314
    %s329 = sphi 0, %s315
    %s333 = sphi 0, %s333
    %s335 = sphi 0, %s333
    %s336 = sphi 0, %s335
    %s350 = sphi 0, %s336
    %s354 = sphi 0, %s354
    %s356 = sphi 0, %s354
    %s357 = sphi 0, %s356
    %s371 = sphi 0, %s357
    %s375 = sphi 0, %s375
    %s377 = sphi 0, %s375
    %s378 = sphi 0, %s377
    %s392 = sphi 0, %s378
    %s396 = sphi 0, %s396
    %s398 = sphi 0, %s396
    %s399 = sphi 0, %s398
    %s413 = sphi 0, %s399
    %s417 = sphi 0, %s417
    %s419 = sphi 0, %s417
    %s420 = sphi 0, %s419
    %s434 = sphi 0, %s420
    %s438 = sphi 0, %s438
    %s440 = sphi 0, %s438
    %s441 = sphi 0, %s440
    %s455 = sphi 0, %s441
    %s459 = sphi 0, %s459
    %s461 = sphi 0, %s459
    %s462 = sphi 0, %s461
    %s476 = sphi 0, %s462
    %s480 = sphi 0, %s480
    %s482 = sphi 0, %s480
    %s483 = sphi 0, %s482
    %s497 = sphi 0, %s483
    %s501 = sphi 0, %s501
    %s503 = sphi 0, %s501
    %s504 = sphi 0, %s503
    %s518 = sphi 0, %s504
    %s522 = sphi 0, %s522
    %s524 = sphi 0, %s522
    %s525 = sphi 0, %s524
    %s539 = sphi 0, %s525
    %s543 = sphi 0, %s543
    %s545 = sphi 0, %s543
    %s546 = sphi 0, %s545
    %s560 = sphi 0, %s546
    %s564 = sphi 0, %s564
    %s566 = sphi 0, %s564
    %s567 = sphi 0, %s566
    %s581 = sphi 0, %s567
    %s585 = sphi 0, %s585
    %s587 = sphi 0, %s585
    %s588 = sphi 0, %s587
    %s602 = sphi 0, %s588
    %s608 = sphi 0, %s610
    %s611 = sphi 0, %s608
    %s612 = sphi 0, %s611
    %s628 = sphi 0, %s612
  $region4: #{region_semantic_header_forward.3} parent=0 // loop_header_branch
    %35 = sbr.rel (%p33) target = $region8
  $region5: #{region_semantic_header_forward.3} parent=0 // loop_body
    %s37 = ssub.s32 %s32, 1
    %s38 = ssub.s32 %s32, 2
    %s39 = sadd.s32 %s32, 1
    %s40 = ssub.s32 %s32, %s39
    %p41 = scmp.eq.s32.totalorder %s40, 0
    %s43 = sadd.s32 %s42, 1
    %s44 = scalar_select %p41, %s42, %s43
    %p47 = pneg %p41
    %p48 = scmp.eq.s32.totalorder %s32, 1
    %p49 = por %p47, %p48
    %p50 = scmp.ne.s32.totalorder %s42, %s45
    %p51 = scmp.eq.s32.totalorder %s32, 0
    %p52 = por %p50, %p51
    %p53 = scmp.ne.s32.totalorder %s42, %s45
    %p54 = scmp.eq.s32.totalorder %s37, 1
    %p55 = por %p53, %p54
    %p56 = scmp.ne.s32.totalorder %s45, %s46
    %p57 = scmp.eq.s32.totalorder %s37, 0
    %p58 = por %p56, %p57
    %p59 = scmp.ne.s32.totalorder %s45, %s46
    %p60 = scmp.eq.s32.totalorder %s38, 1
    %p61 = por %p59, %p60
    %p63 = scmp.ne.s32.totalorder %s46, %s62
    %p64 = scmp.eq.s32.totalorder %s38, 0
    %p65 = por %p63, %p64
    %s66 = ssub.s32 %s32, %s39
    %p67 = scmp.eq.s32.totalorder %s66, 0
    %s69 = sadd.s32 %s68, 1
    %s70 = scalar_select %p67, %s68, %s69
    %p73 = pneg %p67
    %p74 = scmp.eq.s32.totalorder %s32, 1
    %p75 = por %p73, %p74
    %p76 = scmp.ne.s32.totalorder %s68, %s71
    %p77 = scmp.eq.s32.totalorder %s32, 0
    %p78 = por %p76, %p77
    %p79 = scmp.ne.s32.totalorder %s68, %s71
    %p80 = scmp.eq.s32.totalorder %s37, 1
    %p81 = por %p79, %p80
    %p82 = scmp.ne.s32.totalorder %s71, %s72
    %p83 = scmp.eq.s32.totalorder %s37, 0
    %p84 = por %p82, %p83
    %p85 = scmp.ne.s32.totalorder %s71, %s72
    %p86 = scmp.eq.s32.totalorder %s38, 1
    %p87 = por %p85, %p86
    %p89 = scmp.ne.s32.totalorder %s72, %s88
    %p90 = scmp.eq.s32.totalorder %s38, 0
    %p91 = por %p89, %p90
    %s92 = ssub.s32 %s32, %s39
    %p93 = scmp.eq.s32.totalorder %s92, 0
    %s95 = sadd.s32 %s94, 1
    %s96 = scalar_select %p93, %s94, %s95
    %p99 = pneg %p93
    %p100 = scmp.eq.s32.totalorder %s32, 1
    %p101 = por %p99, %p100
    %p102 = scmp.ne.s32.totalorder %s94, %s97
    %p103 = scmp.eq.s32.totalorder %s32, 0
    %p104 = por %p102, %p103
    %p105 = scmp.ne.s32.totalorder %s94, %s97
    %p106 = scmp.eq.s32.totalorder %s37, 1
    %p107 = por %p105, %p106
    %p108 = scmp.ne.s32.totalorder %s97, %s98
    %p109 = scmp.eq.s32.totalorder %s37, 0
    %p110 = por %p108, %p109
    %p111 = scmp.ne.s32.totalorder %s97, %s98
    %p112 = scmp.eq.s32.totalorder %s38, 1
    %p113 = por %p111, %p112
    %p115 = scmp.ne.s32.totalorder %s98, %s114
    %p116 = scmp.eq.s32.totalorder %s38, 0
    %p117 = por %p115, %p116
    %s118 = ssub.s32 %s32, %s39
    %p119 = scmp.eq.s32.totalorder %s118, 0
    %s121 = sadd.s32 %s120, 1
    %s122 = scalar_select %p119, %s120, %s121
    %p125 = pneg %p119
    %p126 = scmp.eq.s32.totalorder %s32, 1
    %p127 = por %p125, %p126
    %p128 = scmp.ne.s32.totalorder %s120, %s123
    %p129 = scmp.eq.s32.totalorder %s32, 0
    %p130 = por %p128, %p129
    %p131 = scmp.ne.s32.totalorder %s120, %s123
    %p132 = scmp.eq.s32.totalorder %s37, 1
    %p133 = por %p131, %p132
    %p134 = scmp.ne.s32.totalorder %s123, %s124
    %p135 = scmp.eq.s32.totalorder %s37, 0
    %p136 = por %p134, %p135
    %p137 = scmp.ne.s32.totalorder %s123, %s124
    %p138 = scmp.eq.s32.totalorder %s38, 1
    %p139 = por %p137, %p138
    %p141 = scmp.ne.s32.totalorder %s124, %s140
    %p142 = scmp.eq.s32.totalorder %s38, 0
    %p143 = por %p141, %p142
    %s145 = sadd.s32 %s144, 1
    %p148 = scmp.eq.s32.totalorder %s32, 1
    %p149 = scmp.ne.s32.totalorder %s144, %s146
    %p150 = scmp.eq.s32.totalorder %s32, 0
    %p151 = por %p149, %p150
    %p152 = scmp.ne.s32.totalorder %s144, %s146
    %p153 = scmp.eq.s32.totalorder %s37, 1
    %p154 = por %p152, %p153
    %p155 = scmp.ne.s32.totalorder %s146, %s147
    %p156 = scmp.eq.s32.totalorder %s37, 0
    %p157 = por %p155, %p156
    %p158 = scmp.ne.s32.totalorder %s146, %s147
    %p159 = scmp.eq.s32.totalorder %s38, 1
    %p160 = por %p158, %p159
    %p162 = scmp.ne.s32.totalorder %s147, %s161
    %p163 = scmp.eq.s32.totalorder %s38, 0
    %p164 = por %p162, %p163
    %s166 = sadd.s32 %s165, 1
    %p169 = scmp.eq.s32.totalorder %s32, 1
    %p170 = scmp.ne.s32.totalorder %s165, %s167
    %p171 = scmp.eq.s32.totalorder %s32, 0
    %p172 = por %p170, %p171
    %p173 = scmp.ne.s32.totalorder %s165, %s167
    %p174 = scmp.eq.s32.totalorder %s37, 1
    %p175 = por %p173, %p174
    %p176 = scmp.ne.s32.totalorder %s167, %s168
    %p177 = scmp.eq.s32.totalorder %s37, 0
    %p178 = por %p176, %p177
    %p179 = scmp.ne.s32.totalorder %s167, %s168
    %p180 = scmp.eq.s32.totalorder %s38, 1
    %p181 = por %p179, %p180
    %p183 = scmp.ne.s32.totalorder %s168, %s182
    %p184 = scmp.eq.s32.totalorder %s38, 0
    %p185 = por %p183, %p184
    %s187 = sadd.s32 %s186, 1
    %p190 = scmp.eq.s32.totalorder %s32, 1
    %p191 = scmp.ne.s32.totalorder %s186, %s188
    %p192 = scmp.eq.s32.totalorder %s32, 0
    %p193 = por %p191, %p192
    %p194 = scmp.ne.s32.totalorder %s186, %s188
    %p195 = scmp.eq.s32.totalorder %s37, 1
    %p196 = por %p194, %p195
    %p197 = scmp.ne.s32.totalorder %s188, %s189
    %p198 = scmp.eq.s32.totalorder %s37, 0
    %p199 = por %p197, %p198
    %p200 = scmp.ne.s32.totalorder %s188, %s189
    %p201 = scmp.eq.s32.totalorder %s38, 1
    %p202 = por %p200, %p201
    %p204 = scmp.ne.s32.totalorder %s189, %s203
    %p205 = scmp.eq.s32.totalorder %s38, 0
    %p206 = por %p204, %p205
    %s208 = sadd.s32 %s207, 1
    %p211 = scmp.eq.s32.totalorder %s32, 1
    %p212 = scmp.ne.s32.totalorder %s207, %s209
    %p213 = scmp.eq.s32.totalorder %s32, 0
    %p214 = por %p212, %p213
    %p215 = scmp.ne.s32.totalorder %s207, %s209
    %p216 = scmp.eq.s32.totalorder %s37, 1
    %p217 = por %p215, %p216
    %p218 = scmp.ne.s32.totalorder %s209, %s210
    %p219 = scmp.eq.s32.totalorder %s37, 0
    %p220 = por %p218, %p219
    %p221 = scmp.ne.s32.totalorder %s209, %s210
    %p222 = scmp.eq.s32.totalorder %s38, 1
    %p223 = por %p221, %p222
    %p225 = scmp.ne.s32.totalorder %s210, %s224
    %p226 = scmp.eq.s32.totalorder %s38, 0
    %p227 = por %p225, %p226
    %s229 = sadd.s32 %s228, 1
    %p232 = scmp.eq.s32.totalorder %s32, 1
    %p233 = scmp.ne.s32.totalorder %s228, %s230
    %p234 = scmp.eq.s32.totalorder %s32, 0
    %p235 = por %p233, %p234
    %p236 = scmp.ne.s32.totalorder %s228, %s230
    %p237 = scmp.eq.s32.totalorder %s37, 1
    %p238 = por %p236, %p237
    %p239 = scmp.ne.s32.totalorder %s230, %s231
    %p240 = scmp.eq.s32.totalorder %s37, 0
    %p241 = por %p239, %p240
    %p242 = scmp.ne.s32.totalorder %s230, %s231
    %p243 = scmp.eq.s32.totalorder %s38, 1
    %p244 = por %p242, %p243
    %p246 = scmp.ne.s32.totalorder %s231, %s245
    %p247 = scmp.eq.s32.totalorder %s38, 0
    %p248 = por %p246, %p247
    %s250 = sadd.s32 %s249, 1
    %p253 = scmp.eq.s32.totalorder %s32, 1
    %p254 = scmp.ne.s32.totalorder %s249, %s251
    %p255 = scmp.eq.s32.totalorder %s32, 0
    %p256 = por %p254, %p255
    %p257 = scmp.ne.s32.totalorder %s249, %s251
    %p258 = scmp.eq.s32.totalorder %s37, 1
    %p259 = por %p257, %p258
    %p260 = scmp.ne.s32.totalorder %s251, %s252
    %p261 = scmp.eq.s32.totalorder %s37, 0
    %p262 = por %p260, %p261
    %p263 = scmp.ne.s32.totalorder %s251, %s252
    %p264 = scmp.eq.s32.totalorder %s38, 1
    %p265 = por %p263, %p264
    %p267 = scmp.ne.s32.totalorder %s252, %s266
    %p268 = scmp.eq.s32.totalorder %s38, 0
    %p269 = por %p267, %p268
    %s271 = sadd.s32 %s270, 1
    %p274 = scmp.eq.s32.totalorder %s32, 1
    %p275 = scmp.ne.s32.totalorder %s270, %s272
    %p276 = scmp.eq.s32.totalorder %s32, 0
    %p277 = por %p275, %p276
    %p278 = scmp.ne.s32.totalorder %s270, %s272
    %p279 = scmp.eq.s32.totalorder %s37, 1
    %p280 = por %p278, %p279
    %p281 = scmp.ne.s32.totalorder %s272, %s273
    %p282 = scmp.eq.s32.totalorder %s37, 0
    %p283 = por %p281, %p282
    %p284 = scmp.ne.s32.totalorder %s272, %s273
    %p285 = scmp.eq.s32.totalorder %s38, 1
    %p286 = por %p284, %p285
    %p288 = scmp.ne.s32.totalorder %s273, %s287
    %p289 = scmp.eq.s32.totalorder %s38, 0
    %p290 = por %p288, %p289
    %s292 = sadd.s32 %s291, 1
    %p295 = scmp.eq.s32.totalorder %s32, 1
    %p296 = scmp.ne.s32.totalorder %s291, %s293
    %p297 = scmp.eq.s32.totalorder %s32, 0
    %p298 = por %p296, %p297
    %p299 = scmp.ne.s32.totalorder %s291, %s293
    %p300 = scmp.eq.s32.totalorder %s37, 1
    %p301 = por %p299, %p300
    %p302 = scmp.ne.s32.totalorder %s293, %s294
    %p303 = scmp.eq.s32.totalorder %s37, 0
    %p304 = por %p302, %p303
    %p305 = scmp.ne.s32.totalorder %s293, %s294
    %p306 = scmp.eq.s32.totalorder %s38, 1
    %p307 = por %p305, %p306
    %p309 = scmp.ne.s32.totalorder %s294, %s308
    %p310 = scmp.eq.s32.totalorder %s38, 0
    %p311 = por %p309, %p310
    %s313 = sadd.s32 %s312, 1
    %p316 = scmp.eq.s32.totalorder %s32, 1
    %p317 = scmp.ne.s32.totalorder %s312, %s314
    %p318 = scmp.eq.s32.totalorder %s32, 0
    %p319 = por %p317, %p318
    %p320 = scmp.ne.s32.totalorder %s312, %s314
    %p321 = scmp.eq.s32.totalorder %s37, 1
    %p322 = por %p320, %p321
    %p323 = scmp.ne.s32.totalorder %s314, %s315
    %p324 = scmp.eq.s32.totalorder %s37, 0
    %p325 = por %p323, %p324
    %p326 = scmp.ne.s32.totalorder %s314, %s315
    %p327 = scmp.eq.s32.totalorder %s38, 1
    %p328 = por %p326, %p327
    %p330 = scmp.ne.s32.totalorder %s315, %s329
    %p331 = scmp.eq.s32.totalorder %s38, 0
    %p332 = por %p330, %p331
    %s334 = sadd.s32 %s333, 1
    %p337 = scmp.eq.s32.totalorder %s32, 1
    %p338 = scmp.ne.s32.totalorder %s333, %s335
    %p339 = scmp.eq.s32.totalorder %s32, 0
    %p340 = por %p338, %p339
    %p341 = scmp.ne.s32.totalorder %s333, %s335
    %p342 = scmp.eq.s32.totalorder %s37, 1
    %p343 = por %p341, %p342
    %p344 = scmp.ne.s32.totalorder %s335, %s336
    %p345 = scmp.eq.s32.totalorder %s37, 0
    %p346 = por %p344, %p345
    %p347 = scmp.ne.s32.totalorder %s335, %s336
    %p348 = scmp.eq.s32.totalorder %s38, 1
    %p349 = por %p347, %p348
    %p351 = scmp.ne.s32.totalorder %s336, %s350
    %p352 = scmp.eq.s32.totalorder %s38, 0
    %p353 = por %p351, %p352
    %s355 = sadd.s32 %s354, 1
    %p358 = scmp.eq.s32.totalorder %s32, 1
    %p359 = scmp.ne.s32.totalorder %s354, %s356
    %p360 = scmp.eq.s32.totalorder %s32, 0
    %p361 = por %p359, %p360
    %p362 = scmp.ne.s32.totalorder %s354, %s356
    %p363 = scmp.eq.s32.totalorder %s37, 1
    %p364 = por %p362, %p363
    %p365 = scmp.ne.s32.totalorder %s356, %s357
    %p366 = scmp.eq.s32.totalorder %s37, 0
    %p367 = por %p365, %p366
    %p368 = scmp.ne.s32.totalorder %s356, %s357
    %p369 = scmp.eq.s32.totalorder %s38, 1
    %p370 = por %p368, %p369
    %p372 = scmp.ne.s32.totalorder %s357, %s371
    %p373 = scmp.eq.s32.totalorder %s38, 0
    %p374 = por %p372, %p373
    %s376 = sadd.s32 %s375, 1
    %p379 = scmp.eq.s32.totalorder %s32, 1
    %p380 = scmp.ne.s32.totalorder %s375, %s377
    %p381 = scmp.eq.s32.totalorder %s32, 0
    %p382 = por %p380, %p381
    %p383 = scmp.ne.s32.totalorder %s375, %s377
    %p384 = scmp.eq.s32.totalorder %s37, 1
    %p385 = por %p383, %p384
    %p386 = scmp.ne.s32.totalorder %s377, %s378
    %p387 = scmp.eq.s32.totalorder %s37, 0
    %p388 = por %p386, %p387
    %p389 = scmp.ne.s32.totalorder %s377, %s378
    %p390 = scmp.eq.s32.totalorder %s38, 1
    %p391 = por %p389, %p390
    %p393 = scmp.ne.s32.totalorder %s378, %s392
    %p394 = scmp.eq.s32.totalorder %s38, 0
    %p395 = por %p393, %p394
    %s397 = sadd.s32 %s396, 1
    %p400 = scmp.eq.s32.totalorder %s32, 1
    %p401 = scmp.ne.s32.totalorder %s396, %s398
    %p402 = scmp.eq.s32.totalorder %s32, 0
    %p403 = por %p401, %p402
    %p404 = scmp.ne.s32.totalorder %s396, %s398
    %p405 = scmp.eq.s32.totalorder %s37, 1
    %p406 = por %p404, %p405
    %p407 = scmp.ne.s32.totalorder %s398, %s399
    %p408 = scmp.eq.s32.totalorder %s37, 0
    %p409 = por %p407, %p408
    %p410 = scmp.ne.s32.totalorder %s398, %s399
    %p411 = scmp.eq.s32.totalorder %s38, 1
    %p412 = por %p410, %p411
    %p414 = scmp.ne.s32.totalorder %s399, %s413
    %p415 = scmp.eq.s32.totalorder %s38, 0
    %p416 = por %p414, %p415
    %s418 = sadd.s32 %s417, 1
    %p421 = scmp.eq.s32.totalorder %s32, 1
    %p422 = scmp.ne.s32.totalorder %s417, %s419
    %p423 = scmp.eq.s32.totalorder %s32, 0
    %p424 = por %p422, %p423
    %p425 = scmp.ne.s32.totalorder %s417, %s419
    %p426 = scmp.eq.s32.totalorder %s37, 1
    %p427 = por %p425, %p426
    %p428 = scmp.ne.s32.totalorder %s419, %s420
    %p429 = scmp.eq.s32.totalorder %s37, 0
    %p430 = por %p428, %p429
    %p431 = scmp.ne.s32.totalorder %s419, %s420
    %p432 = scmp.eq.s32.totalorder %s38, 1
    %p433 = por %p431, %p432
    %p435 = scmp.ne.s32.totalorder %s420, %s434
    %p436 = scmp.eq.s32.totalorder %s38, 0
    %p437 = por %p435, %p436
    %s439 = sadd.s32 %s438, 1
    %p442 = scmp.eq.s32.totalorder %s32, 1
    %p443 = scmp.ne.s32.totalorder %s438, %s440
    %p444 = scmp.eq.s32.totalorder %s32, 0
    %p445 = por %p443, %p444
    %p446 = scmp.ne.s32.totalorder %s438, %s440
    %p447 = scmp.eq.s32.totalorder %s37, 1
    %p448 = por %p446, %p447
    %p449 = scmp.ne.s32.totalorder %s440, %s441
    %p450 = scmp.eq.s32.totalorder %s37, 0
    %p451 = por %p449, %p450
    %p452 = scmp.ne.s32.totalorder %s440, %s441
    %p453 = scmp.eq.s32.totalorder %s38, 1
    %p454 = por %p452, %p453
    %p456 = scmp.ne.s32.totalorder %s441, %s455
    %p457 = scmp.eq.s32.totalorder %s38, 0
    %p458 = por %p456, %p457
    %s460 = sadd.s32 %s459, 1
    %p463 = scmp.eq.s32.totalorder %s32, 1
    %p464 = scmp.ne.s32.totalorder %s459, %s461
    %p465 = scmp.eq.s32.totalorder %s32, 0
    %p466 = por %p464, %p465
    %p467 = scmp.ne.s32.totalorder %s459, %s461
    %p468 = scmp.eq.s32.totalorder %s37, 1
    %p469 = por %p467, %p468
    %p470 = scmp.ne.s32.totalorder %s461, %s462
    %p471 = scmp.eq.s32.totalorder %s37, 0
    %p472 = por %p470, %p471
    %p473 = scmp.ne.s32.totalorder %s461, %s462
    %p474 = scmp.eq.s32.totalorder %s38, 1
    %p475 = por %p473, %p474
    %p477 = scmp.ne.s32.totalorder %s462, %s476
    %p478 = scmp.eq.s32.totalorder %s38, 0
    %p479 = por %p477, %p478
    %s481 = sadd.s32 %s480, 1
    %p484 = scmp.eq.s32.totalorder %s32, 1
    %p485 = scmp.ne.s32.totalorder %s480, %s482
    %p486 = scmp.eq.s32.totalorder %s32, 0
    %p487 = por %p485, %p486
    %p488 = scmp.ne.s32.totalorder %s480, %s482
    %p489 = scmp.eq.s32.totalorder %s37, 1
    %p490 = por %p488, %p489
    %p491 = scmp.ne.s32.totalorder %s482, %s483
    %p492 = scmp.eq.s32.totalorder %s37, 0
    %p493 = por %p491, %p492
    %p494 = scmp.ne.s32.totalorder %s482, %s483
    %p495 = scmp.eq.s32.totalorder %s38, 1
    %p496 = por %p494, %p495
    %p498 = scmp.ne.s32.totalorder %s483, %s497
    %p499 = scmp.eq.s32.totalorder %s38, 0
    %p500 = por %p498, %p499
    %s502 = sadd.s32 %s501, 1
    %p505 = scmp.eq.s32.totalorder %s32, 1
    %p506 = scmp.ne.s32.totalorder %s501, %s503
    %p507 = scmp.eq.s32.totalorder %s32, 0
    %p508 = por %p506, %p507
    %p509 = scmp.ne.s32.totalorder %s501, %s503
    %p510 = scmp.eq.s32.totalorder %s37, 1
    %p511 = por %p509, %p510
    %p512 = scmp.ne.s32.totalorder %s503, %s504
    %p513 = scmp.eq.s32.totalorder %s37, 0
    %p514 = por %p512, %p513
    %p515 = scmp.ne.s32.totalorder %s503, %s504
    %p516 = scmp.eq.s32.totalorder %s38, 1
    %p517 = por %p515, %p516
    %p519 = scmp.ne.s32.totalorder %s504, %s518
    %p520 = scmp.eq.s32.totalorder %s38, 0
    %p521 = por %p519, %p520
    %s523 = sadd.s32 %s522, 1
    %p526 = scmp.eq.s32.totalorder %s32, 1
    %p527 = scmp.ne.s32.totalorder %s522, %s524
    %p528 = scmp.eq.s32.totalorder %s32, 0
    %p529 = por %p527, %p528
    %p530 = scmp.ne.s32.totalorder %s522, %s524
    %p531 = scmp.eq.s32.totalorder %s37, 1
    %p532 = por %p530, %p531
    %p533 = scmp.ne.s32.totalorder %s524, %s525
    %p534 = scmp.eq.s32.totalorder %s37, 0
    %p535 = por %p533, %p534
    %p536 = scmp.ne.s32.totalorder %s524, %s525
    %p537 = scmp.eq.s32.totalorder %s38, 1
    %p538 = por %p536, %p537
    %p540 = scmp.ne.s32.totalorder %s525, %s539
    %p541 = scmp.eq.s32.totalorder %s38, 0
    %p542 = por %p540, %p541
    %s544 = sadd.s32 %s543, 1
    %p547 = scmp.eq.s32.totalorder %s32, 1
    %p548 = scmp.ne.s32.totalorder %s543, %s545
    %p549 = scmp.eq.s32.totalorder %s32, 0
    %p550 = por %p548, %p549
    %p551 = scmp.ne.s32.totalorder %s543, %s545
    %p552 = scmp.eq.s32.totalorder %s37, 1
    %p553 = por %p551, %p552
    %p554 = scmp.ne.s32.totalorder %s545, %s546
    %p555 = scmp.eq.s32.totalorder %s37, 0
    %p556 = por %p554, %p555
    %p557 = scmp.ne.s32.totalorder %s545, %s546
    %p558 = scmp.eq.s32.totalorder %s38, 1
    %p559 = por %p557, %p558
    %p561 = scmp.ne.s32.totalorder %s546, %s560
    %p562 = scmp.eq.s32.totalorder %s38, 0
    %p563 = por %p561, %p562
    %s565 = sadd.s32 %s564, 1
    %p568 = scmp.eq.s32.totalorder %s32, 1
    %p569 = scmp.ne.s32.totalorder %s564, %s566
    %p570 = scmp.eq.s32.totalorder %s32, 0
    %p571 = por %p569, %p570
    %p572 = scmp.ne.s32.totalorder %s564, %s566
    %p573 = scmp.eq.s32.totalorder %s37, 1
    %p574 = por %p572, %p573
    %p575 = scmp.ne.s32.totalorder %s566, %s567
    %p576 = scmp.eq.s32.totalorder %s37, 0
    %p577 = por %p575, %p576
    %p578 = scmp.ne.s32.totalorder %s566, %s567
    %p579 = scmp.eq.s32.totalorder %s38, 1
    %p580 = por %p578, %p579
    %p582 = scmp.ne.s32.totalorder %s567, %s581
    %p583 = scmp.eq.s32.totalorder %s38, 0
    %p584 = por %p582, %p583
    %s586 = sadd.s32 %s585, 1
    %p589 = scmp.eq.s32.totalorder %s32, 1
    %p590 = scmp.ne.s32.totalorder %s585, %s587
    %p591 = scmp.eq.s32.totalorder %s32, 0
    %p592 = por %p590, %p591
    %p593 = scmp.ne.s32.totalorder %s585, %s587
    %p594 = scmp.eq.s32.totalorder %s37, 1
    %p595 = por %p593, %p594
    %p596 = scmp.ne.s32.totalorder %s587, %s588
    %p597 = scmp.eq.s32.totalorder %s37, 0
    %p598 = por %p596, %p597
    %p599 = scmp.ne.s32.totalorder %s587, %s588
    %p600 = scmp.eq.s32.totalorder %s38, 1
    %p601 = por %p599, %p600
    %p603 = scmp.ne.s32.totalorder %s588, %s602
    %p604 = scmp.eq.s32.totalorder %s38, 0
    %p605 = por %p603, %p604
    %s606 = ssub.s32 %s32, %s39
    %p607 = scmp.eq.s32.totalorder %s606, 0
    %s609 = sadd.s32 %s608, 1
    %s610 = scalar_select %p607, %s608, %s609
    %p613 = pneg %p607
    %p614 = scmp.eq.s32.totalorder %s32, 1
    %p615 = por %p613, %p614
    %p616 = scmp.ne.s32.totalorder %s608, %s611
    %p617 = scmp.eq.s32.totalorder %s32, 0
    %p618 = por %p616, %p617
    %p619 = scmp.ne.s32.totalorder %s608, %s611
    %p620 = scmp.eq.s32.totalorder %s37, 1
    %p621 = por %p619, %p620
    %p622 = scmp.ne.s32.totalorder %s611, %s612
    %p623 = scmp.eq.s32.totalorder %s37, 0
    %p624 = por %p622, %p623
    %p625 = scmp.ne.s32.totalorder %s611, %s612
    %p626 = scmp.eq.s32.totalorder %s38, 1
    %p627 = por %p625, %p626
    %p629 = scmp.ne.s32.totalorder %s612, %s628
    %p630 = scmp.eq.s32.totalorder %s38, 0
    %p631 = por %p629, %p630
    %p632 = scmp.le.s32.totalorder 1, %s32
    %p633 = scmp.lt.s32.totalorder %s32, 3
    %p634 = pnand %p632, %p633
    %p635 = pneg %p634
    // Predicated region
    $region9: #{region_semantic_header_forward.3} parent=5 // pred_check
      _
    $region10: #{region_semantic_header_forward.3} parent=5 // pred_check_branch
      %637 = sbr.rel (%p634) target = $region12
    $region11: #{region_semantic_header_forward.3} parent=5 // pred_region
      %s638 = ssub.s32 %s32, 1
      // Predicated region
      $region13: #{region_semantic_header_forward.3} parent=11 // pred_check
        %p639 = pneg %p157
      $region14: #{region_semantic_header_forward.3} parent=11 // pred_check_branch
        %641 = sbr.rel (%p639) target = $region16
      $region15: #{region_semantic_header_forward.3} parent=11 // pred_region
        _
      $region16: #{region_semantic_header_forward.3} parent=11 // pred_fallthru
        _
      // Predicated region
      $region17: #{region_semantic_header_forward.3} parent=11 // pred_check
        %p642 = pneg %p178
      $region18: #{region_semantic_header_forward.3} parent=11 // pred_check_branch
        %644 = sbr.rel (%p642) target = $region20
      $region19: #{region_semantic_header_forward.3} parent=11 // pred_region
        _
      $region20: #{region_semantic_header_forward.3} parent=11 // pred_fallthru
        _
      // Predicated region
      $region21: #{region_semantic_header_forward.3} parent=11 // pred_check
        %p645 = pneg %p199
      $region22: #{region_semantic_header_forward.3} parent=11 // pred_check_branch
        %647 = sbr.rel (%p645) target = $region24
      $region23: #{region_semantic_header_forward.3} parent=11 // pred_region
        _
      $region24: #{region_semantic_header_forward.3} parent=11 // pred_fallthru
        _
      // Predicated region
      $region25: #{region_semantic_header_forward.3} parent=11 // pred_check
        %p648 = pneg %p220
      $region26: #{region_semantic_header_forward.3} parent=11 // pred_check_branch
        %650 = sbr.rel (%p648) target = $region28
      $region27: #{region_semantic_header_forward.3} parent=11 // pred_region
        _
      $region28: #{region_semantic_header_forward.3} parent=11 // pred_fallthru
        _
      // Predicated region
      $region29: #{region_semantic_header_forward.3} parent=11 // pred_check
        %p651 = pneg %p241
      $region30: #{region_semantic_header_forward.3} parent=11 // pred_check_branch
        %653 = sbr.rel (%p651) target = $region32
      $region31: #{region_semantic_header_forward.3} parent=11 // pred_region
        _
      $region32: #{region_semantic_header_forward.3} parent=11 // pred_fallthru
        _
      // Predicated region
      $region33: #{region_semantic_header_forward.3} parent=11 // pred_check
        %p654 = pneg %p262
      $region34: #{region_semantic_header_forward.3} parent=11 // pred_check_branch
        %656 = sbr.rel (%p654) target = $region36
      $region35: #{region_semantic_header_forward.3} parent=11 // pred_region
        _
      $region36: #{region_semantic_header_forward.3} parent=11 // pred_fallthru
        _
      // Predicated region
      $region37: #{region_semantic_header_forward.3} parent=11 // pred_check
        %p657 = pneg %p283
      $region38: #{region_semantic_header_forward.3} parent=11 // pred_check_branch
        %659 = sbr.rel (%p657) target = $region40
      $region39: #{region_semantic_header_forward.3} parent=11 // pred_region
        _
      $region40: #{region_semantic_header_forward.3} parent=11 // pred_fallthru
        _
      // Predicated region
      $region41: #{region_semantic_header_forward.3} parent=11 // pred_check
        %p660 = pneg %p304
      $region42: #{region_semantic_header_forward.3} parent=11 // pred_check_branch
        %662 = sbr.rel (%p660) target = $region44
      $region43: #{region_semantic_header_forward.3} parent=11 // pred_region
        _
      $region44: #{region_semantic_header_forward.3} parent=11 // pred_fallthru
        _
      // Predicated region
      $region45: #{region_semantic_header_forward.3} parent=11 // pred_check
        %p663 = pneg %p325
      $region46: #{region_semantic_header_forward.3} parent=11 // pred_check_branch
        %665 = sbr.rel (%p663) target = $region48
      $region47: #{region_semantic_header_forward.3} parent=11 // pred_region
        _
      $region48: #{region_semantic_header_forward.3} parent=11 // pred_fallthru
        _
      // Predicated region
      $region49: #{region_semantic_header_forward.3} parent=11 // pred_check
        %p666 = pneg %p346
      $region50: #{region_semantic_header_forward.3} parent=11 // pred_check_branch
        %668 = sbr.rel (%p666) target = $region52
      $region51: #{region_semantic_header_forward.3} parent=11 // pred_region
        _
      $region52: #{region_semantic_header_forward.3} parent=11 // pred_fallthru
        _
      // Predicated region
      $region53: #{region_semantic_header_forward.3} parent=11 // pred_check
        %p669 = pneg %p367
      $region54: #{region_semantic_header_forward.3} parent=11 // pred_check_branch
        %671 = sbr.rel (%p669) target = $region56
      $region55: #{region_semantic_header_forward.3} parent=11 // pred_region
        _
      $region56: #{region_semantic_header_forward.3} parent=11 // pred_fallthru
        _
      // Predicated region
      $region57: #{region_semantic_header_forward.3} parent=11 // pred_check
        %p672 = pneg %p388
      $region58: #{region_semantic_header_forward.3} parent=11 // pred_check_branch
        %674 = sbr.rel (%p672) target = $region60
      $region59: #{region_semantic_header_forward.3} parent=11 // pred_region
        _
      $region60: #{region_semantic_header_forward.3} parent=11 // pred_fallthru
        _
      // Predicated region
      $region61: #{region_semantic_header_forward.3} parent=11 // pred_check
        %p675 = pneg %p409
      $region62: #{region_semantic_header_forward.3} parent=11 // pred_check_branch
        %677 = sbr.rel (%p675) target = $region64
      $region63: #{region_semantic_header_forward.3} parent=11 // pred_region
        _
      $region64: #{region_semantic_header_forward.3} parent=11 // pred_fallthru
        _
      // Predicated region
      $region65: #{region_semantic_header_forward.3} parent=11 // pred_check
        %p678 = pneg %p430
      $region66: #{region_semantic_header_forward.3} parent=11 // pred_check_branch
        %680 = sbr.rel (%p678) target = $region68
      $region67: #{region_semantic_header_forward.3} parent=11 // pred_region
        _
      $region68: #{region_semantic_header_forward.3} parent=11 // pred_fallthru
        _
      // Predicated region
      $region69: #{region_semantic_header_forward.3} parent=11 // pred_check
        %p681 = pneg %p451
      $region70: #{region_semantic_header_forward.3} parent=11 // pred_check_branch
        %683 = sbr.rel (%p681) target = $region72
      $region71: #{region_semantic_header_forward.3} parent=11 // pred_region
        _
      $region72: #{region_semantic_header_forward.3} parent=11 // pred_fallthru
        _
      // Predicated region
      $region73: #{region_semantic_header_forward.3} parent=11 // pred_check
        %p684 = pneg %p472
      $region74: #{region_semantic_header_forward.3} parent=11 // pred_check_branch
        %686 = sbr.rel (%p684) target = $region76
      $region75: #{region_semantic_header_forward.3} parent=11 // pred_region
        _
      $region76: #{region_semantic_header_forward.3} parent=11 // pred_fallthru
        _
      // Predicated region
      $region77: #{region_semantic_header_forward.3} parent=11 // pred_check
        %p687 = pneg %p493
      $region78: #{region_semantic_header_forward.3} parent=11 // pred_check_branch
        %689 = sbr.rel (%p687) target = $region80
      $region79: #{region_semantic_header_forward.3} parent=11 // pred_region
        _
      $region80: #{region_semantic_header_forward.3} parent=11 // pred_fallthru
        _
      // Predicated region
      $region81: #{region_semantic_header_forward.3} parent=11 // pred_check
        %p690 = pneg %p514
      $region82: #{region_semantic_header_forward.3} parent=11 // pred_check_branch
        %692 = sbr.rel (%p690) target = $region84
      $region83: #{region_semantic_header_forward.3} parent=11 // pred_region
        _
      $region84: #{region_semantic_header_forward.3} parent=11 // pred_fallthru
        _
      // Predicated region
      $region85: #{region_semantic_header_forward.3} parent=11 // pred_check
        %p693 = pneg %p535
      $region86: #{region_semantic_header_forward.3} parent=11 // pred_check_branch
        %695 = sbr.rel (%p693) target = $region88
      $region87: #{region_semantic_header_forward.3} parent=11 // pred_region
        _
      $region88: #{region_semantic_header_forward.3} parent=11 // pred_fallthru
        _
      // Predicated region
      $region89: #{region_semantic_header_forward.3} parent=11 // pred_check
        %p696 = pneg %p556
      $region90: #{region_semantic_header_forward.3} parent=11 // pred_check_branch
        %698 = sbr.rel (%p696) target = $region92
      $region91: #{region_semantic_header_forward.3} parent=11 // pred_region
        _
      $region92: #{region_semantic_header_forward.3} parent=11 // pred_fallthru
        _
      // Predicated region
      $region93: #{region_semantic_header_forward.3} parent=11 // pred_check
        %p699 = pneg %p577
      $region94: #{region_semantic_header_forward.3} parent=11 // pred_check_branch
        %701 = sbr.rel (%p699) target = $region96
      $region95: #{region_semantic_header_forward.3} parent=11 // pred_region
        _
      $region96: #{region_semantic_header_forward.3} parent=11 // pred_fallthru
        _
      // Predicated region
      $region97: #{region_semantic_header_forward.3} parent=11 // pred_check
        %p702 = pneg %p598
      $region98: #{region_semantic_header_forward.3} parent=11 // pred_check_branch
        %704 = sbr.rel (%p702) target = $region100
      $region99: #{region_semantic_header_forward.3} parent=11 // pred_region
        _
      $region100: #{region_semantic_header_forward.3} parent=11 // pred_fallthru
        _
    $region12: #{region_semantic_header_forward.3} parent=5 // pred_fallthru
      _
    %p705 = scmp.lt.s32.totalorder %s32, 2
    // Predicated region
    $region101: #{region_semantic_header_forward.3} parent=5 // pred_check
      %p706 = pneg %p705
    $region102: #{region_semantic_header_forward.3} parent=5 // pred_check_branch
      %708 = sbr.rel (%p706) target = $region104
    $region103: #{region_semantic_header_forward.3} parent=5 // pred_region
      // Predicated region
      $region105: #{region_semantic_header_forward.3} parent=103 // pred_check
        %p709 = pneg %p52
      $region106: #{region_semantic_header_forward.3} parent=103 // pred_check_branch
        %711 = sbr.rel (%p709) target = $region108
      $region107: #{region_semantic_header_forward.3} parent=103 // pred_region
        %p712 = scmp.lt.s32.totalorder %s32, 1
        %s713 = scalar_select %p712, %s32, 1
        %s714 = smul.addr %s713, 5
        %s715 = smul.addr %s714, 8
        %s716 = scalar_lea.vmem %s0, %s715
      $region108: #{region_semantic_header_forward.3} parent=103 // pred_fallthru
        _
      // Predicated region
      $region109: #{region_semantic_header_forward.3} parent=103 // pred_check
        %p717 = pneg %p78
      $region110: #{region_semantic_header_forward.3} parent=103 // pred_check_branch
        %719 = sbr.rel (%p717) target = $region112
      $region111: #{region_semantic_header_forward.3} parent=103 // pred_region
        %p720 = scmp.lt.s32.totalorder %s32, 1
        %s721 = scalar_select %p720, %s32, 1
        %s722 = smul.addr %s721, 5
        %s723 = smul.addr %s722, 8
        %s724 = scalar_lea.vmem %s1, %s723
      $region112: #{region_semantic_header_forward.3} parent=103 // pred_fallthru
        _
      // Predicated region
      $region113: #{region_semantic_header_forward.3} parent=103 // pred_check
        %p725 = pneg %p104
      $region114: #{region_semantic_header_forward.3} parent=103 // pred_check_branch
        %727 = sbr.rel (%p725) target = $region116
      $region115: #{region_semantic_header_forward.3} parent=103 // pred_region
        %p728 = scmp.lt.s32.totalorder %s32, 1
        %s729 = scalar_select %p728, %s32, 1
        %s730 = smul.addr %s729, 5
        %s731 = smul.addr %s730, 8
        %s732 = scalar_lea.vmem %s2, %s731
      $region116: #{region_semantic_header_forward.3} parent=103 // pred_fallthru
        _
      // Predicated region
      $region117: #{region_semantic_header_forward.3} parent=103 // pred_check
        %p733 = pneg %p130
      $region118: #{region_semantic_header_forward.3} parent=103 // pred_check_branch
        %735 = sbr.rel (%p733) target = $region120
      $region119: #{region_semantic_header_forward.3} parent=103 // pred_region
        %p736 = scmp.lt.s32.totalorder %s32, 1
        %s737 = scalar_select %p736, %s32, 1
        %s738 = smul.addr %s737, 5
        %s739 = smul.addr %s738, 8
        %s740 = scalar_lea.vmem %s3, %s739
      $region120: #{region_semantic_header_forward.3} parent=103 // pred_fallthru
        _
    $region104: #{region_semantic_header_forward.3} parent=5 // pred_fallthru
      _
    %p741 = scmp.le.s32.totalorder 1, %s32
    %p742 = scmp.lt.s32.totalorder %s32, 3
    %p743 = pnand %p741, %p742
    %p744 = pneg %p743
    // Predicated region
    $region121: #{region_semantic_header_forward.3} parent=5 // pred_check
      _
    $region122: #{region_semantic_header_forward.3} parent=5 // pred_check_branch
      %746 = sbr.rel (%p743) target = $region124
    $region123: #{region_semantic_header_forward.3} parent=5 // pred_region
      %s747 = ssub.s32 %s32, 1
      %p748 = scmp.lt.s32.totalorder %s37, 1
      %s749 = scalar_select %p748, %s37, 1
      %s750 = smul.addr %s749, 5
      %s751 = smul.addr %s750, 8
      %s752 = scalar_lea.vmem %s0, %s751
      %p753 = pneg %p58
      %p754 = pneg %p55
      %p755 = scmp.lt.s32.totalorder %s37, 1
      %s756 = scalar_select %p755, %s37, 1
      %s757 = smul.addr %s756, 5
      %s758 = smul.addr %s757, 8
      %s759 = scalar_lea.vmem %s1, %s758
      %p760 = pneg %p84
      %p761 = pneg %p81
      %p762 = scmp.lt.s32.totalorder %s37, 1
      %s763 = scalar_select %p762, %s37, 1
      %s764 = smul.addr %s763, 5
      %s765 = smul.addr %s764, 8
      %s766 = scalar_lea.vmem %s2, %s765
      %p767 = pneg %p110
      %p768 = pneg %p107
      %p769 = scmp.lt.s32.totalorder %s37, 1
      %s770 = scalar_select %p769, %s37, 1
      %s771 = smul.addr %s770, 5
      %s772 = smul.addr %s771, 8
      %s773 = scalar_lea.vmem %s3, %s772
      %p774 = pneg %p136
      %p775 = pneg %p133
      %p776 = pneg %p157
      %p777 = pneg %p154
      %p778 = pneg %p178
      %p779 = pneg %p175
      %p780 = pneg %p199
      %p781 = pneg %p196
      %p782 = pneg %p220
      %p783 = pneg %p217
      %p784 = pneg %p241
      %p785 = pneg %p238
      %p786 = pneg %p262
      %p787 = pneg %p259
      %p788 = pneg %p283
      %p789 = pneg %p280
      %p790 = pneg %p304
      %p791 = pneg %p301
      %p792 = pneg %p325
      %p793 = pneg %p322
      %p794 = pneg %p346
      %p795 = pneg %p343
      %p796 = pneg %p367
      %p797 = pneg %p364
      %p798 = pneg %p388
      %p799 = pneg %p385
      %p800 = pneg %p409
      %p801 = pneg %p406
      %p802 = pneg %p430
      %p803 = pneg %p427
      %p804 = pneg %p451
      %p805 = pneg %p448
      %p806 = pneg %p472
      %p807 = pneg %p469
      %p808 = pneg %p493
      %p809 = pneg %p490
      %p810 = pneg %p514
      %p811 = pneg %p511
      %p812 = pneg %p535
      %p813 = pneg %p532
      %p814 = pneg %p556
      %p815 = pneg %p553
      %p816 = pneg %p577
      %p817 = pneg %p574
      %p818 = pneg %p598
      %p819 = pneg %p595
      %p820 = pneg %p624
      %p821 = pneg %p621
      %p822 = scmp.lt.s32.totalorder %s37, 1
      %s823 = scalar_select %p822, %s37, 1
      %s824 = smul.addr %s823, 8
      %s825 = scalar_lea.vmem %s26, %s824
      %p826 = scmp.lt.s32.totalorder %s37, 1
      %s827 = scalar_select %p826, %s37, 1
      %s828 = smul.addr %s827, 5
      %s829 = smul.addr %s828, 8
      %s830 = scalar_lea.vmem %s0, %s829
      %p831 = scmp.lt.s32.totalorder %s37, 1
      %s832 = scalar_select %p831, %s37, 1
      %s833 = smul.addr %s832, 5
      %s834 = smul.addr %s833, 8
      %s835 = scalar_lea.vmem %s1, %s834
      %p836 = scmp.lt.s32.totalorder %s37, 1
      %s837 = scalar_select %p836, %s37, 1
      %s838 = smul.addr %s837, 5
      %s839 = smul.addr %s838, 8
      %s840 = scalar_lea.vmem %s2, %s839
      %p841 = scmp.lt.s32.totalorder %s37, 1
      %s842 = scalar_select %p841, %s37, 1
      %s843 = smul.addr %s842, 5
      %s844 = smul.addr %s843, 8
      %s845 = scalar_lea.vmem %s3, %s844
      %p846 = scmp.lt.s32.totalorder %s37, 1
      %s847 = scalar_select %p846, %s37, 1
      %s848 = smul.addr %s847, 8
      %s849 = scalar_lea.vmem %s26, %s848
      %v851 = vld [vmem:[%s830] sm:$0xff]
      %v852 = vld [vmem:[%s830 + $0x8] sm:$0xff]
      %v853 = vld [vmem:[%s830 + $0x10] sm:$0xff]
      %v854 = vld [vmem:[%s830 + $0x18] sm:$0xff]
      %v855 = vld [vmem:[%s830 + $0x20] sm:$0xf]
      %v856 = vld [vmem:[%s835] sm:$0xff]
      %v857 = vld [vmem:[%s835 + $0x8] sm:$0xff]
      %v858 = vld [vmem:[%s835 + $0x10] sm:$0xff]
      %v859 = vld [vmem:[%s835 + $0x18] sm:$0xff]
      %v860 = vld [vmem:[%s835 + $0x20] sm:$0xf]
      %v861 = vld [vmem:[%s840] sm:$0xff]
      %v862 = vld [vmem:[%s840 + $0x8] sm:$0xff]
      %v863 = vld [vmem:[%s840 + $0x10] sm:$0xff]
      %v864 = vld [vmem:[%s840 + $0x18] sm:$0xff]
      %v865 = vld [vmem:[%s840 + $0x20] sm:$0xf]
      %v866 = vld [vmem:[%s845] sm:$0xff]
      %v867 = vld [vmem:[%s845 + $0x8] sm:$0xff]
      %v868 = vld [vmem:[%s845 + $0x10] sm:$0xff]
      %v869 = vld [vmem:[%s845 + $0x18] sm:$0xff]
      %v870 = vld [vmem:[%s845 + $0x20] sm:$0xf]
      %vm871 = vcmask 785408
      %v872 = vsel %vm871, %v851, 0.0
      %873 = vadd.xlane.f32.xlu0 %v872
      %v874 = vpop.xlane.xlu0 %873
      %v875 = vsel %vm871, %v852, 0.0
      %876 = vadd.xlane.f32.xlu0 %v875
      %v877 = vpop.xlane.xlu0 %876
      %v878 = vsel %vm871, %v853, 0.0
      %879 = vadd.xlane.f32.xlu0 %v878
      %v880 = vpop.xlane.xlu0 %879
      %v881 = vsel %vm871, %v854, 0.0
      %882 = vadd.xlane.f32.xlu0 %v881
      %v883 = vpop.xlane.xlu0 %882
      %vm884 = vcmask 781312
      %v885 = vsel %vm884, %v855, 0.0
      %886 = vadd.xlane.f32.xlu0 %v885
      %v887 = vpop.xlane.xlu0 %886
      %v888 = vrcp.pop 96.0
      %v889 = vmul.f32 %v874, %v888
      %v890 = vmul.f32 %v877, %v888
      %v891 = vmul.f32 %v880, %v888
      %v892 = vmul.f32 %v883, %v888
      %v893 = vmul.f32 %v887, %v888
      %v894 = vsub.f32 %v851, %v889
      %v895 = vsub.f32 %v852, %v890
      %v896 = vsub.f32 %v853, %v891
      %v897 = vsub.f32 %v854, %v892
      %v898 = vsub.f32 %v855, %v893
      %v899 = vmul.f32 %v894, %v894
      %v900 = vmul.f32 %v895, %v895
      %v901 = vmul.f32 %v896, %v896
      %v902 = vmul.f32 %v897, %v897
      %v903 = vmul.f32 %v898, %v898
      %v904 = vsel %vm871, %v899, 0.0
      %905 = vadd.xlane.f32.xlu0 %v904
      %v906 = vpop.xlane.xlu0 %905
      %v907 = vsel %vm871, %v900, 0.0
      %908 = vadd.xlane.f32.xlu0 %v907
      %v909 = vpop.xlane.xlu0 %908
      %v910 = vsel %vm871, %v901, 0.0
      %911 = vadd.xlane.f32.xlu0 %v910
      %v912 = vpop.xlane.xlu0 %911
      %v913 = vsel %vm871, %v902, 0.0
      %914 = vadd.xlane.f32.xlu0 %v913
      %v915 = vpop.xlane.xlu0 %914
      %v916 = vsel %vm884, %v903, 0.0
      %917 = vadd.xlane.f32.xlu0 %v916
      %v918 = vpop.xlane.xlu0 %917
      %v919 = vmul.f32 %v906, %v888
      %v920 = vmul.f32 %v909, %v888
      %v921 = vmul.f32 %v912, %v888
      %v922 = vmul.f32 %v915, %v888
      %v923 = vmul.f32 %v918, %v888
      %v924 = vadd.f32 %v919, 1e-06
      %v925 = vadd.f32 %v920, 1e-06
      %v926 = vadd.f32 %v921, 1e-06
      %v927 = vadd.f32 %v922, 1e-06
      %v928 = vadd.f32 %v923, 1e-06
      %v929 = vrsqrt.pop %v924
      %v930 = vrsqrt.pop %v925
      %v931 = vrsqrt.pop %v926
      %v932 = vrsqrt.pop %v927
      %v933 = vrsqrt.pop %v928
      %v934 = vmul.f32 %v894, %v929
      %v935 = vmul.f32 %v895, %v930
      %v936 = vmul.f32 %v896, %v931
      %v937 = vmul.f32 %v897, %v932
      %v938 = vmul.f32 %v898, %v933
      %v939 = vld [vmem:[%s4] sm:$0x1]
      %v941 = vlaneseq
      %v942 = vshrl.u32 %v941, 7
      %v943 = vsub.s32 0, %v942
      %v944 = vrot.slane %v939, %v943
      %v946 = vmul.f32 %v934, %v944
      %v947 = vmul.f32 %v935, %v944
      %v948 = vmul.f32 %v936, %v944
      %v949 = vmul.f32 %v937, %v944
      %v950 = vmul.f32 %v938, %v944
      %v951 = vld [vmem:[%s5] sm:$0x1]
      %v953 = vlaneseq
      %v954 = vshrl.u32 %v953, 7
      %v955 = vsub.s32 0, %v954
      %v956 = vrot.slane %v951, %v955
      %v958 = vadd.f32 %v946, %v956
      %v959 = vadd.f32 %v947, %v956
      %v960 = vadd.f32 %v948, %v956
      %v961 = vadd.f32 %v949, %v956
      %v962 = vadd.f32 %v950, %v956
      %v963 = vsel %vm871, %v861, 0.0
      %964 = vadd.xlane.f32.xlu0 %v963
      %v965 = vpop.xlane.xlu0 %964
      %v966 = vsel %vm871, %v862, 0.0
      %967 = vadd.xlane.f32.xlu0 %v966
      %v968 = vpop.xlane.xlu0 %967
      %v969 = vsel %vm871, %v863, 0.0
      %970 = vadd.xlane.f32.xlu0 %v969
      %v971 = vpop.xlane.xlu0 %970
      %v972 = vsel %vm871, %v864, 0.0
      %973 = vadd.xlane.f32.xlu0 %v972
      %v974 = vpop.xlane.xlu0 %973
      %v975 = vsel %vm884, %v865, 0.0
      %976 = vadd.xlane.f32.xlu0 %v975
      %v977 = vpop.xlane.xlu0 %976
      %v978 = vmul.f32 %v965, %v888
      %v979 = vmul.f32 %v968, %v888
      %v980 = vmul.f32 %v971, %v888
      %v981 = vmul.f32 %v974, %v888
      %v982 = vmul.f32 %v977, %v888
      %v983 = vsub.f32 %v861, %v978
      %v984 = vsub.f32 %v862, %v979
      %v985 = vsub.f32 %v863, %v980
      %v986 = vsub.f32 %v864, %v981
      %v987 = vsub.f32 %v865, %v982
      %v988 = vmul.f32 %v983, %v983
      %v989 = vmul.f32 %v984, %v984
      %v990 = vmul.f32 %v985, %v985
      %v991 = vmul.f32 %v986, %v986
      %v992 = vmul.f32 %v987, %v987
      %v993 = vsel %vm871, %v988, 0.0
      %994 = vadd.xlane.f32.xlu0 %v993
      %v995 = vpop.xlane.xlu0 %994
      %v996 = vsel %vm871, %v989, 0.0
      %997 = vadd.xlane.f32.xlu0 %v996
      %v998 = vpop.xlane.xlu0 %997
      %v999 = vsel %vm871, %v990, 0.0
      %1000 = vadd.xlane.f32.xlu0 %v999
      %v1001 = vpop.xlane.xlu0 %1000
      %v1002 = vsel %vm871, %v991, 0.0
      %1003 = vadd.xlane.f32.xlu0 %v1002
      %v1004 = vpop.xlane.xlu0 %1003
      %v1005 = vsel %vm884, %v992, 0.0
      %1006 = vadd.xlane.f32.xlu0 %v1005
      %v1007 = vpop.xlane.xlu0 %1006
      %v1008 = vmul.f32 %v995, %v888
      %v1009 = vmul.f32 %v998, %v888
      %v1010 = vmul.f32 %v1001, %v888
      %v1011 = vmul.f32 %v1004, %v888
      %v1012 = vmul.f32 %v1007, %v888
      %v1013 = vadd.f32 %v1008, 1e-06
      %v1014 = vadd.f32 %v1009, 1e-06
      %v1015 = vadd.f32 %v1010, 1e-06
      %v1016 = vadd.f32 %v1011, 1e-06
      %v1017 = vadd.f32 %v1012, 1e-06
      %v1018 = vrsqrt.pop %v1013
      %v1019 = vrsqrt.pop %v1014
      %v1020 = vrsqrt.pop %v1015
      %v1021 = vrsqrt.pop %v1016
      %v1022 = vrsqrt.pop %v1017
      %v1023 = vmul.f32 %v983, %v1018
      %v1024 = vmul.f32 %v984, %v1019
      %v1025 = vmul.f32 %v985, %v1020
      %v1026 = vmul.f32 %v986, %v1021
      %v1027 = vmul.f32 %v987, %v1022
      %v1028 = vld [vmem:[%s6] sm:$0x1]
      %v1030 = vlaneseq
      %v1031 = vshrl.u32 %v1030, 7
      %v1032 = vsub.s32 0, %v1031
      %v1033 = vrot.slane %v1028, %v1032
      %v1035 = vmul.f32 %v1023, %v1033
      %v1036 = vmul.f32 %v1024, %v1033
      %v1037 = vmul.f32 %v1025, %v1033
      %v1038 = vmul.f32 %v1026, %v1033
      %v1039 = vmul.f32 %v1027, %v1033
      %v1040 = vld [vmem:[%s7] sm:$0x1]
      %v1042 = vlaneseq
      %v1043 = vshrl.u32 %v1042, 7
      %v1044 = vsub.s32 0, %v1043
      %v1045 = vrot.slane %v1040, %v1044
      %v1047 = vadd.f32 %v1035, %v1045
      %v1048 = vadd.f32 %v1036, %v1045
      %v1049 = vadd.f32 %v1037, %v1045
      %v1050 = vadd.f32 %v1038, %v1045
      %v1051 = vadd.f32 %v1039, %v1045
      %v1052 = vadd.f32 %v958, %v856
      %v1053 = vadd.f32 %v959, %v857
      %v1054 = vadd.f32 %v960, %v858
      %v1055 = vadd.f32 %v961, %v859
      %v1056 = vadd.f32 %v962, %v860
      %v1057 = vpack.c.bf16 %v1053, %v1052
      %v1058 = vpack.c.bf16 %v1055, %v1054
      %v1059 = vpack.c.bf16 %v1056, %v1056
      %v1060 = vld [vmem:[%s8] sm:$0xf]
      %v1061 = vld [vmem:[%s8 + $0x4] sm:$0xf]
      %v1062 = vld [vmem:[%s8 + $0x8] sm:$0xf]
      %v1063 = vld [vmem:[%s8 + $0xc] sm:$0xf]
      %v1064 = vld [vmem:[%s8 + $0x10] sm:$0xf]
      %v1065 = vld [vmem:[%s8 + $0x14] sm:$0xf]
      %v1066 = vld [vmem:[%s8 + $0x18] sm:$0xf]
      %v1067 = vld [vmem:[%s8 + $0x1c] sm:$0xf]
      %v1068 = vld [vmem:[%s8 + $0x20] sm:$0xf]
      %v1069 = vld [vmem:[%s8 + $0x24] sm:$0xf]
      %v1070 = vld [vmem:[%s8 + $0x28] sm:$0xf]
      %v1071 = vld [vmem:[%s8 + $0x2c] sm:$0xf]
      %v1072 = vld [vmem:[%s9] sm:$0x1]
      %v1074 = vlaneseq
      %v1075 = vshrl.u32 %v1074, 7
      %v1076 = vsub.s32 0, %v1075
      %v1077 = vrot.slane %v1072, %v1076
      %v1091 = vunpack.c.l.b16 %v1060
      %v1092 = vunpack.c.l.b16 %v1061
      %v1093 = vunpack.c.l.b16 %v1062
      %v1094 = vunpack.c.l.b16 %v1063
      %v1095 = vunpack.c.l.b16 %v1064
      %v1096 = vunpack.c.l.b16 %v1065
      %v1097 = vunpack.c.l.b16 %v1066
      %v1098 = vunpack.c.l.b16 %v1067
      %v1099 = vunpack.c.l.b16 %v1068
      %v1100 = vunpack.c.l.b16 %v1069
      %v1101 = vunpack.c.l.b16 %v1070
      %v1102 = vunpack.c.l.b16 %v1071
      %v1103 = vpack.c.b16 %v1092, %v1091
      %v1104 = vpack.c.b16 %v1094, %v1093
      %v1105 = vpack.c.b16 %v1096, %v1095
      %v1106 = vpack.c.b16 %v1098, %v1097
      %v1107 = vpack.c.b16 %v1100, %v1099
      %v1108 = vpack.c.b16 %v1102, %v1101
      %v1116 = vsel %vm871, %v1057, 0
      %v1119 = vsel %vm871, %v1058, 0
      %v1122 = vsel %vm871, %v1059, 0
      %1124 = vmatprep.subr.bf16.mxu0 0
      %1125 = vmatpush1.bf16.msra.mxu0 %v1103
      %1126 = vmatprep.subr.bf16.mxu0 0
      %1127 = vmatpush1.bf16.msra.mxu0 %v1104
      %1128 = vmatprep.subr.bf16.mxu0 0
      %1129 = vmatpush1.bf16.msra.mxu0 %v1105
      %1130 = vmatprep.subr.bf16.mxu0 0
      %1131 = vmatpush1.bf16.msra.mxu0 %v1106
      %1132 = vmatprep.subr.bf16.mxu0 0
      %1133 = vmatpush1.bf16.msra.mxu0 %v1107
      %1134 = vmatprep.subr.bf16.mxu0 0
      %1135 = vmatpush1.bf16.msra.mxu0 %v1108
      %1136 = vmatprep.subr.bf16.mxu0 0
      %1137 = vmatpush1.bf16.msra.mxu0 0
      %1138 = vmatprep.subr.bf16.mxu0 0
      %1139 = vmatpush1.bf16.msra.mxu0 0
      %1140 = vmatprep.subr.bf16.mxu0 0
      %1141 = vmatpush1.bf16.msra.mxu0 0
      %1142 = vmatprep.subr.bf16.mxu0 0
      %1143 = vmatpush1.bf16.msra.mxu0 0
      %1144 = vmatprep.subr.bf16.mxu0 0
      %1145 = vmatpush1.bf16.msra.mxu0 0
      %1146 = vmatprep.subr.bf16.mxu0 0
      %1147 = vmatpush1.bf16.msra.mxu0 0
      %1148 = vmatprep.subr.bf16.mxu0 0
      %1149 = vmatpush1.bf16.msra.mxu0 0
      %1150 = vmatprep.subr.bf16.mxu0 0
      %1151 = vmatpush1.bf16.msra.mxu0 0
      %1152 = vmatprep.subr.bf16.mxu0 0
      %1153 = vmatpush1.bf16.msra.mxu0 0
      %1154 = vmatprep.subr.bf16.mxu0 0
      %1155 = vmatpush1.bf16.msra.mxu0 0
      %1156 = vmatprep.mubr.bf16.mxu0 0
      %1157 = vmatmul.mubr.bf16.gmra.mrb[0].mxu0 %v1116
      %v1158 = vpop.f32.mrb[0].mxu0
      %v1159 = vadd.f32 %v1077, %v1158
      %v1160 = vpop.f32.mrb[0].mxu0
      %v1161 = vpop.f32.mrb[0].mxu0
      %v1162 = vadd.f32 %v1077, %v1161
      %v1163 = vpop.f32.mrb[0].mxu0
      %1164 = vmatprep.mubr.bf16.mxu0 0
      %1165 = vmatmul.mubr.bf16.gmra.mrb[0].mxu0 %v1119
      %v1166 = vpop.f32.mrb[0].mxu0
      %v1167 = vadd.f32 %v1077, %v1166
      %v1168 = vpop.f32.mrb[0].mxu0
      %v1169 = vpop.f32.mrb[0].mxu0
      %v1170 = vadd.f32 %v1077, %v1169
      %v1171 = vpop.f32.mrb[0].mxu0
      %1172 = vmatprep.mubr.bf16.mxu0 0
      %1173 = vmatmul.mubr.bf16.gmra.mrb[0].mxu0 %v1122
      %v1174 = vpop.f32.mrb[0].mxu0
      %v1175 = vadd.f32 %v1077, %v1174
      %v1176 = vpop.f32.mrb[0].mxu0
      %v1177 = vpop.f32.mrb[0].mxu0
      %v1178 = vpop.f32.mrb[0].mxu0
      %1179 = vdwg.mxu0
      %v1180 = vmul.f32 %v1159, 0.17677669
      %v1181 = vmul.f32 %v1162, 0.17677669
      %v1182 = vmul.f32 %v1167, 0.17677669
      %v1183 = vmul.f32 %v1170, 0.17677669
      %v1184 = vmul.f32 %v1175, 0.17677669
      %v1185 = vadd.f32 %v1047, %v866
      %v1186 = vadd.f32 %v1048, %v867
      %v1187 = vadd.f32 %v1049, %v868
      %v1188 = vadd.f32 %v1050, %v869
      %v1189 = vadd.f32 %v1051, %v870
      %v1190 = vpack.c.bf16 %v1186, %v1185
      %v1191 = vpack.c.bf16 %v1188, %v1187
      %v1192 = vpack.c.bf16 %v1189, %v1189
      %v1193 = vld [vmem:[%s10] sm:$0xf]
      %v1194 = vld [vmem:[%s10 + $0x4] sm:$0xf]
      %v1195 = vld [vmem:[%s10 + $0x8] sm:$0xf]
      %v1196 = vld [vmem:[%s10 + $0xc] sm:$0xf]
      %v1197 = vld [vmem:[%s10 + $0x10] sm:$0xf]
      %v1198 = vld [vmem:[%s10 + $0x14] sm:$0xf]
      %v1199 = vld [vmem:[%s10 + $0x18] sm:$0xf]
      %v1200 = vld [vmem:[%s10 + $0x1c] sm:$0xf]
      %v1201 = vld [vmem:[%s10 + $0x20] sm:$0xf]
      %v1202 = vld [vmem:[%s10 + $0x24] sm:$0xf]
      %v1203 = vld [vmem:[%s10 + $0x28] sm:$0xf]
      %v1204 = vld [vmem:[%s10 + $0x2c] sm:$0xf]
      %v1205 = vld [vmem:[%s11] sm:$0x1]
      %v1207 = vlaneseq
      %v1208 = vshrl.u32 %v1207, 7
      %v1209 = vsub.s32 0, %v1208
      %v1210 = vrot.slane %v1205, %v1209
      %v1224 = vunpack.c.l.b16 %v1193
      %v1225 = vunpack.c.l.b16 %v1194
      %v1226 = vunpack.c.l.b16 %v1195
      %v1227 = vunpack.c.l.b16 %v1196
      %v1228 = vunpack.c.l.b16 %v1197
      %v1229 = vunpack.c.l.b16 %v1198
      %v1230 = vunpack.c.l.b16 %v1199
      %v1231 = vunpack.c.l.b16 %v1200
      %v1232 = vunpack.c.l.b16 %v1201
      %v1233 = vunpack.c.l.b16 %v1202
      %v1234 = vunpack.c.l.b16 %v1203
      %v1235 = vunpack.c.l.b16 %v1204
      %v1236 = vpack.c.b16 %v1225, %v1224
      %v1237 = vpack.c.b16 %v1227, %v1226
      %v1238 = vpack.c.b16 %v1229, %v1228
      %v1239 = vpack.c.b16 %v1231, %v1230
      %v1240 = vpack.c.b16 %v1233, %v1232
      %v1241 = vpack.c.b16 %v1235, %v1234
      %v1249 = vsel %vm871, %v1190, 0
      %v1252 = vsel %vm871, %v1191, 0
      %v1255 = vsel %vm871, %v1192, 0
      %1257 = vmatprep.subr.bf16.mxu0 0
      %1258 = vmatpush1.bf16.msra.mxu0 %v1236
      %1259 = vmatprep.subr.bf16.mxu0 0
      %1260 = vmatpush1.bf16.msra.mxu0 %v1237
      %1261 = vmatprep.subr.bf16.mxu0 0
      %1262 = vmatpush1.bf16.msra.mxu0 %v1238
      %1263 = vmatprep.subr.bf16.mxu0 0
      %1264 = vmatpush1.bf16.msra.mxu0 %v1239
      %1265 = vmatprep.subr.bf16.mxu0 0
      %1266 = vmatpush1.bf16.msra.mxu0 %v1240
      %1267 = vmatprep.subr.bf16.mxu0 0
      %1268 = vmatpush1.bf16.msra.mxu0 %v1241
      %1269 = vmatprep.subr.bf16.mxu0 0
      %1270 = vmatpush1.bf16.msra.mxu0 0
      %1271 = vmatprep.subr.bf16.mxu0 0
      %1272 = vmatpush1.bf16.msra.mxu0 0
      %1273 = vmatprep.subr.bf16.mxu0 0
      %1274 = vmatpush1.bf16.msra.mxu0 0
      %1275 = vmatprep.subr.bf16.mxu0 0
      %1276 = vmatpush1.bf16.msra.mxu0 0
      %1277 = vmatprep.subr.bf16.mxu0 0
      %1278 = vmatpush1.bf16.msra.mxu0 0
      %1279 = vmatprep.subr.bf16.mxu0 0
      %1280 = vmatpush1.bf16.msra.mxu0 0
      %1281 = vmatprep.subr.bf16.mxu0 0
      %1282 = vmatpush1.bf16.msra.mxu0 0
      %1283 = vmatprep.subr.bf16.mxu0 0
      %1284 = vmatpush1.bf16.msra.mxu0 0
      %1285 = vmatprep.subr.bf16.mxu0 0
      %1286 = vmatpush1.bf16.msra.mxu0 0
      %1287 = vmatprep.subr.bf16.mxu0 0
      %1288 = vmatpush1.bf16.msra.mxu0 0
      %1289 = vmatprep.mubr.bf16.mxu0 0
      %1290 = vmatmul.mubr.bf16.gmra.mrb[0].mxu0 %v1249
      %v1291 = vpop.f32.mrb[0].mxu0
      %v1292 = vadd.f32 %v1210, %v1291
      %v1293 = vpop.f32.mrb[0].mxu0
      %v1294 = vpop.f32.mrb[0].mxu0
      %v1295 = vadd.f32 %v1210, %v1294
      %v1296 = vpop.f32.mrb[0].mxu0
      %1297 = vmatprep.mubr.bf16.mxu0 0
      %1298 = vmatmul.mubr.bf16.gmra.mrb[0].mxu0 %v1252
      %v1299 = vpop.f32.mrb[0].mxu0
      %v1300 = vadd.f32 %v1210, %v1299
      %v1301 = vpop.f32.mrb[0].mxu0
      %v1302 = vpop.f32.mrb[0].mxu0
      %v1303 = vadd.f32 %v1210, %v1302
      %v1304 = vpop.f32.mrb[0].mxu0
      %1305 = vmatprep.mubr.bf16.mxu0 0
      %1306 = vmatmul.mubr.bf16.gmra.mrb[0].mxu0 %v1255
      %v1307 = vpop.f32.mrb[0].mxu0
      %v1308 = vadd.f32 %v1210, %v1307
      %v1309 = vpop.f32.mrb[0].mxu0
      %v1310 = vpop.f32.mrb[0].mxu0
      %v1311 = vpop.f32.mrb[0].mxu0
      %1312 = vdwg.mxu0
      %v1313 = vpack.c.bf16 %v1048, %v1047
      %v1314 = vpack.c.bf16 %v1050, %v1049
      %v1315 = vpack.c.bf16 %v1051, %v1051
      %v1316 = vld [vmem:[%s12] sm:$0xf]
      %v1317 = vld [vmem:[%s12 + $0x4] sm:$0xf]
      %v1318 = vld [vmem:[%s12 + $0x8] sm:$0xf]
      %v1319 = vld [vmem:[%s12 + $0xc] sm:$0xf]
      %v1320 = vld [vmem:[%s12 + $0x10] sm:$0xf]
      %v1321 = vld [vmem:[%s12 + $0x14] sm:$0xf]
      %v1322 = vld [vmem:[%s12 + $0x18] sm:$0xf]
      %v1323 = vld [vmem:[%s12 + $0x1c] sm:$0xf]
      %v1324 = vld [vmem:[%s12 + $0x20] sm:$0xf]
      %v1325 = vld [vmem:[%s12 + $0x24] sm:$0xf]
      %v1326 = vld [vmem:[%s12 + $0x28] sm:$0xf]
      %v1327 = vld [vmem:[%s12 + $0x2c] sm:$0xf]
      %v1328 = vld [vmem:[%s13] sm:$0x1]
      %v1330 = vlaneseq
      %v1331 = vshrl.u32 %v1330, 7
      %v1332 = vsub.s32 0, %v1331
      %v1333 = vrot.slane %v1328, %v1332
      %v1347 = vunpack.c.l.b16 %v1316
      %v1348 = vunpack.c.l.b16 %v1317
      %v1349 = vunpack.c.l.b16 %v1318
      %v1350 = vunpack.c.l.b16 %v1319
      %v1351 = vunpack.c.l.b16 %v1320
      %v1352 = vunpack.c.l.b16 %v1321
      %v1353 = vunpack.c.l.b16 %v1322
      %v1354 = vunpack.c.l.b16 %v1323
      %v1355 = vunpack.c.l.b16 %v1324
      %v1356 = vunpack.c.l.b16 %v1325
      %v1357 = vunpack.c.l.b16 %v1326
      %v1358 = vunpack.c.l.b16 %v1327
      %v1359 = vpack.c.b16 %v1348, %v1347
      %v1360 = vpack.c.b16 %v1350, %v1349
      %v1361 = vpack.c.b16 %v1352, %v1351
      %v1362 = vpack.c.b16 %v1354, %v1353
      %v1363 = vpack.c.b16 %v1356, %v1355
      %v1364 = vpack.c.b16 %v1358, %v1357
      %v1372 = vsel %vm871, %v1313, 0
      %v1375 = vsel %vm871, %v1314, 0
      %v1378 = vsel %vm871, %v1315, 0
      %1380 = vmatprep.subr.bf16.mxu0 0
      %1381 = vmatpush1.bf16.msra.mxu0 %v1359
      %1382 = vmatprep.subr.bf16.mxu0 0
      %1383 = vmatpush1.bf16.msra.mxu0 %v1360
      %1384 = vmatprep.subr.bf16.mxu0 0
      %1385 = vmatpush1.bf16.msra.mxu0 %v1361
      %1386 = vmatprep.subr.bf16.mxu0 0
      %1387 = vmatpush1.bf16.msra.mxu0 %v1362
      %1388 = vmatprep.subr.bf16.mxu0 0
      %1389 = vmatpush1.bf16.msra.mxu0 %v1363
      %1390 = vmatprep.subr.bf16.mxu0 0
      %1391 = vmatpush1.bf16.msra.mxu0 %v1364
      %1392 = vmatprep.subr.bf16.mxu0 0
      %1393 = vmatpush1.bf16.msra.mxu0 0
      %1394 = vmatprep.subr.bf16.mxu0 0
      %1395 = vmatpush1.bf16.msra.mxu0 0
      %1396 = vmatprep.subr.bf16.mxu0 0
      %1397 = vmatpush1.bf16.msra.mxu0 0
      %1398 = vmatprep.subr.bf16.mxu0 0
      %1399 = vmatpush1.bf16.msra.mxu0 0
      %1400 = vmatprep.subr.bf16.mxu0 0
      %1401 = vmatpush1.bf16.msra.mxu0 0
      %1402 = vmatprep.subr.bf16.mxu0 0
      %1403 = vmatpush1.bf16.msra.mxu0 0
      %1404 = vmatprep.subr.bf16.mxu0 0
      %1405 = vmatpush1.bf16.msra.mxu0 0
      %1406 = vmatprep.subr.bf16.mxu0 0
      %1407 = vmatpush1.bf16.msra.mxu0 0
      %1408 = vmatprep.subr.bf16.mxu0 0
      %1409 = vmatpush1.bf16.msra.mxu0 0
      %1410 = vmatprep.subr.bf16.mxu0 0
      %1411 = vmatpush1.bf16.msra.mxu0 0
      %1412 = vmatprep.mubr.bf16.mxu0 0
      %1413 = vmatmul.mubr.bf16.gmra.mrb[0].mxu0 %v1372
      %v1414 = vpop.f32.mrb[0].mxu0
      %v1415 = vadd.f32 %v1333, %v1414
      %v1416 = vpop.f32.mrb[0].mxu0
      %v1417 = vpop.f32.mrb[0].mxu0
      %v1418 = vadd.f32 %v1333, %v1417
      %v1419 = vpop.f32.mrb[0].mxu0
      %1420 = vmatprep.mubr.bf16.mxu0 0
      %1421 = vmatmul.mubr.bf16.gmra.mrb[0].mxu0 %v1375
      %v1422 = vpop.f32.mrb[0].mxu0
      %v1423 = vadd.f32 %v1333, %v1422
      %v1424 = vpop.f32.mrb[0].mxu0
      %v1425 = vpop.f32.mrb[0].mxu0
      %v1426 = vadd.f32 %v1333, %v1425
      %v1427 = vpop.f32.mrb[0].mxu0
      %1428 = vmatprep.mubr.bf16.mxu0 0
      %1429 = vmatmul.mubr.bf16.gmra.mrb[0].mxu0 %v1378
      %v1430 = vpop.f32.mrb[0].mxu0
      %v1431 = vadd.f32 %v1333, %v1430
      %v1432 = vpop.f32.mrb[0].mxu0
      %v1433 = vpop.f32.mrb[0].mxu0
      %v1434 = vpop.f32.mrb[0].mxu0
      %1435 = vdwg.mxu0
      %v1436 = vld [vmem:[%s14] sm:$0xf]
      %v1437 = vld [vmem:[%s14 + $0x4] sm:$0xf]
      %v1438 = vld [vmem:[%s14 + $0x8] sm:$0xf]
      %v1439 = vld [vmem:[%s14 + $0xc] sm:$0xf]
      %v1440 = vld [vmem:[%s14 + $0x10] sm:$0xf]
      %v1441 = vld [vmem:[%s14 + $0x14] sm:$0xf]
      %v1442 = vld [vmem:[%s14 + $0x18] sm:$0xf]
      %v1443 = vld [vmem:[%s14 + $0x1c] sm:$0xf]
      %v1444 = vld [vmem:[%s14 + $0x20] sm:$0xf]
      %v1445 = vld [vmem:[%s14 + $0x24] sm:$0xf]
      %v1446 = vld [vmem:[%s14 + $0x28] sm:$0xf]
      %v1447 = vld [vmem:[%s14 + $0x2c] sm:$0xf]
      %v1448 = vpack.c.bf16 %v1181, %v1180
      %v1449 = vpack.c.bf16 %v1183, %v1182
      %v1450 = vpack.c.bf16 %v1184, %v1184
      %v1451 = vpack.c.bf16 %v1295, %v1292
      %v1452 = vpack.c.bf16 %v1303, %v1300
      %v1453 = vpack.c.bf16 %v1308, %v1308
      %v1454 = vpack.c.bf16 %v1418, %v1415
      %v1455 = vpack.c.bf16 %v1426, %v1423
      %v1456 = vpack.c.bf16 %v1431, %v1431
      %vm1457 = vcmask 261120
      %v1459 = vsel %vm1457, %v1448, 0
      %v1462 = vsel %vm1457, %v1449, 0
      %v1465 = vsel %vm1457, %v1450, 0
      %v1468 = vsel %vm1457, %v1451, 0
      %v1471 = vsel %vm1457, %v1452, 0
      %v1474 = vsel %vm1457, %v1453, 0
      %1476 = vmatprep.subr.bf16.mxu0 0
      %1477 = vmatpush1.bf16.xpose.msra.mxu0 %v1468
      %1478 = vmatprep.subr.bf16.mxu0 0
      %1479 = vmatpush1.bf16.xpose.msra.mxu0 %v1471
      %1480 = vmatprep.subr.bf16.mxu0 0
      %1481 = vmatpush1.bf16.xpose.msra.mxu0 %v1474
      %1482 = vmatprep.subr.bf16.mxu0 0
      %1483 = vmatpush1.bf16.xpose.msra.mxu0 0
      %1484 = vmatprep.subr.bf16.mxu0 0
      %1485 = vmatpush1.bf16.xpose.msra.mxu0 0
      %1486 = vmatprep.subr.bf16.mxu0 0
      %1487 = vmatpush1.bf16.xpose.msra.mxu0 0
      %1488 = vmatprep.subr.bf16.mxu0 0
      %1489 = vmatpush1.bf16.xpose.msra.mxu0 0
      %1490 = vmatprep.subr.bf16.mxu0 0
      %1491 = vmatpush1.bf16.xpose.msra.mxu0 0
      %1492 = vmatprep.subr.bf16.mxu0 0
      %1493 = vmatpush1.bf16.xpose.msra.mxu0 0
      %1494 = vmatprep.subr.bf16.mxu0 0
      %1495 = vmatpush1.bf16.xpose.msra.mxu0 0
      %1496 = vmatprep.subr.bf16.mxu0 0
      %1497 = vmatpush1.bf16.xpose.msra.mxu0 0
      %1498 = vmatprep.subr.bf16.mxu0 0
      %1499 = vmatpush1.bf16.xpose.msra.mxu0 0
      %1500 = vmatprep.subr.bf16.mxu0 0
      %1501 = vmatpush1.bf16.xpose.msra.mxu0 0
      %1502 = vmatprep.subr.bf16.mxu0 0
      %1503 = vmatpush1.bf16.xpose.msra.mxu0 0
      %1504 = vmatprep.subr.bf16.mxu0 0
      %1505 = vmatpush1.bf16.xpose.msra.mxu0 0
      %1506 = vmatprep.subr.bf16.mxu0 0
      %1507 = vmatpush1.bf16.xpose.msra.mxu0 0
      %1508 = vmatprep.mubr.bf16.mxu0 0
      %1509 = vmatmul.mubr.bf16.gmra.mrb[0].mxu0 %v1459
      %v1510 = vpop.f32.mrb[0].mxu0
      %v1511 = vadd.f32 0.0, %v1510
      %v1512 = vpop.f32.mrb[0].mxu0
      %v1513 = vpop.f32.mrb[0].mxu0
      %v1514 = vadd.f32 0.0, %v1513
      %v1515 = vpop.f32.mrb[0].mxu0
      %1516 = vmatprep.mubr.bf16.mxu0 0
      %1517 = vmatmul.mubr.bf16.gmra.mrb[0].mxu0 %v1462
      %v1518 = vpop.f32.mrb[0].mxu0
      %v1519 = vadd.f32 0.0, %v1518
      %v1520 = vpop.f32.mrb[0].mxu0
      %v1521 = vpop.f32.mrb[0].mxu0
      %v1522 = vadd.f32 0.0, %v1521
      %v1523 = vpop.f32.mrb[0].mxu0
      %1524 = vmatprep.mubr.bf16.mxu0 0
      %1525 = vmatmul.mubr.bf16.gmra.mrb[0].mxu0 %v1465
      %v1526 = vpop.f32.mrb[0].mxu0
      %v1527 = vadd.f32 0.0, %v1526
      %v1528 = vpop.f32.mrb[0].mxu0
      %v1529 = vpop.f32.mrb[0].mxu0
      %v1530 = vpop.f32.mrb[0].mxu0
      %1531 = vdwg.mxu0
      %vm1532 = vcmask 293888
      %v1533 = vsel %vm1532, %v1511, -inf
      %1534 = vmax.xlane.f32.xlu0 %v1533
      %v1535 = vpop.xlane.xlu0 %1534
      %v1536 = vsel %vm1532, %v1514, -inf
      %1537 = vmax.xlane.f32.xlu0 %v1536
      %v1538 = vpop.xlane.xlu0 %1537
      %v1539 = vsel %vm1532, %v1519, -inf
      %1540 = vmax.xlane.f32.xlu0 %v1539
      %v1541 = vpop.xlane.xlu0 %1540
      %v1542 = vsel %vm1532, %v1522, -inf
      %1543 = vmax.xlane.f32.xlu0 %v1542
      %v1544 = vpop.xlane.xlu0 %1543
      %vm1545 = vcmask 289792
      %v1546 = vsel %vm1545, %v1527, -inf
      %1547 = vmax.xlane.f32.xlu0 %v1546
      %v1548 = vpop.xlane.xlu0 %1547
      %v1549 = vsub.f32 %v1511, %v1535
      %v1550 = vsub.f32 %v1514, %v1538
      %v1551 = vsub.f32 %v1519, %v1541
      %v1552 = vsub.f32 %v1522, %v1544
      %v1553 = vsub.f32 %v1527, %v1548
      %v1554 = vmul.f32 %v1549, 1.442695
      %v1555 = vpow.pop %v1554
      %v1556 = vmul.f32 %v1550, 1.442695
      %v1557 = vpow.pop %v1556
      %v1558 = vmul.f32 %v1551, 1.442695
      %v1559 = vpow.pop %v1558
      %v1560 = vmul.f32 %v1552, 1.442695
      %v1561 = vpow.pop %v1560
      %v1562 = vmul.f32 %v1553, 1.442695
      %v1563 = vpow.pop %v1562
      %v1564 = vsel %vm1532, %v1555, 0.0
      %1565 = vadd.xlane.f32.xlu0 %v1564
      %v1566 = vpop.xlane.xlu0 %1565
      %v1567 = vsel %vm1532, %v1557, 0.0
      %1568 = vadd.xlane.f32.xlu0 %v1567
      %v1569 = vpop.xlane.xlu0 %1568
      %v1570 = vsel %vm1532, %v1559, 0.0
      %1571 = vadd.xlane.f32.xlu0 %v1570
      %v1572 = vpop.xlane.xlu0 %1571
      %v1573 = vsel %vm1532, %v1561, 0.0
      %1574 = vadd.xlane.f32.xlu0 %v1573
      %v1575 = vpop.xlane.xlu0 %1574
      %v1576 = vsel %vm1545, %v1563, 0.0
      %1577 = vadd.xlane.f32.xlu0 %v1576
      %v1578 = vpop.xlane.xlu0 %1577
      %v1579 = vrcp.pop %v1566
      %v1580 = vrcp.pop %v1569
      %v1581 = vrcp.pop %v1572
      %v1582 = vrcp.pop %v1575
      %v1583 = vrcp.pop %v1578
      %v1584 = vmul.f32 %v1555, %v1579
      %v1585 = vmul.f32 %v1557, %v1580
      %v1586 = vmul.f32 %v1559, %v1581
      %v1587 = vmul.f32 %v1561, %v1582
      %v1588 = vmul.f32 %v1563, %v1583
      %v1589 = vpack.c.bf16 %v1585, %v1584
      %v1590 = vpack.c.bf16 %v1587, %v1586
      %v1591 = vpack.c.bf16 %v1588, %v1588
      %v1593 = vsel %vm1532, %v1589, 0
      %v1596 = vsel %vm1532, %v1590, 0
      %v1599 = vsel %vm1532, %v1591, 0
      %vm1601 = vcmask 1041408
      %v1603 = vsel %vm1601, %v1456, 0
      %1605 = vmatprep.subr.bf16.mxu0 0
      %1606 = vmatpush1.bf16.msra.mxu0 %v1454
      %1607 = vmatprep.subr.bf16.mxu0 0
      %1608 = vmatpush1.bf16.msra.mxu0 %v1455
      %1609 = vmatprep.subr.bf16.mxu0 0
      %1610 = vmatpush1.bf16.msra.mxu0 %v1603
      %1611 = vmatprep.subr.bf16.mxu0 0
      %1612 = vmatpush1.bf16.msra.mxu0 0
      %1613 = vmatprep.subr.bf16.mxu0 0
      %1614 = vmatpush1.bf16.msra.mxu0 0
      %1615 = vmatprep.subr.bf16.mxu0 0
      %1616 = vmatpush1.bf16.msra.mxu0 0
      %1617 = vmatprep.subr.bf16.mxu0 0
      %1618 = vmatpush1.bf16.msra.mxu0 0
      %1619 = vmatprep.subr.bf16.mxu0 0
      %1620 = vmatpush1.bf16.msra.mxu0 0
      %1621 = vmatprep.subr.bf16.mxu0 0
      %1622 = vmatpush1.bf16.msra.mxu0 0
      %1623 = vmatprep.subr.bf16.mxu0 0
      %1624 = vmatpush1.bf16.msra.mxu0 0
      %1625 = vmatprep.subr.bf16.mxu0 0
      %1626 = vmatpush1.bf16.msra.mxu0 0
      %1627 = vmatprep.subr.bf16.mxu0 0
      %1628 = vmatpush1.bf16.msra.mxu0 0
      %1629 = vmatprep.subr.bf16.mxu0 0
      %1630 = vmatpush1.bf16.msra.mxu0 0
      %1631 = vmatprep.subr.bf16.mxu0 0
      %1632 = vmatpush1.bf16.msra.mxu0 0
      %1633 = vmatprep.subr.bf16.mxu0 0
      %1634 = vmatpush1.bf16.msra.mxu0 0
      %1635 = vmatprep.subr.bf16.mxu0 0
      %1636 = vmatpush1.bf16.msra.mxu0 0
      %1637 = vmatprep.mubr.bf16.mxu0 0
      %1638 = vmatmul.mubr.bf16.gmra.mrb[0].mxu0 %v1593
      %v1639 = vpop.f32.mrb[0].mxu0
      %v1640 = vadd.f32 0.0, %v1639
      %v1641 = vpop.f32.mrb[0].mxu0
      %v1642 = vpop.f32.mrb[0].mxu0
      %v1643 = vadd.f32 0.0, %v1642
      %v1644 = vpop.f32.mrb[0].mxu0
      %1645 = vmatprep.mubr.bf16.mxu0 0
      %1646 = vmatmul.mubr.bf16.gmra.mrb[0].mxu0 %v1596
      %v1647 = vpop.f32.mrb[0].mxu0
      %v1648 = vadd.f32 0.0, %v1647
      %v1649 = vpop.f32.mrb[0].mxu0
      %v1650 = vpop.f32.mrb[0].mxu0
      %v1651 = vadd.f32 0.0, %v1650
      %v1652 = vpop.f32.mrb[0].mxu0
      %1653 = vmatprep.mubr.bf16.mxu0 0
      %1654 = vmatmul.mubr.bf16.gmra.mrb[0].mxu0 %v1599
      %v1655 = vpop.f32.mrb[0].mxu0
      %v1656 = vadd.f32 0.0, %v1655
      %v1657 = vpop.f32.mrb[0].mxu0
      %v1658 = vpop.f32.mrb[0].mxu0
      %v1659 = vpop.f32.mrb[0].mxu0
      %1660 = vdwg.mxu0
      %v1661 = vpack.c.bf16 %v1643, %v1640
      %v1662 = vpack.c.bf16 %v1651, %v1648
      %v1663 = vpack.c.bf16 %v1656, %v1656
      %1667 = vrot.lane.b32.xlu0 %v1448, 96
      %v1668 = vpop.permute.xlu0 %1667
      %1669 = vrot.lane.b32.xlu0 %v1449, 96
      %v1670 = vpop.permute.xlu0 %1669
      %1671 = vrot.lane.b32.xlu0 %v1450, 96
      %v1672 = vpop.permute.xlu0 %1671
      %1676 = vrot.lane.b32.xlu0 %v1451, 96
      %v1677 = vpop.permute.xlu0 %1676
      %1678 = vrot.lane.b32.xlu0 %v1452, 96
      %v1679 = vpop.permute.xlu0 %1678
      %1680 = vrot.lane.b32.xlu0 %v1453, 96
      %v1681 = vpop.permute.xlu0 %1680
      %v1683 = vsel %vm1457, %v1668, 0
      %v1686 = vsel %vm1457, %v1670, 0
      %v1689 = vsel %vm1457, %v1672, 0
      %v1692 = vsel %vm1457, %v1677, 0
      %v1695 = vsel %vm1457, %v1679, 0
      %v1698 = vsel %vm1457, %v1681, 0
      %1700 = vmatprep.subr.bf16.mxu0 0
      %1701 = vmatpush1.bf16.xpose.msra.mxu0 %v1692
      %1702 = vmatprep.subr.bf16.mxu0 0
      %1703 = vmatpush1.bf16.xpose.msra.mxu0 %v1695
      %1704 = vmatprep.subr.bf16.mxu0 0
      %1705 = vmatpush1.bf16.xpose.msra.mxu0 %v1698
      %1706 = vmatprep.subr.bf16.mxu0 0
      %1707 = vmatpush1.bf16.xpose.msra.mxu0 0
      %1708 = vmatprep.subr.bf16.mxu0 0
      %1709 = vmatpush1.bf16.xpose.msra.mxu0 0
      %1710 = vmatprep.subr.bf16.mxu0 0
      %1711 = vmatpush1.bf16.xpose.msra.mxu0 0
      %1712 = vmatprep.subr.bf16.mxu0 0
      %1713 = vmatpush1.bf16.xpose.msra.mxu0 0
      %1714 = vmatprep.subr.bf16.mxu0 0
      %1715 = vmatpush1.bf16.xpose.msra.mxu0 0
      %1716 = vmatprep.subr.bf16.mxu0 0
      %1717 = vmatpush1.bf16.xpose.msra.mxu0 0
      %1718 = vmatprep.subr.bf16.mxu0 0
      %1719 = vmatpush1.bf16.xpose.msra.mxu0 0
      %1720 = vmatprep.subr.bf16.mxu0 0
      %1721 = vmatpush1.bf16.xpose.msra.mxu0 0
      %1722 = vmatprep.subr.bf16.mxu0 0
      %1723 = vmatpush1.bf16.xpose.msra.mxu0 0
      %1724 = vmatprep.subr.bf16.mxu0 0
      %1725 = vmatpush1.bf16.xpose.msra.mxu0 0
      %1726 = vmatprep.subr.bf16.mxu0 0
      %1727 = vmatpush1.bf16.xpose.msra.mxu0 0
      %1728 = vmatprep.subr.bf16.mxu0 0
      %1729 = vmatpush1.bf16.xpose.msra.mxu0 0
      %1730 = vmatprep.subr.bf16.mxu0 0
      %1731 = vmatpush1.bf16.xpose.msra.mxu0 0
      %1732 = vmatprep.mubr.bf16.mxu0 0
      %1733 = vmatmul.mubr.bf16.gmra.mrb[0].mxu0 %v1683
      %v1734 = vpop.f32.mrb[0].mxu0
      %v1735 = vadd.f32 0.0, %v1734
      %v1736 = vpop.f32.mrb[0].mxu0
      %v1737 = vpop.f32.mrb[0].mxu0
      %v1738 = vadd.f32 0.0, %v1737
      %v1739 = vpop.f32.mrb[0].mxu0
      %1740 = vmatprep.mubr.bf16.mxu0 0
      %1741 = vmatmul.mubr.bf16.gmra.mrb[0].mxu0 %v1686
      %v1742 = vpop.f32.mrb[0].mxu0
      %v1743 = vadd.f32 0.0, %v1742
      %v1744 = vpop.f32.mrb[0].mxu0
      %v1745 = vpop.f32.mrb[0].mxu0
      %v1746 = vadd.f32 0.0, %v1745
      %v1747 = vpop.f32.mrb[0].mxu0
      %1748 = vmatprep.mubr.bf16.mxu0 0
      %1749 = vmatmul.mubr.bf16.gmra.mrb[0].mxu0 %v1689
      %v1750 = vpop.f32.mrb[0].mxu0
      %v1751 = vadd.f32 0.0, %v1750
      %v1752 = vpop.f32.mrb[0].mxu0
      %v1753 = vpop.f32.mrb[0].mxu0
      %v1754 = vpop.f32.mrb[0].mxu0
      %1755 = vdwg.mxu0
      %v1756 = vsel %vm1532, %v1735, -inf
      %1757 = vmax.xlane.f32.xlu0 %v1756
      %v1758 = vpop.xlane.xlu0 %1757
      %v1759 = vsel %vm1532, %v1738, -inf
      %1760 = vmax.xlane.f32.xlu0 %v1759
      %v1761 = vpop.xlane.xlu0 %1760
      %v1762 = vsel %vm1532, %v1743, -inf
      %1763 = vmax.xlane.f32.xlu0 %v1762
      %v1764 = vpop.xlane.xlu0 %1763
      %v1765 = vsel %vm1532, %v1746, -inf
      %1766 = vmax.xlane.f32.xlu0 %v1765
      %v1767 = vpop.xlane.xlu0 %1766
      %v1768 = vsel %vm1545, %v1751, -inf
      %1769 = vmax.xlane.f32.xlu0 %v1768
      %v1770 = vpop.xlane.xlu0 %1769
      %v1771 = vsub.f32 %v1735, %v1758
      %v1772 = vsub.f32 %v1738, %v1761
      %v1773 = vsub.f32 %v1743, %v1764
      %v1774 = vsub.f32 %v1746, %v1767
      %v1775 = vsub.f32 %v1751, %v1770
      %v1776 = vmul.f32 %v1771, 1.442695
      %v1777 = vpow.pop %v1776
      %v1778 = vmul.f32 %v1772, 1.442695
      %v1779 = vpow.pop %v1778
      %v1780 = vmul.f32 %v1773, 1.442695
      %v1781 = vpow.pop %v1780
      %v1782 = vmul.f32 %v1774, 1.442695
      %v1783 = vpow.pop %v1782
      %v1784 = vmul.f32 %v1775, 1.442695
      %v1785 = vpow.pop %v1784
      %v1786 = vsel %vm1532, %v1777, 0.0
      %1787 = vadd.xlane.f32.xlu0 %v1786
      %v1788 = vpop.xlane.xlu0 %1787
      %v1789 = vsel %vm1532, %v1779, 0.0
      %1790 = vadd.xlane.f32.xlu0 %v1789
      %v1791 = vpop.xlane.xlu0 %1790
      %v1792 = vsel %vm1532, %v1781, 0.0
      %1793 = vadd.xlane.f32.xlu0 %v1792
      %v1794 = vpop.xlane.xlu0 %1793
      %v1795 = vsel %vm1532, %v1783, 0.0
      %1796 = vadd.xlane.f32.xlu0 %v1795
      %v1797 = vpop.xlane.xlu0 %1796
      %v1798 = vsel %vm1545, %v1785, 0.0
      %1799 = vadd.xlane.f32.xlu0 %v1798
      %v1800 = vpop.xlane.xlu0 %1799
      %v1801 = vrcp.pop %v1788
      %v1802 = vrcp.pop %v1791
      %v1803 = vrcp.pop %v1794
      %v1804 = vrcp.pop %v1797
      %v1805 = vrcp.pop %v1800
      %v1806 = vmul.f32 %v1777, %v1801
      %v1807 = vmul.f32 %v1779, %v1802
      %v1808 = vmul.f32 %v1781, %v1803
      %v1809 = vmul.f32 %v1783, %v1804
      %v1810 = vmul.f32 %v1785, %v1805
      %v1811 = vpack.c.bf16 %v1807, %v1806
      %v1812 = vpack.c.bf16 %v1809, %v1808
      %v1813 = vpack.c.bf16 %v1810, %v1810
      %1817 = vrot.lane.b32.xlu0 %v1454, 96
      %v1818 = vpop.permute.xlu0 %1817
      %1819 = vrot.lane.b32.xlu0 %v1455, 96
      %v1820 = vpop.permute.xlu0 %1819
      %1821 = vrot.lane.b32.xlu0 %v1456, 96
      %v1822 = vpop.permute.xlu0 %1821
      %v1826 = vsel %vm1532, %v1811, 0
      %v1829 = vsel %vm1532, %v1812, 0
      %v1832 = vsel %vm1532, %v1813, 0
      %v1835 = vsel %vm1601, %v1822, 0
      %1837 = vmatprep.subr.bf16.mxu0 0
      %1838 = vmatpush1.bf16.msra.mxu0 %v1818
      %1839 = vmatprep.subr.bf16.mxu0 0
      %1840 = vmatpush1.bf16.msra.mxu0 %v1820
      %1841 = vmatprep.subr.bf16.mxu0 0
      %1842 = vmatpush1.bf16.msra.mxu0 %v1835
      %1843 = vmatprep.subr.bf16.mxu0 0
      %1844 = vmatpush1.bf16.msra.mxu0 0
      %1845 = vmatprep.subr.bf16.mxu0 0
      %1846 = vmatpush1.bf16.msra.mxu0 0
      %1847 = vmatprep.subr.bf16.mxu0 0
      %1848 = vmatpush1.bf16.msra.mxu0 0
      %1849 = vmatprep.subr.bf16.mxu0 0
      %1850 = vmatpush1.bf16.msra.mxu0 0
      %1851 = vmatprep.subr.bf16.mxu0 0
      %1852 = vmatpush1.bf16.msra.mxu0 0
      %1853 = vmatprep.subr.bf16.mxu0 0
      %1854 = vmatpush1.bf16.msra.mxu0 0
      %1855 = vmatprep.subr.bf16.mxu0 0
      %1856 = vmatpush1.bf16.msra.mxu0 0
      %1857 = vmatprep.subr.bf16.mxu0 0
      %1858 = vmatpush1.bf16.msra.mxu0 0
      %1859 = vmatprep.subr.bf16.mxu0 0
      %1860 = vmatpush1.bf16.msra.mxu0 0
      %1861 = vmatprep.subr.bf16.mxu0 0
      %1862 = vmatpush1.bf16.msra.mxu0 0
      %1863 = vmatprep.subr.bf16.mxu0 0
      %1864 = vmatpush1.bf16.msra.mxu0 0
      %1865 = vmatprep.subr.bf16.mxu0 0
      %1866 = vmatpush1.bf16.msra.mxu0 0
      %1867 = vmatprep.subr.bf16.mxu0 0
      %1868 = vmatpush1.bf16.msra.mxu0 0
      %1869 = vmatprep.mubr.bf16.mxu0 0
      %1870 = vmatmul.mubr.bf16.gmra.mrb[0].mxu0 %v1826
      %v1871 = vpop.f32.mrb[0].mxu0
      %v1872 = vadd.f32 0.0, %v1871
      %v1873 = vpop.f32.mrb[0].mxu0
      %v1874 = vpop.f32.mrb[0].mxu0
      %v1875 = vadd.f32 0.0, %v1874
      %v1876 = vpop.f32.mrb[0].mxu0
      %1877 = vmatprep.mubr.bf16.mxu0 0
      %1878 = vmatmul.mubr.bf16.gmra.mrb[0].mxu0 %v1829
      %v1879 = vpop.f32.mrb[0].mxu0
      %v1880 = vadd.f32 0.0, %v1879
      %v1881 = vpop.f32.mrb[0].mxu0
      %v1882 = vpop.f32.mrb[0].mxu0
      %v1883 = vadd.f32 0.0, %v1882
      %v1884 = vpop.f32.mrb[0].mxu0
      %1885 = vmatprep.mubr.bf16.mxu0 0
      %1886 = vmatmul.mubr.bf16.gmra.mrb[0].mxu0 %v1832
      %v1887 = vpop.f32.mrb[0].mxu0
      %v1888 = vadd.f32 0.0, %v1887
      %v1889 = vpop.f32.mrb[0].mxu0
      %v1890 = vpop.f32.mrb[0].mxu0
      %v1891 = vpop.f32.mrb[0].mxu0
      %1892 = vdwg.mxu0
      %v1893 = vpack.c.bf16 %v1875, %v1872
      %v1894 = vpack.c.bf16 %v1883, %v1880
      %v1895 = vpack.c.bf16 %v1888, %v1888
      %v1900 = vunpack.c.l.b16 %v1440
      %v1901 = vunpack.c.l.b16 %v1441
      %v1902 = vunpack.c.l.b16 %v1442
      %v1903 = vunpack.c.l.b16 %v1443
      %v1904 = vpack.c.b16 %v1901, %v1900
      %v1905 = vpack.c.b16 %v1903, %v1902
      %v1909 = vsel %vm1457, %v1893, 0
      %v1912 = vsel %vm1457, %v1894, 0
      %v1915 = vsel %vm1457, %v1895, 0
      %1917 = vmatprep.subr.bf16.mxu0 0
      %1918 = vmatpush1.bf16.msra.mxu0 %v1904
      %1919 = vmatprep.subr.bf16.mxu0 0
      %1920 = vmatpush1.bf16.msra.mxu0 %v1905
      %1921 = vmatprep.subr.bf16.mxu0 0
      %1922 = vmatpush1.bf16.msra.mxu0 0
      %1923 = vmatprep.subr.bf16.mxu0 0
      %1924 = vmatpush1.bf16.msra.mxu0 0
      %1925 = vmatprep.subr.bf16.mxu0 0
      %1926 = vmatpush1.bf16.msra.mxu0 0
      %1927 = vmatprep.subr.bf16.mxu0 0
      %1928 = vmatpush1.bf16.msra.mxu0 0
      %1929 = vmatprep.subr.bf16.mxu0 0
      %1930 = vmatpush1.bf16.msra.mxu0 0
      %1931 = vmatprep.subr.bf16.mxu0 0
      %1932 = vmatpush1.bf16.msra.mxu0 0
      %1933 = vmatprep.subr.bf16.mxu0 0
      %1934 = vmatpush1.bf16.msra.mxu0 0
      %1935 = vmatprep.subr.bf16.mxu0 0
      %1936 = vmatpush1.bf16.msra.mxu0 0
      %1937 = vmatprep.subr.bf16.mxu0 0
      %1938 = vmatpush1.bf16.msra.mxu0 0
      %1939 = vmatprep.subr.bf16.mxu0 0
      %1940 = vmatpush1.bf16.msra.mxu0 0
      %1941 = vmatprep.subr.bf16.mxu0 0
      %1942 = vmatpush1.bf16.msra.mxu0 0
      %1943 = vmatprep.subr.bf16.mxu0 0
      %1944 = vmatpush1.bf16.msra.mxu0 0
      %1945 = vmatprep.subr.bf16.mxu0 0
      %1946 = vmatpush1.bf16.msra.mxu0 0
      %1947 = vmatprep.subr.bf16.mxu0 0
      %1948 = vmatpush1.bf16.msra.mxu0 0
      %1949 = vmatprep.mubr.bf16.mxu0 0
      %1950 = vmatmul.mubr.bf16.gmra.mrb[0].mxu0 %v1909
      %v1951 = vpop.f32.mrb[0].mxu0
      %v1952 = vadd.f32 0.0, %v1951
      %v1953 = vpop.f32.mrb[0].mxu0
      %v1954 = vpop.f32.mrb[0].mxu0
      %v1955 = vadd.f32 0.0, %v1954
      %v1956 = vpop.f32.mrb[0].mxu0
      %1957 = vmatprep.mubr.bf16.mxu0 0
      %1958 = vmatmul.mubr.bf16.gmra.mrb[0].mxu0 %v1912
      %v1959 = vpop.f32.mrb[0].mxu0
      %v1960 = vadd.f32 0.0, %v1959
      %v1961 = vpop.f32.mrb[0].mxu0
      %v1962 = vpop.f32.mrb[0].mxu0
      %v1963 = vadd.f32 0.0, %v1962
      %v1964 = vpop.f32.mrb[0].mxu0
      %1965 = vmatprep.mubr.bf16.mxu0 0
      %1966 = vmatmul.mubr.bf16.gmra.mrb[0].mxu0 %v1915
      %v1967 = vpop.f32.mrb[0].mxu0
      %v1968 = vadd.f32 0.0, %v1967
      %v1969 = vpop.f32.mrb[0].mxu0
      %v1970 = vpop.f32.mrb[0].mxu0
      %v1971 = vpop.f32.mrb[0].mxu0
      %1972 = vdwg.mxu0
      %v1977 = vunpack.c.l.b16 %v1436
      %v1978 = vunpack.c.l.b16 %v1437
      %v1979 = vunpack.c.l.b16 %v1438
      %v1980 = vunpack.c.l.b16 %v1439
      %v1981 = vpack.c.b16 %v1978, %v1977
      %v1982 = vpack.c.b16 %v1980, %v1979
      %v1986 = vsel %vm1457, %v1661, 0
      %v1989 = vsel %vm1457, %v1662, 0
      %v1992 = vsel %vm1457, %v1663, 0
      %1994 = vmatprep.subr.bf16.mxu0 0
      %1995 = vmatpush1.bf16.msra.mxu0 %v1981
      %1996 = vmatprep.subr.bf16.mxu0 0
      %1997 = vmatpush1.bf16.msra.mxu0 %v1982
      %1998 = vmatprep.subr.bf16.mxu0 0
      %1999 = vmatpush1.bf16.msra.mxu0 0
      %2000 = vmatprep.subr.bf16.mxu0 0
      %2001 = vmatpush1.bf16.msra.mxu0 0
      %2002 = vmatprep.subr.bf16.mxu0 0
      %2003 = vmatpush1.bf16.msra.mxu0 0
      %2004 = vmatprep.subr.bf16.mxu0 0
      %2005 = vmatpush1.bf16.msra.mxu0 0
      %2006 = vmatprep.subr.bf16.mxu0 0
      %2007 = vmatpush1.bf16.msra.mxu0 0
      %2008 = vmatprep.subr.bf16.mxu0 0
      %2009 = vmatpush1.bf16.msra.mxu0 0
      %2010 = vmatprep.subr.bf16.mxu0 0
      %2011 = vmatpush1.bf16.msra.mxu0 0
      %2012 = vmatprep.subr.bf16.mxu0 0
      %2013 = vmatpush1.bf16.msra.mxu0 0
      %2014 = vmatprep.subr.bf16.mxu0 0
      %2015 = vmatpush1.bf16.msra.mxu0 0
      %2016 = vmatprep.subr.bf16.mxu0 0
      %2017 = vmatpush1.bf16.msra.mxu0 0
      %2018 = vmatprep.subr.bf16.mxu0 0
      %2019 = vmatpush1.bf16.msra.mxu0 0
      %2020 = vmatprep.subr.bf16.mxu0 0
      %2021 = vmatpush1.bf16.msra.mxu0 0
      %2022 = vmatprep.subr.bf16.mxu0 0
      %2023 = vmatpush1.bf16.msra.mxu0 0
      %2024 = vmatprep.subr.bf16.mxu0 0
      %2025 = vmatpush1.bf16.msra.mxu0 0
      %2026 = vmatprep.mubr.bf16.mxu0 0
      %2027 = vmatmul.mubr.bf16.gmra.mrb[0].mxu0 %v1986
      %v2028 = vpop.f32.mrb[0].mxu0
      %v2029 = vadd.f32 %v1952, %v2028
      %v2030 = vpop.f32.mrb[0].mxu0
      %v2031 = vpop.f32.mrb[0].mxu0
      %v2032 = vadd.f32 %v1955, %v2031
      %v2033 = vpop.f32.mrb[0].mxu0
      %2034 = vmatprep.mubr.bf16.mxu0 0
      %2035 = vmatmul.mubr.bf16.gmra.mrb[0].mxu0 %v1989
      %v2036 = vpop.f32.mrb[0].mxu0
      %v2037 = vadd.f32 %v1960, %v2036
      %v2038 = vpop.f32.mrb[0].mxu0
      %v2039 = vpop.f32.mrb[0].mxu0
      %v2040 = vadd.f32 %v1963, %v2039
      %v2041 = vpop.f32.mrb[0].mxu0
      %2042 = vmatprep.mubr.bf16.mxu0 0
      %2043 = vmatmul.mubr.bf16.gmra.mrb[0].mxu0 %v1992
      %v2044 = vpop.f32.mrb[0].mxu0
      %v2045 = vadd.f32 %v1968, %v2044
      %v2046 = vpop.f32.mrb[0].mxu0
      %v2047 = vpop.f32.mrb[0].mxu0
      %v2048 = vpop.f32.mrb[0].mxu0
      %2049 = vdwg.mxu0
      %2050 = vrot.lane.b32.xlu0 %v1448, 64
      %v2051 = vpop.permute.xlu0 %2050
      %2052 = vrot.lane.b32.xlu0 %v1449, 64
      %v2053 = vpop.permute.xlu0 %2052
      %2054 = vrot.lane.b32.xlu0 %v1450, 64
      %v2055 = vpop.permute.xlu0 %2054
      %2056 = vrot.lane.b32.xlu0 %v1451, 64
      %v2057 = vpop.permute.xlu0 %2056
      %2058 = vrot.lane.b32.xlu0 %v1452, 64
      %v2059 = vpop.permute.xlu0 %2058
      %2060 = vrot.lane.b32.xlu0 %v1453, 64
      %v2061 = vpop.permute.xlu0 %2060
      %v2063 = vsel %vm1457, %v2051, 0
      %v2066 = vsel %vm1457, %v2053, 0
      %v2069 = vsel %vm1457, %v2055, 0
      %v2072 = vsel %vm1457, %v2057, 0
      %v2075 = vsel %vm1457, %v2059, 0
      %v2078 = vsel %vm1457, %v2061, 0
      %2080 = vmatprep.subr.bf16.mxu0 0
      %2081 = vmatpush1.bf16.xpose.msra.mxu0 %v2072
      %2082 = vmatprep.subr.bf16.mxu0 0
      %2083 = vmatpush1.bf16.xpose.msra.mxu0 %v2075
      %2084 = vmatprep.subr.bf16.mxu0 0
      %2085 = vmatpush1.bf16.xpose.msra.mxu0 %v2078
      %2086 = vmatprep.subr.bf16.mxu0 0
      %2087 = vmatpush1.bf16.xpose.msra.mxu0 0
      %2088 = vmatprep.subr.bf16.mxu0 0
      %2089 = vmatpush1.bf16.xpose.msra.mxu0 0
      %2090 = vmatprep.subr.bf16.mxu0 0
      %2091 = vmatpush1.bf16.xpose.msra.mxu0 0
      %2092 = vmatprep.subr.bf16.mxu0 0
      %2093 = vmatpush1.bf16.xpose.msra.mxu0 0
      %2094 = vmatprep.subr.bf16.mxu0 0
      %2095 = vmatpush1.bf16.xpose.msra.mxu0 0
      %2096 = vmatprep.subr.bf16.mxu0 0
      %2097 = vmatpush1.bf16.xpose.msra.mxu0 0
      %2098 = vmatprep.subr.bf16.mxu0 0
      %2099 = vmatpush1.bf16.xpose.msra.mxu0 0
      %2100 = vmatprep.subr.bf16.mxu0 0
      %2101 = vmatpush1.bf16.xpose.msra.mxu0 0
      %2102 = vmatprep.subr.bf16.mxu0 0
      %2103 = vmatpush1.bf16.xpose.msra.mxu0 0
      %2104 = vmatprep.subr.bf16.mxu0 0
      %2105 = vmatpush1.bf16.xpose.msra.mxu0 0
      %2106 = vmatprep.subr.bf16.mxu0 0
      %2107 = vmatpush1.bf16.xpose.msra.mxu0 0
      %2108 = vmatprep.subr.bf16.mxu0 0
      %2109 = vmatpush1.bf16.xpose.msra.mxu0 0
      %2110 = vmatprep.subr.bf16.mxu0 0
      %2111 = vmatpush1.bf16.xpose.msra.mxu0 0
      %2112 = vmatprep.mubr.bf16.mxu0 0
      %2113 = vmatmul.mubr.bf16.gmra.mrb[0].mxu0 %v2063
      %v2114 = vpop.f32.mrb[0].mxu0
      %v2115 = vadd.f32 0.0, %v2114
      %v2116 = vpop.f32.mrb[0].mxu0
      %v2117 = vpop.f32.mrb[0].mxu0
      %v2118 = vadd.f32 0.0, %v2117
      %v2119 = vpop.f32.mrb[0].mxu0
      %2120 = vmatprep.mubr.bf16.mxu0 0
      %2121 = vmatmul.mubr.bf16.gmra.mrb[0].mxu0 %v2066
      %v2122 = vpop.f32.mrb[0].mxu0
      %v2123 = vadd.f32 0.0, %v2122
      %v2124 = vpop.f32.mrb[0].mxu0
      %v2125 = vpop.f32.mrb[0].mxu0
      %v2126 = vadd.f32 0.0, %v2125
      %v2127 = vpop.f32.mrb[0].mxu0
      %2128 = vmatprep.mubr.bf16.mxu0 0
      %2129 = vmatmul.mubr.bf16.gmra.mrb[0].mxu0 %v2069
      %v2130 = vpop.f32.mrb[0].mxu0
      %v2131 = vadd.f32 0.0, %v2130
      %v2132 = vpop.f32.mrb[0].mxu0
      %v2133 = vpop.f32.mrb[0].mxu0
      %v2134 = vpop.f32.mrb[0].mxu0
      %2135 = vdwg.mxu0
      %v2136 = vsel %vm1532, %v2115, -inf
      %2137 = vmax.xlane.f32.xlu0 %v2136
      %v2138 = vpop.xlane.xlu0 %2137
      %v2139 = vsel %vm1532, %v2118, -inf
      %2140 = vmax.xlane.f32.xlu0 %v2139
      %v2141 = vpop.xlane.xlu0 %2140
      %v2142 = vsel %vm1532, %v2123, -inf
      %2143 = vmax.xlane.f32.xlu0 %v2142
      %v2144 = vpop.xlane.xlu0 %2143
      %v2145 = vsel %vm1532, %v2126, -inf
      %2146 = vmax.xlane.f32.xlu0 %v2145
      %v2147 = vpop.xlane.xlu0 %2146
      %v2148 = vsel %vm1545, %v2131, -inf
      %2149 = vmax.xlane.f32.xlu0 %v2148
      %v2150 = vpop.xlane.xlu0 %2149
      %v2151 = vsub.f32 %v2115, %v2138
      %v2152 = vsub.f32 %v2118, %v2141
      %v2153 = vsub.f32 %v2123, %v2144
      %v2154 = vsub.f32 %v2126, %v2147
      %v2155 = vsub.f32 %v2131, %v2150
      %v2156 = vmul.f32 %v2151, 1.442695
      %v2157 = vpow.pop %v2156
      %v2158 = vmul.f32 %v2152, 1.442695
      %v2159 = vpow.pop %v2158
      %v2160 = vmul.f32 %v2153, 1.442695
      %v2161 = vpow.pop %v2160
      %v2162 = vmul.f32 %v2154, 1.442695
      %v2163 = vpow.pop %v2162
      %v2164 = vmul.f32 %v2155, 1.442695
      %v2165 = vpow.pop %v2164
      %v2166 = vsel %vm1532, %v2157, 0.0
      %2167 = vadd.xlane.f32.xlu0 %v2166
      %v2168 = vpop.xlane.xlu0 %2167
      %v2169 = vsel %vm1532, %v2159, 0.0
      %2170 = vadd.xlane.f32.xlu0 %v2169
      %v2171 = vpop.xlane.xlu0 %2170
      %v2172 = vsel %vm1532, %v2161, 0.0
      %2173 = vadd.xlane.f32.xlu0 %v2172
      %v2174 = vpop.xlane.xlu0 %2173
      %v2175 = vsel %vm1532, %v2163, 0.0
      %2176 = vadd.xlane.f32.xlu0 %v2175
      %v2177 = vpop.xlane.xlu0 %2176
      %v2178 = vsel %vm1545, %v2165, 0.0
      %2179 = vadd.xlane.f32.xlu0 %v2178
      %v2180 = vpop.xlane.xlu0 %2179
      %v2181 = vrcp.pop %v2168
      %v2182 = vrcp.pop %v2171
      %v2183 = vrcp.pop %v2174
      %v2184 = vrcp.pop %v2177
      %v2185 = vrcp.pop %v2180
      %v2186 = vmul.f32 %v2157, %v2181
      %v2187 = vmul.f32 %v2159, %v2182
      %v2188 = vmul.f32 %v2161, %v2183
      %v2189 = vmul.f32 %v2163, %v2184
      %v2190 = vmul.f32 %v2165, %v2185
      %v2191 = vpack.c.bf16 %v2187, %v2186
      %v2192 = vpack.c.bf16 %v2189, %v2188
      %v2193 = vpack.c.bf16 %v2190, %v2190
      %2194 = vrot.lane.b32.xlu0 %v1454, 64
      %v2195 = vpop.permute.xlu0 %2194
      %2196 = vrot.lane.b32.xlu0 %v1455, 64
      %v2197 = vpop.permute.xlu0 %2196
      %2198 = vrot.lane.b32.xlu0 %v1456, 64
      %v2199 = vpop.permute.xlu0 %2198
      %v2203 = vsel %vm1532, %v2191, 0
      %v2206 = vsel %vm1532, %v2192, 0
      %v2209 = vsel %vm1532, %v2193, 0
      %v2212 = vsel %vm1601, %v2199, 0
      %2214 = vmatprep.subr.bf16.mxu0 0
      %2215 = vmatpush1.bf16.msra.mxu0 %v2195
      %2216 = vmatprep.subr.bf16.mxu0 0
      %2217 = vmatpush1.bf16.msra.mxu0 %v2197
      %2218 = vmatprep.subr.bf16.mxu0 0
      %2219 = vmatpush1.bf16.msra.mxu0 %v2212
      %2220 = vmatprep.subr.bf16.mxu0 0
      %2221 = vmatpush1.bf16.msra.mxu0 0
      %2222 = vmatprep.subr.bf16.mxu0 0
      %2223 = vmatpush1.bf16.msra.mxu0 0
      %2224 = vmatprep.subr.bf16.mxu0 0
      %2225 = vmatpush1.bf16.msra.mxu0 0
      %2226 = vmatprep.subr.bf16.mxu0 0
      %2227 = vmatpush1.bf16.msra.mxu0 0
      %2228 = vmatprep.subr.bf16.mxu0 0
      %2229 = vmatpush1.bf16.msra.mxu0 0
      %2230 = vmatprep.subr.bf16.mxu0 0
      %2231 = vmatpush1.bf16.msra.mxu0 0
      %2232 = vmatprep.subr.bf16.mxu0 0
      %2233 = vmatpush1.bf16.msra.mxu0 0
      %2234 = vmatprep.subr.bf16.mxu0 0
      %2235 = vmatpush1.bf16.msra.mxu0 0
      %2236 = vmatprep.subr.bf16.mxu0 0
      %2237 = vmatpush1.bf16.msra.mxu0 0
      %2238 = vmatprep.subr.bf16.mxu0 0
      %2239 = vmatpush1.bf16.msra.mxu0 0
      %2240 = vmatprep.subr.bf16.mxu0 0
      %2241 = vmatpush1.bf16.msra.mxu0 0
      %2242 = vmatprep.subr.bf16.mxu0 0
      %2243 = vmatpush1.bf16.msra.mxu0 0
      %2244 = vmatprep.subr.bf16.mxu0 0
      %2245 = vmatpush1.bf16.msra.mxu0 0
      %2246 = vmatprep.mubr.bf16.mxu0 0
      %2247 = vmatmul.mubr.bf16.gmra.mrb[0].mxu0 %v2203
      %v2248 = vpop.f32.mrb[0].mxu0
      %v2249 = vadd.f32 0.0, %v2248
      %v2250 = vpop.f32.mrb[0].mxu0
      %v2251 = vpop.f32.mrb[0].mxu0
      %v2252 = vadd.f32 0.0, %v2251
      %v2253 = vpop.f32.mrb[0].mxu0
      %2254 = vmatprep.mubr.bf16.mxu0 0
      %2255 = vmatmul.mubr.bf16.gmra.mrb[0].mxu0 %v2206
      %v2256 = vpop.f32.mrb[0].mxu0
      %v2257 = vadd.f32 0.0, %v2256
      %v2258 = vpop.f32.mrb[0].mxu0
      %v2259 = vpop.f32.mrb[0].mxu0
      %v2260 = vadd.f32 0.0, %v2259
      %v2261 = vpop.f32.mrb[0].mxu0
      %2262 = vmatprep.mubr.bf16.mxu0 0
      %2263 = vmatmul.mubr.bf16.gmra.mrb[0].mxu0 %v2209
      %v2264 = vpop.f32.mrb[0].mxu0
      %v2265 = vadd.f32 0.0, %v2264
      %v2266 = vpop.f32.mrb[0].mxu0
      %v2267 = vpop.f32.mrb[0].mxu0
      %v2268 = vpop.f32.mrb[0].mxu0
      %2269 = vdwg.mxu0
      %v2270 = vpack.c.bf16 %v2252, %v2249
      %v2271 = vpack.c.bf16 %v2260, %v2257
      %v2272 = vpack.c.bf16 %v2265, %v2265
      %v2277 = vunpack.c.l.b16 %v1444
      %v2278 = vunpack.c.l.b16 %v1445
      %v2279 = vunpack.c.l.b16 %v1446
      %v2280 = vunpack.c.l.b16 %v1447
      %v2281 = vpack.c.b16 %v2278, %v2277
      %v2282 = vpack.c.b16 %v2280, %v2279
      %v2286 = vsel %vm1457, %v2270, 0
      %v2289 = vsel %vm1457, %v2271, 0
      %v2292 = vsel %vm1457, %v2272, 0
      %2294 = vmatprep.subr.bf16.mxu0 0
      %2295 = vmatpush1.bf16.msra.mxu0 %v2281
      %2296 = vmatprep.subr.bf16.mxu0 0
      %2297 = vmatpush1.bf16.msra.mxu0 %v2282
      %2298 = vmatprep.subr.bf16.mxu0 0
      %2299 = vmatpush1.bf16.msra.mxu0 0
      %2300 = vmatprep.subr.bf16.mxu0 0
      %2301 = vmatpush1.bf16.msra.mxu0 0
      %2302 = vmatprep.subr.bf16.mxu0 0
      %2303 = vmatpush1.bf16.msra.mxu0 0
      %2304 = vmatprep.subr.bf16.mxu0 0
      %2305 = vmatpush1.bf16.msra.mxu0 0
      %2306 = vmatprep.subr.bf16.mxu0 0
      %2307 = vmatpush1.bf16.msra.mxu0 0
      %2308 = vmatprep.subr.bf16.mxu0 0
      %2309 = vmatpush1.bf16.msra.mxu0 0
      %2310 = vmatprep.subr.bf16.mxu0 0
      %2311 = vmatpush1.bf16.msra.mxu0 0
      %2312 = vmatprep.subr.bf16.mxu0 0
      %2313 = vmatpush1.bf16.msra.mxu0 0
      %2314 = vmatprep.subr.bf16.mxu0 0
      %2315 = vmatpush1.bf16.msra.mxu0 0
      %2316 = vmatprep.subr.bf16.mxu0 0
      %2317 = vmatpush1.bf16.msra.mxu0 0
      %2318 = vmatprep.subr.bf16.mxu0 0
      %2319 = vmatpush1.bf16.msra.mxu0 0
      %2320 = vmatprep.subr.bf16.mxu0 0
      %2321 = vmatpush1.bf16.msra.mxu0 0
      %2322 = vmatprep.subr.bf16.mxu0 0
      %2323 = vmatpush1.bf16.msra.mxu0 0
      %2324 = vmatprep.subr.bf16.mxu0 0
      %2325 = vmatpush1.bf16.msra.mxu0 0
      %2326 = vmatprep.mubr.bf16.mxu0 0
      %2327 = vmatmul.mubr.bf16.gmra.mrb[0].mxu0 %v2286
      %v2328 = vpop.f32.mrb[0].mxu0
      %v2329 = vadd.f32 0.0, %v2328
      %v2330 = vpop.f32.mrb[0].mxu0
      %v2331 = vpop.f32.mrb[0].mxu0
      %v2332 = vadd.f32 0.0, %v2331
      %v2333 = vpop.f32.mrb[0].mxu0
      %2334 = vmatprep.mubr.bf16.mxu0 0
      %2335 = vmatmul.mubr.bf16.gmra.mrb[0].mxu0 %v2289
      %v2336 = vpop.f32.mrb[0].mxu0
      %v2337 = vadd.f32 0.0, %v2336
      %v2338 = vpop.f32.mrb[0].mxu0
      %v2339 = vpop.f32.mrb[0].mxu0
      %v2340 = vadd.f32 0.0, %v2339
      %v2341 = vpop.f32.mrb[0].mxu0
      %2342 = vmatprep.mubr.bf16.mxu0 0
      %2343 = vmatmul.mubr.bf16.gmra.mrb[0].mxu0 %v2292
      %v2344 = vpop.f32.mrb[0].mxu0
      %v2345 = vadd.f32 0.0, %v2344
      %v2346 = vpop.f32.mrb[0].mxu0
      %v2347 = vpop.f32.mrb[0].mxu0
      %v2348 = vpop.f32.mrb[0].mxu0
      %2349 = vdwg.mxu0
      %v2350 = vadd.f32 %v2029, %v2329
      %v2351 = vadd.f32 %v2032, %v2332
      %v2352 = vadd.f32 %v2037, %v2337
      %v2353 = vadd.f32 %v2040, %v2340
      %v2354 = vadd.f32 %v2045, %v2345
      %v2355 = vld [vmem:[%s15] sm:$0x1]
      %v2357 = vlaneseq
      %v2358 = vshrl.u32 %v2357, 7
      %v2359 = vsub.s32 0, %v2358
      %v2360 = vrot.slane %v2355, %v2359
      %v2362 = vadd.f32 %v2350, %v2360
      %v2363 = vadd.f32 %v2351, %v2360
      %v2364 = vadd.f32 %v2352, %v2360
      %v2365 = vadd.f32 %v2353, %v2360
      %v2366 = vadd.f32 %v2354, %v2360
      %v2367 = vadd.f32 %v851, %v2362
      %v2368 = vadd.f32 %v852, %v2363
      %v2369 = vadd.f32 %v853, %v2364
      %v2370 = vadd.f32 %v854, %v2365
      %v2371 = vadd.f32 %v855, %v2366
      %v2372 = vsel %vm871, %v2367, 0.0
      %2373 = vadd.xlane.f32.xlu0 %v2372
      %v2374 = vpop.xlane.xlu0 %2373
      %v2375 = vsel %vm871, %v2368, 0.0
      %2376 = vadd.xlane.f32.xlu0 %v2375
      %v2377 = vpop.xlane.xlu0 %2376
      %v2378 = vsel %vm871, %v2369, 0.0
      %2379 = vadd.xlane.f32.xlu0 %v2378
      %v2380 = vpop.xlane.xlu0 %2379
      %v2381 = vsel %vm871, %v2370, 0.0
      %2382 = vadd.xlane.f32.xlu0 %v2381
      %v2383 = vpop.xlane.xlu0 %2382
      %v2384 = vsel %vm884, %v2371, 0.0
      %2385 = vadd.xlane.f32.xlu0 %v2384
      %v2386 = vpop.xlane.xlu0 %2385
      %v2387 = vmul.f32 %v2374, %v888
      %v2388 = vmul.f32 %v2377, %v888
      %v2389 = vmul.f32 %v2380, %v888
      %v2390 = vmul.f32 %v2383, %v888
      %v2391 = vmul.f32 %v2386, %v888
      %v2392 = vsub.f32 %v2367, %v2387
      %v2393 = vsub.f32 %v2368, %v2388
      %v2394 = vsub.f32 %v2369, %v2389
      %v2395 = vsub.f32 %v2370, %v2390
      %v2396 = vsub.f32 %v2371, %v2391
      %v2397 = vmul.f32 %v2392, %v2392
      %v2398 = vmul.f32 %v2393, %v2393
      %v2399 = vmul.f32 %v2394, %v2394
      %v2400 = vmul.f32 %v2395, %v2395
      %v2401 = vmul.f32 %v2396, %v2396
      %v2402 = vsel %vm871, %v2397, 0.0
      %2403 = vadd.xlane.f32.xlu0 %v2402
      %v2404 = vpop.xlane.xlu0 %2403
      %v2405 = vsel %vm871, %v2398, 0.0
      %2406 = vadd.xlane.f32.xlu0 %v2405
      %v2407 = vpop.xlane.xlu0 %2406
      %v2408 = vsel %vm871, %v2399, 0.0
      %2409 = vadd.xlane.f32.xlu0 %v2408
      %v2410 = vpop.xlane.xlu0 %2409
      %v2411 = vsel %vm871, %v2400, 0.0
      %2412 = vadd.xlane.f32.xlu0 %v2411
      %v2413 = vpop.xlane.xlu0 %2412
      %v2414 = vsel %vm884, %v2401, 0.0
      %2415 = vadd.xlane.f32.xlu0 %v2414
      %v2416 = vpop.xlane.xlu0 %2415
      %v2417 = vmul.f32 %v2404, %v888
      %v2418 = vmul.f32 %v2407, %v888
      %v2419 = vmul.f32 %v2410, %v888
      %v2420 = vmul.f32 %v2413, %v888
      %v2421 = vmul.f32 %v2416, %v888
      %v2422 = vadd.f32 %v2417, 1e-06
      %v2423 = vadd.f32 %v2418, 1e-06
      %v2424 = vadd.f32 %v2419, 1e-06
      %v2425 = vadd.f32 %v2420, 1e-06
      %v2426 = vadd.f32 %v2421, 1e-06
      %v2427 = vrsqrt.pop %v2422
      %v2428 = vrsqrt.pop %v2423
      %v2429 = vrsqrt.pop %v2424
      %v2430 = vrsqrt.pop %v2425
      %v2431 = vrsqrt.pop %v2426
      %v2432 = vmul.f32 %v2392, %v2427
      %v2433 = vmul.f32 %v2393, %v2428
      %v2434 = vmul.f32 %v2394, %v2429
      %v2435 = vmul.f32 %v2395, %v2430
      %v2436 = vmul.f32 %v2396, %v2431
      %v2437 = vld [vmem:[%s16] sm:$0x1]
      %v2439 = vlaneseq
      %v2440 = vshrl.u32 %v2439, 7
      %v2441 = vsub.s32 0, %v2440
      %v2442 = vrot.slane %v2437, %v2441
      %v2444 = vmul.f32 %v2432, %v2442
      %v2445 = vmul.f32 %v2433, %v2442
      %v2446 = vmul.f32 %v2434, %v2442
      %v2447 = vmul.f32 %v2435, %v2442
      %v2448 = vmul.f32 %v2436, %v2442
      %v2449 = vld [vmem:[%s17] sm:$0x1]
      %v2451 = vlaneseq
      %v2452 = vshrl.u32 %v2451, 7
      %v2453 = vsub.s32 0, %v2452
      %v2454 = vrot.slane %v2449, %v2453
      %v2456 = vadd.f32 %v2444, %v2454
      %v2457 = vadd.f32 %v2445, %v2454
      %v2458 = vadd.f32 %v2446, %v2454
      %v2459 = vadd.f32 %v2447, %v2454
      %v2460 = vadd.f32 %v2448, %v2454
      %v2461 = vpack.c.bf16 %v2457, %v2456
      %v2462 = vpack.c.bf16 %v2459, %v2458
      %v2463 = vpack.c.bf16 %v2460, %v2460
      %v2464 = vld [vmem:[%s18] sm:$0xff]
      %v2465 = vld [vmem:[%s18 + $0x8] sm:$0xf]
      %v2466 = vld [vmem:[%s18 + $0xc] sm:$0xff]
      %v2467 = vld [vmem:[%s18 + $0x14] sm:$0xf]
      %v2468 = vld [vmem:[%s18 + $0x18] sm:$0xff]
      %v2469 = vld [vmem:[%s18 + $0x20] sm:$0xf]
      %v2470 = vld [vmem:[%s18 + $0x24] sm:$0xff]
      %v2471 = vld [vmem:[%s18 + $0x2c] sm:$0xf]
      %v2472 = vld [vmem:[%s18 + $0x30] sm:$0xff]
      %v2473 = vld [vmem:[%s18 + $0x38] sm:$0xf]
      %v2474 = vld [vmem:[%s18 + $0x3c] sm:$0xff]
      %v2475 = vld [vmem:[%s18 + $0x44] sm:$0xf]
      %v2476 = vld [vmem:[%s18 + $0x48] sm:$0xff]
      %v2477 = vld [vmem:[%s18 + $0x50] sm:$0xf]
      %v2478 = vld [vmem:[%s18 + $0x54] sm:$0xff]
      %v2479 = vld [vmem:[%s18 + $0x5c] sm:$0xf]
      %v2480 = vld [vmem:[%s18 + $0x60] sm:$0xff]
      %v2481 = vld [vmem:[%s18 + $0x68] sm:$0xf]
      %v2482 = vld [vmem:[%s18 + $0x6c] sm:$0xff]
      %v2483 = vld [vmem:[%s18 + $0x74] sm:$0xf]
      %v2484 = vld [vmem:[%s18 + $0x78] sm:$0xff]
      %v2485 = vld [vmem:[%s18 + $0x80] sm:$0xf]
      %v2486 = vld [vmem:[%s18 + $0x84] sm:$0xff]
      %v2487 = vld [vmem:[%s18 + $0x8c] sm:$0xf]
      %v2488 = vld [vmem:[%s19] sm:$0x7]
      %v2490 = vlaneseq
      %v2491 = vshrl.u32 %v2490, 7
      %v2492 = vsub.s32 0, %v2491
      %v2493 = vrot.slane %v2488, %v2492
      %v2494 = vlaneseq
      %v2495 = vshrl.u32 %v2494, 7
      %v2496 = vsub.s32 1, %v2495
      %v2497 = vrot.slane %v2488, %v2496
      %v2498 = vlaneseq
      %v2499 = vshrl.u32 %v2498, 7
      %v2500 = vsub.s32 2, %v2499
      %v2501 = vrot.slane %v2488, %v2500
      %v2529 = vunpack.c.l.b16 %v2464
      %v2530 = vunpack.c.h.b16 %v2464
      %v2531 = vunpack.c.l.b16 %v2465
      %v2532 = vunpack.c.l.b16 %v2466
      %v2533 = vunpack.c.h.b16 %v2466
      %v2534 = vunpack.c.l.b16 %v2467
      %v2535 = vunpack.c.l.b16 %v2468
      %v2536 = vunpack.c.h.b16 %v2468
      %v2537 = vunpack.c.l.b16 %v2469
      %v2538 = vunpack.c.l.b16 %v2470
      %v2539 = vunpack.c.h.b16 %v2470
      %v2540 = vunpack.c.l.b16 %v2471
      %v2541 = vunpack.c.l.b16 %v2472
      %v2542 = vunpack.c.h.b16 %v2472
      %v2543 = vunpack.c.l.b16 %v2473
      %v2544 = vunpack.c.l.b16 %v2474
      %v2545 = vunpack.c.h.b16 %v2474
      %v2546 = vunpack.c.l.b16 %v2475
      %v2547 = vunpack.c.l.b16 %v2476
      %v2548 = vunpack.c.h.b16 %v2476
      %v2549 = vunpack.c.l.b16 %v2477
      %v2550 = vunpack.c.l.b16 %v2478
      %v2551 = vunpack.c.h.b16 %v2478
      %v2552 = vunpack.c.l.b16 %v2479
      %v2553 = vunpack.c.l.b16 %v2480
      %v2554 = vunpack.c.h.b16 %v2480
      %v2555 = vunpack.c.l.b16 %v2481
      %v2556 = vunpack.c.l.b16 %v2482
      %v2557 = vunpack.c.h.b16 %v2482
      %v2558 = vunpack.c.l.b16 %v2483
      %v2559 = vunpack.c.l.b16 %v2484
      %v2560 = vunpack.c.h.b16 %v2484
      %v2561 = vunpack.c.l.b16 %v2485
      %v2562 = vunpack.c.l.b16 %v2486
      %v2563 = vunpack.c.h.b16 %v2486
      %v2564 = vunpack.c.l.b16 %v2487
      %v2565 = vpack.c.b16 %v2532, %v2529
      %v2566 = vpack.c.b16 %v2533, %v2530
      %v2567 = vpack.c.b16 %v2534, %v2531
      %v2568 = vpack.c.b16 %v2538, %v2535
      %v2569 = vpack.c.b16 %v2539, %v2536
      %v2570 = vpack.c.b16 %v2540, %v2537
      %v2571 = vpack.c.b16 %v2544, %v2541
      %v2572 = vpack.c.b16 %v2545, %v2542
      %v2573 = vpack.c.b16 %v2546, %v2543
      %v2574 = vpack.c.b16 %v2550, %v2547
      %v2575 = vpack.c.b16 %v2551, %v2548
      %v2576 = vpack.c.b16 %v2552, %v2549
      %v2577 = vpack.c.b16 %v2556, %v2553
      %v2578 = vpack.c.b16 %v2557, %v2554
      %v2579 = vpack.c.b16 %v2558, %v2555
      %v2580 = vpack.c.b16 %v2562, %v2559
      %v2581 = vpack.c.b16 %v2563, %v2560
      %v2582 = vpack.c.b16 %v2564, %v2561
      %v2602 = vsel %vm871, %v2461, 0
      %v2605 = vsel %vm871, %v2462, 0
      %v2608 = vsel %vm871, %v2463, 0
      %2610 = vmatprep.subr.bf16.mxu0 %v2566
      %2611 = vmatpush1.bf16.msra.mxu0 %v2565
      %2612 = vmatprep.subr.bf16.mxu0 %v2569
      %2613 = vmatpush1.bf16.msra.mxu0 %v2568
      %2614 = vmatprep.subr.bf16.mxu0 %v2572
      %2615 = vmatpush1.bf16.msra.mxu0 %v2571
      %2616 = vmatprep.subr.bf16.mxu0 %v2575
      %2617 = vmatpush1.bf16.msra.mxu0 %v2574
      %2618 = vmatprep.subr.bf16.mxu0 %v2578
      %2619 = vmatpush1.bf16.msra.mxu0 %v2577
      %2620 = vmatprep.subr.bf16.mxu0 %v2581
      %2621 = vmatpush1.bf16.msra.mxu0 %v2580
      %2622 = vmatprep.subr.bf16.mxu0 0
      %2623 = vmatpush1.bf16.msra.mxu0 0
      %2624 = vmatprep.subr.bf16.mxu0 0
      %2625 = vmatpush1.bf16.msra.mxu0 0
      %2626 = vmatprep.subr.bf16.mxu0 0
      %2627 = vmatpush1.bf16.msra.mxu0 0
      %2628 = vmatprep.subr.bf16.mxu0 0
      %2629 = vmatpush1.bf16.msra.mxu0 0
      %2630 = vmatprep.subr.bf16.mxu0 0
      %2631 = vmatpush1.bf16.msra.mxu0 0
      %2632 = vmatprep.subr.bf16.mxu0 0
      %2633 = vmatpush1.bf16.msra.mxu0 0
      %2634 = vmatprep.subr.bf16.mxu0 0
      %2635 = vmatpush1.bf16.msra.mxu0 0
      %2636 = vmatprep.subr.bf16.mxu0 0
      %2637 = vmatpush1.bf16.msra.mxu0 0
      %2638 = vmatprep.subr.bf16.mxu0 0
      %2639 = vmatpush1.bf16.msra.mxu0 0
      %2640 = vmatprep.subr.bf16.mxu0 0
      %2641 = vmatpush1.bf16.msra.mxu0 0
      %2642 = vmatprep.mubr.bf16.mxu0 0
      %2643 = vmatmul.mubr.bf16.gmra.mrb[0].mxu0 %v2602
      %v2644 = vpop.f32.mrb[0].mxu0
      %v2645 = vadd.f32 %v2493, %v2644
      %v2646 = vpop.f32.mrb[0].mxu0
      %v2647 = vadd.f32 %v2497, %v2646
      %v2648 = vpop.f32.mrb[0].mxu0
      %v2649 = vadd.f32 %v2493, %v2648
      %v2650 = vpop.f32.mrb[0].mxu0
      %v2651 = vadd.f32 %v2497, %v2650
      %2652 = vmatprep.mubr.bf16.mxu0 0
      %2653 = vmatmul.mubr.bf16.gmra.mrb[0].mxu0 %v2605
      %v2654 = vpop.f32.mrb[0].mxu0
      %v2655 = vadd.f32 %v2493, %v2654
      %v2656 = vpop.f32.mrb[0].mxu0
      %v2657 = vadd.f32 %v2497, %v2656
      %v2658 = vpop.f32.mrb[0].mxu0
      %v2659 = vadd.f32 %v2493, %v2658
      %v2660 = vpop.f32.mrb[0].mxu0
      %v2661 = vadd.f32 %v2497, %v2660
      %2662 = vmatprep.mubr.bf16.mxu0 0
      %2663 = vmatmul.mubr.bf16.gmra.mrb[0].mxu0 %v2608
      %v2664 = vpop.f32.mrb[0].mxu0
      %v2665 = vadd.f32 %v2493, %v2664
      %v2666 = vpop.f32.mrb[0].mxu0
      %v2667 = vadd.f32 %v2497, %v2666
      %v2668 = vpop.f32.mrb[0].mxu0
      %v2669 = vpop.f32.mrb[0].mxu0
      %2670 = vdwg.mxu0
      %2671 = vmatprep.subr.bf16.mxu0 0
      %2672 = vmatpush1.bf16.msra.mxu0 %v2567
      %2673 = vmatprep.subr.bf16.mxu0 0
      %2674 = vmatpush1.bf16.msra.mxu0 %v2570
      %2675 = vmatprep.subr.bf16.mxu0 0
      %2676 = vmatpush1.bf16.msra.mxu0 %v2573
      %2677 = vmatprep.subr.bf16.mxu0 0
      %2678 = vmatpush1.bf16.msra.mxu0 %v2576
      %2679 = vmatprep.subr.bf16.mxu0 0
      %2680 = vmatpush1.bf16.msra.mxu0 %v2579
      %2681 = vmatprep.subr.bf16.mxu0 0
      %2682 = vmatpush1.bf16.msra.mxu0 %v2582
      %2683 = vmatprep.subr.bf16.mxu0 0
      %2684 = vmatpush1.bf16.msra.mxu0 0
      %2685 = vmatprep.subr.bf16.mxu0 0
      %2686 = vmatpush1.bf16.msra.mxu0 0
      %2687 = vmatprep.subr.bf16.mxu0 0
      %2688 = vmatpush1.bf16.msra.mxu0 0
      %2689 = vmatprep.subr.bf16.mxu0 0
      %2690 = vmatpush1.bf16.msra.mxu0 0
      %2691 = vmatprep.subr.bf16.mxu0 0
      %2692 = vmatpush1.bf16.msra.mxu0 0
      %2693 = vmatprep.subr.bf16.mxu0 0
      %2694 = vmatpush1.bf16.msra.mxu0 0
      %2695 = vmatprep.subr.bf16.mxu0 0
      %2696 = vmatpush1.bf16.msra.mxu0 0
      %2697 = vmatprep.subr.bf16.mxu0 0
      %2698 = vmatpush1.bf16.msra.mxu0 0
      %2699 = vmatprep.subr.bf16.mxu0 0
      %2700 = vmatpush1.bf16.msra.mxu0 0
      %2701 = vmatprep.subr.bf16.mxu0 0
      %2702 = vmatpush1.bf16.msra.mxu0 0
      %2703 = vmatprep.mubr.bf16.mxu0 0
      %2704 = vmatmul.mubr.bf16.gmra.mrb[0].mxu0 %v2602
      %v2705 = vpop.f32.mrb[0].mxu0
      %v2706 = vadd.f32 %v2501, %v2705
      %v2707 = vpop.f32.mrb[0].mxu0
      %v2708 = vpop.f32.mrb[0].mxu0
      %v2709 = vadd.f32 %v2501, %v2708
      %v2710 = vpop.f32.mrb[0].mxu0
      %2711 = vmatprep.mubr.bf16.mxu0 0
      %2712 = vmatmul.mubr.bf16.gmra.mrb[0].mxu0 %v2605
      %v2713 = vpop.f32.mrb[0].mxu0
      %v2714 = vadd.f32 %v2501, %v2713
      %v2715 = vpop.f32.mrb[0].mxu0
      %v2716 = vpop.f32.mrb[0].mxu0
      %v2717 = vadd.f32 %v2501, %v2716
      %v2718 = vpop.f32.mrb[0].mxu0
      %2719 = vmatprep.mubr.bf16.mxu0 0
      %2720 = vmatmul.mubr.bf16.gmra.mrb[0].mxu0 %v2608
      %v2721 = vpop.f32.mrb[0].mxu0
      %v2722 = vadd.f32 %v2501, %v2721
      %v2723 = vpop.f32.mrb[0].mxu0
      %v2724 = vpop.f32.mrb[0].mxu0
      %v2725 = vpop.f32.mrb[0].mxu0
      %2726 = vdwg.mxu0
      %v2727 = vmul.f32 %v2645, %v2645
      %v2728 = vmul.f32 %v2647, %v2647
      %v2729 = vmul.f32 %v2706, %v2706
      %v2730 = vmul.f32 %v2649, %v2649
      %v2731 = vmul.f32 %v2651, %v2651
      %v2732 = vmul.f32 %v2709, %v2709
      %v2733 = vmul.f32 %v2655, %v2655
      %v2734 = vmul.f32 %v2657, %v2657
      %v2735 = vmul.f32 %v2714, %v2714
      %v2736 = vmul.f32 %v2659, %v2659
      %v2737 = vmul.f32 %v2661, %v2661
      %v2738 = vmul.f32 %v2717, %v2717
      %v2739 = vmul.f32 %v2665, %v2665
      %v2740 = vmul.f32 %v2667, %v2667
      %v2741 = vmul.f32 %v2722, %v2722
      %v2742 = vmul.f32 %v2645, %v2727
      %v2743 = vmul.f32 %v2647, %v2728
      %v2744 = vmul.f32 %v2706, %v2729
      %v2745 = vmul.f32 %v2649, %v2730
      %v2746 = vmul.f32 %v2651, %v2731
      %v2747 = vmul.f32 %v2709, %v2732
      %v2748 = vmul.f32 %v2655, %v2733
      %v2749 = vmul.f32 %v2657, %v2734
      %v2750 = vmul.f32 %v2714, %v2735
      %v2751 = vmul.f32 %v2659, %v2736
      %v2752 = vmul.f32 %v2661, %v2737
      %v2753 = vmul.f32 %v2717, %v2738
      %v2754 = vmul.f32 %v2665, %v2739
      %v2755 = vmul.f32 %v2667, %v2740
      %v2756 = vmul.f32 %v2722, %v2741
      %v2757 = vmul.f32 %v2742, 0.044715
      %v2758 = vmul.f32 %v2743, 0.044715
      %v2759 = vmul.f32 %v2744, 0.044715
      %v2760 = vmul.f32 %v2745, 0.044715
      %v2761 = vmul.f32 %v2746, 0.044715
      %v2762 = vmul.f32 %v2747, 0.044715
      %v2763 = vmul.f32 %v2748, 0.044715
      %v2764 = vmul.f32 %v2749, 0.044715
      %v2765 = vmul.f32 %v2750, 0.044715
      %v2766 = vmul.f32 %v2751, 0.044715
      %v2767 = vmul.f32 %v2752, 0.044715
      %v2768 = vmul.f32 %v2753, 0.044715
      %v2769 = vmul.f32 %v2754, 0.044715
      %v2770 = vmul.f32 %v2755, 0.044715
      %v2771 = vmul.f32 %v2756, 0.044715
      %v2772 = vadd.f32 %v2645, %v2757
      %v2773 = vadd.f32 %v2647, %v2758
      %v2774 = vadd.f32 %v2706, %v2759
      %v2775 = vadd.f32 %v2649, %v2760
      %v2776 = vadd.f32 %v2651, %v2761
      %v2777 = vadd.f32 %v2709, %v2762
      %v2778 = vadd.f32 %v2655, %v2763
      %v2779 = vadd.f32 %v2657, %v2764
      %v2780 = vadd.f32 %v2714, %v2765
      %v2781 = vadd.f32 %v2659, %v2766
      %v2782 = vadd.f32 %v2661, %v2767
      %v2783 = vadd.f32 %v2717, %v2768
      %v2784 = vadd.f32 %v2665, %v2769
      %v2785 = vadd.f32 %v2667, %v2770
      %v2786 = vadd.f32 %v2722, %v2771
      %v2787 = vmul.f32 %v2772, 0.7978846
      %v2788 = vmul.f32 %v2773, 0.7978846
      %v2789 = vmul.f32 %v2774, 0.7978846
      %v2790 = vmul.f32 %v2775, 0.7978846
      %v2791 = vmul.f32 %v2776, 0.7978846
      %v2792 = vmul.f32 %v2777, 0.7978846
      %v2793 = vmul.f32 %v2778, 0.7978846
      %v2794 = vmul.f32 %v2779, 0.7978846
      %v2795 = vmul.f32 %v2780, 0.7978846
      %v2796 = vmul.f32 %v2781, 0.7978846
      %v2797 = vmul.f32 %v2782, 0.7978846
      %v2798 = vmul.f32 %v2783, 0.7978846
      %v2799 = vmul.f32 %v2784, 0.7978846
      %v2800 = vmul.f32 %v2785, 0.7978846
      %v2801 = vmul.f32 %v2786, 0.7978846
      %v2802 = vtanh.pop %v2787
      %v2803 = vtanh.pop %v2788
      %v2804 = vtanh.pop %v2789
      %v2805 = vtanh.pop %v2790
      %v2806 = vtanh.pop %v2791
      %v2807 = vtanh.pop %v2792
      %v2808 = vtanh.pop %v2793
      %v2809 = vtanh.pop %v2794
      %v2810 = vtanh.pop %v2795
      %v2811 = vtanh.pop %v2796
      %v2812 = vtanh.pop %v2797
      %v2813 = vtanh.pop %v2798
      %v2814 = vtanh.pop %v2799
      %v2815 = vtanh.pop %v2800
      %v2816 = vtanh.pop %v2801
      %v2817 = vadd.f32 %v2802, 1.0
      %v2818 = vadd.f32 %v2803, 1.0
      %v2819 = vadd.f32 %v2804, 1.0
      %v2820 = vadd.f32 %v2805, 1.0
      %v2821 = vadd.f32 %v2806, 1.0
      %v2822 = vadd.f32 %v2807, 1.0
      %v2823 = vadd.f32 %v2808, 1.0
      %v2824 = vadd.f32 %v2809, 1.0
      %v2825 = vadd.f32 %v2810, 1.0
      %v2826 = vadd.f32 %v2811, 1.0
      %v2827 = vadd.f32 %v2812, 1.0
      %v2828 = vadd.f32 %v2813, 1.0
      %v2829 = vadd.f32 %v2814, 1.0
      %v2830 = vadd.f32 %v2815, 1.0
      %v2831 = vadd.f32 %v2816, 1.0
      %v2832 = vmul.f32 %v2817, 0.5
      %v2833 = vmul.f32 %v2818, 0.5
      %v2834 = vmul.f32 %v2819, 0.5
      %v2835 = vmul.f32 %v2820, 0.5
      %v2836 = vmul.f32 %v2821, 0.5
      %v2837 = vmul.f32 %v2822, 0.5
      %v2838 = vmul.f32 %v2823, 0.5
      %v2839 = vmul.f32 %v2824, 0.5
      %v2840 = vmul.f32 %v2825, 0.5
      %v2841 = vmul.f32 %v2826, 0.5
      %v2842 = vmul.f32 %v2827, 0.5
      %v2843 = vmul.f32 %v2828, 0.5
      %v2844 = vmul.f32 %v2829, 0.5
      %v2845 = vmul.f32 %v2830, 0.5
      %v2846 = vmul.f32 %v2831, 0.5
      %v2847 = vmul.f32 %v2645, %v2832
      %v2848 = vmul.f32 %v2647, %v2833
      %v2849 = vmul.f32 %v2706, %v2834
      %v2850 = vmul.f32 %v2649, %v2835
      %v2851 = vmul.f32 %v2651, %v2836
      %v2852 = vmul.f32 %v2709, %v2837
      %v2853 = vmul.f32 %v2655, %v2838
      %v2854 = vmul.f32 %v2657, %v2839
      %v2855 = vmul.f32 %v2714, %v2840
      %v2856 = vmul.f32 %v2659, %v2841
      %v2857 = vmul.f32 %v2661, %v2842
      %v2858 = vmul.f32 %v2717, %v2843
      %v2859 = vmul.f32 %v2665, %v2844
      %v2860 = vmul.f32 %v2667, %v2845
      %v2861 = vmul.f32 %v2722, %v2846
      %v2862 = vpack.c.bf16 %v2850, %v2847
      %v2863 = vpack.c.bf16 %v2851, %v2848
      %v2864 = vpack.c.bf16 %v2852, %v2849
      %v2865 = vpack.c.bf16 %v2856, %v2853
      %v2866 = vpack.c.bf16 %v2857, %v2854
      %v2867 = vpack.c.bf16 %v2858, %v2855
      %v2868 = vpack.c.bf16 %v2859, %v2859
      %v2869 = vpack.c.bf16 %v2860, %v2860
      %v2870 = vpack.c.bf16 %v2861, %v2861
      %v2871 = vld [vmem:[%s20] sm:$0xf]
      %v2872 = vld [vmem:[%s20 + $0x4] sm:$0xf]
      %v2873 = vld [vmem:[%s20 + $0x8] sm:$0xf]
      %v2874 = vld [vmem:[%s20 + $0xc] sm:$0xf]
      %v2875 = vld [vmem:[%s20 + $0x10] sm:$0xf]
      %v2876 = vld [vmem:[%s20 + $0x14] sm:$0xf]
      %v2877 = vld [vmem:[%s20 + $0x18] sm:$0xf]
      %v2878 = vld [vmem:[%s20 + $0x1c] sm:$0xf]
      %v2879 = vld [vmem:[%s20 + $0x20] sm:$0xf]
      %v2880 = vld [vmem:[%s20 + $0x24] sm:$0xf]
      %v2881 = vld [vmem:[%s20 + $0x28] sm:$0xf]
      %v2882 = vld [vmem:[%s20 + $0x2c] sm:$0xf]
      %v2883 = vld [vmem:[%s20 + $0x30] sm:$0xf]
      %v2884 = vld [vmem:[%s20 + $0x34] sm:$0xf]
      %v2885 = vld [vmem:[%s20 + $0x38] sm:$0xf]
      %v2886 = vld [vmem:[%s20 + $0x3c] sm:$0xf]
      %v2887 = vld [vmem:[%s20 + $0x40] sm:$0xf]
      %v2888 = vld [vmem:[%s20 + $0x44] sm:$0xf]
      %v2889 = vld [vmem:[%s20 + $0x48] sm:$0xf]
      %v2890 = vld [vmem:[%s20 + $0x4c] sm:$0xf]
      %v2891 = vld [vmem:[%s20 + $0x50] sm:$0xf]
      %v2892 = vld [vmem:[%s20 + $0x54] sm:$0xf]
      %v2893 = vld [vmem:[%s20 + $0x58] sm:$0xf]
      %v2894 = vld [vmem:[%s20 + $0x5c] sm:$0xf]
      %v2895 = vld [vmem:[%s20 + $0x60] sm:$0xf]
      %v2896 = vld [vmem:[%s20 + $0x64] sm:$0xf]
      %v2897 = vld [vmem:[%s20 + $0x68] sm:$0xf]
      %v2898 = vld [vmem:[%s20 + $0x6c] sm:$0xf]
      %v2899 = vld [vmem:[%s20 + $0x70] sm:$0xf]
      %v2900 = vld [vmem:[%s20 + $0x74] sm:$0xf]
      %v2901 = vld [vmem:[%s20 + $0x78] sm:$0xf]
      %v2902 = vld [vmem:[%s20 + $0x7c] sm:$0xf]
      %v2903 = vld [vmem:[%s20 + $0x80] sm:$0xf]
      %v2904 = vld [vmem:[%s20 + $0x84] sm:$0xf]
      %v2905 = vld [vmem:[%s20 + $0x88] sm:$0xf]
      %v2906 = vld [vmem:[%s20 + $0x8c] sm:$0xf]
      %v2907 = vld [vmem:[%s20 + $0x90] sm:$0xf]
      %v2908 = vld [vmem:[%s20 + $0x94] sm:$0xf]
      %v2909 = vld [vmem:[%s20 + $0x98] sm:$0xf]
      %v2910 = vld [vmem:[%s20 + $0x9c] sm:$0xf]
      %v2911 = vld [vmem:[%s20 + $0xa0] sm:$0xf]
      %v2912 = vld [vmem:[%s20 + $0xa4] sm:$0xf]
      %v2913 = vld [vmem:[%s20 + $0xa8] sm:$0xf]
      %v2914 = vld [vmem:[%s20 + $0xac] sm:$0xf]
      %v2915 = vld [vmem:[%s20 + $0xb0] sm:$0xf]
      %v2916 = vld [vmem:[%s20 + $0xb4] sm:$0xf]
      %v2917 = vld [vmem:[%s20 + $0xb8] sm:$0xf]
      %v2918 = vld [vmem:[%s20 + $0xbc] sm:$0xf]
      %v2919 = vld [vmem:[%s21] sm:$0x1]
      %v2921 = vlaneseq
      %v2922 = vshrl.u32 %v2921, 7
      %v2923 = vsub.s32 0, %v2922
      %v2924 = vrot.slane %v2919, %v2923
      %v2974 = vunpack.c.l.b16 %v2871
      %v2975 = vunpack.c.l.b16 %v2872
      %v2976 = vunpack.c.l.b16 %v2873
      %v2977 = vunpack.c.l.b16 %v2874
      %v2978 = vunpack.c.l.b16 %v2875
      %v2979 = vunpack.c.l.b16 %v2876
      %v2980 = vunpack.c.l.b16 %v2877
      %v2981 = vunpack.c.l.b16 %v2878
      %v2982 = vunpack.c.l.b16 %v2879
      %v2983 = vunpack.c.l.b16 %v2880
      %v2984 = vunpack.c.l.b16 %v2881
      %v2985 = vunpack.c.l.b16 %v2882
      %v2986 = vunpack.c.l.b16 %v2883
      %v2987 = vunpack.c.l.b16 %v2884
      %v2988 = vunpack.c.l.b16 %v2885
      %v2989 = vunpack.c.l.b16 %v2886
      %v2990 = vunpack.c.l.b16 %v2887
      %v2991 = vunpack.c.l.b16 %v2888
      %v2992 = vunpack.c.l.b16 %v2889
      %v2993 = vunpack.c.l.b16 %v2890
      %v2994 = vunpack.c.l.b16 %v2891
      %v2995 = vunpack.c.l.b16 %v2892
      %v2996 = vunpack.c.l.b16 %v2893
      %v2997 = vunpack.c.l.b16 %v2894
      %v2998 = vunpack.c.l.b16 %v2895
      %v2999 = vunpack.c.l.b16 %v2896
      %v3000 = vunpack.c.l.b16 %v2897
      %v3001 = vunpack.c.l.b16 %v2898
      %v3002 = vunpack.c.l.b16 %v2899
      %v3003 = vunpack.c.l.b16 %v2900
      %v3004 = vunpack.c.l.b16 %v2901
      %v3005 = vunpack.c.l.b16 %v2902
      %v3006 = vunpack.c.l.b16 %v2903
      %v3007 = vunpack.c.l.b16 %v2904
      %v3008 = vunpack.c.l.b16 %v2905
      %v3009 = vunpack.c.l.b16 %v2906
      %v3010 = vunpack.c.l.b16 %v2907
      %v3011 = vunpack.c.l.b16 %v2908
      %v3012 = vunpack.c.l.b16 %v2909
      %v3013 = vunpack.c.l.b16 %v2910
      %v3014 = vunpack.c.l.b16 %v2911
      %v3015 = vunpack.c.l.b16 %v2912
      %v3016 = vunpack.c.l.b16 %v2913
      %v3017 = vunpack.c.l.b16 %v2914
      %v3018 = vunpack.c.l.b16 %v2915
      %v3019 = vunpack.c.l.b16 %v2916
      %v3020 = vunpack.c.l.b16 %v2917
      %v3021 = vunpack.c.l.b16 %v2918
      %v3022 = vpack.c.b16 %v2975, %v2974
      %v3023 = vpack.c.b16 %v2977, %v2976
      %v3024 = vpack.c.b16 %v2979, %v2978
      %v3025 = vpack.c.b16 %v2981, %v2980
      %v3026 = vpack.c.b16 %v2983, %v2982
      %v3027 = vpack.c.b16 %v2985, %v2984
      %v3028 = vpack.c.b16 %v2987, %v2986
      %v3029 = vpack.c.b16 %v2989, %v2988
      %v3030 = vpack.c.b16 %v2991, %v2990
      %v3031 = vpack.c.b16 %v2993, %v2992
      %v3032 = vpack.c.b16 %v2995, %v2994
      %v3033 = vpack.c.b16 %v2997, %v2996
      %v3034 = vpack.c.b16 %v2999, %v2998
      %v3035 = vpack.c.b16 %v3001, %v3000
      %v3036 = vpack.c.b16 %v3003, %v3002
      %v3037 = vpack.c.b16 %v3005, %v3004
      %v3038 = vpack.c.b16 %v3007, %v3006
      %v3039 = vpack.c.b16 %v3009, %v3008
      %v3040 = vpack.c.b16 %v3011, %v3010
      %v3041 = vpack.c.b16 %v3013, %v3012
      %v3042 = vpack.c.b16 %v3015, %v3014
      %v3043 = vpack.c.b16 %v3017, %v3016
      %v3044 = vpack.c.b16 %v3019, %v3018
      %v3045 = vpack.c.b16 %v3021, %v3020
      %3070 = vmatprep.subr.bf16.mxu0 0
      %3071 = vmatpush1.bf16.msra.mxu0 %v3022
      %3072 = vmatprep.subr.bf16.mxu0 0
      %3073 = vmatpush1.bf16.msra.mxu0 %v3023
      %3074 = vmatprep.subr.bf16.mxu0 0
      %3075 = vmatpush1.bf16.msra.mxu0 %v3024
      %3076 = vmatprep.subr.bf16.mxu0 0
      %3077 = vmatpush1.bf16.msra.mxu0 %v3025
      %3078 = vmatprep.subr.bf16.mxu0 0
      %3079 = vmatpush1.bf16.msra.mxu0 %v3026
      %3080 = vmatprep.subr.bf16.mxu0 0
      %3081 = vmatpush1.bf16.msra.mxu0 %v3027
      %3082 = vmatprep.subr.bf16.mxu0 0
      %3083 = vmatpush1.bf16.msra.mxu0 %v3028
      %3084 = vmatprep.subr.bf16.mxu0 0
      %3085 = vmatpush1.bf16.msra.mxu0 %v3029
      %3086 = vmatprep.subr.bf16.mxu0 0
      %3087 = vmatpush1.bf16.msra.mxu0 %v3030
      %3088 = vmatprep.subr.bf16.mxu0 0
      %3089 = vmatpush1.bf16.msra.mxu0 %v3031
      %3090 = vmatprep.subr.bf16.mxu0 0
      %3091 = vmatpush1.bf16.msra.mxu0 %v3032
      %3092 = vmatprep.subr.bf16.mxu0 0
      %3093 = vmatpush1.bf16.msra.mxu0 %v3033
      %3094 = vmatprep.subr.bf16.mxu0 0
      %3095 = vmatpush1.bf16.msra.mxu0 %v3034
      %3096 = vmatprep.subr.bf16.mxu0 0
      %3097 = vmatpush1.bf16.msra.mxu0 %v3035
      %3098 = vmatprep.subr.bf16.mxu0 0
      %3099 = vmatpush1.bf16.msra.mxu0 %v3036
      %3100 = vmatprep.subr.bf16.mxu0 0
      %3101 = vmatpush1.bf16.msra.mxu0 %v3037
      %3102 = vmatprep.mubr.bf16.mxu0 %v2863
      %3103 = vmatmul.mubr.bf16.gmra.mrb[0].mxu0 %v2862
      %v3104 = vpop.f32.mrb[0].mxu0
      %v3105 = vadd.f32 %v2924, %v3104
      %v3106 = vpop.f32.mrb[0].mxu0
      %v3107 = vpop.f32.mrb[0].mxu0
      %v3108 = vadd.f32 %v2924, %v3107
      %v3109 = vpop.f32.mrb[0].mxu0
      %3110 = vmatprep.mubr.bf16.mxu0 %v2866
      %3111 = vmatmul.mubr.bf16.gmra.mrb[0].mxu0 %v2865
      %v3112 = vpop.f32.mrb[0].mxu0
      %v3113 = vadd.f32 %v2924, %v3112
      %v3114 = vpop.f32.mrb[0].mxu0
      %v3115 = vpop.f32.mrb[0].mxu0
      %v3116 = vadd.f32 %v2924, %v3115
      %v3117 = vpop.f32.mrb[0].mxu0
      %3118 = vmatprep.mubr.bf16.mxu0 %v2869
      %3119 = vmatmul.mubr.bf16.gmra.mrb[0].mxu0 %v2868
      %v3120 = vpop.f32.mrb[0].mxu0
      %v3121 = vadd.f32 %v2924, %v3120
      %v3122 = vpop.f32.mrb[0].mxu0
      %v3123 = vpop.f32.mrb[0].mxu0
      %v3124 = vpop.f32.mrb[0].mxu0
      %3125 = vdwg.mxu0
      %3126 = vmatprep.subr.bf16.mxu0 0
      %3127 = vmatpush1.bf16.msra.mxu0 %v3038
      %3128 = vmatprep.subr.bf16.mxu0 0
      %3129 = vmatpush1.bf16.msra.mxu0 %v3039
      %3130 = vmatprep.subr.bf16.mxu0 0
      %3131 = vmatpush1.bf16.msra.mxu0 %v3040
      %3132 = vmatprep.subr.bf16.mxu0 0
      %3133 = vmatpush1.bf16.msra.mxu0 %v3041
      %3134 = vmatprep.subr.bf16.mxu0 0
      %3135 = vmatpush1.bf16.msra.mxu0 %v3042
      %3136 = vmatprep.subr.bf16.mxu0 0
      %3137 = vmatpush1.bf16.msra.mxu0 %v3043
      %3138 = vmatprep.subr.bf16.mxu0 0
      %3139 = vmatpush1.bf16.msra.mxu0 %v3044
      %3140 = vmatprep.subr.bf16.mxu0 0
      %3141 = vmatpush1.bf16.msra.mxu0 %v3045
      %3142 = vmatprep.subr.bf16.mxu0 0
      %3143 = vmatpush1.bf16.msra.mxu0 0
      %3144 = vmatprep.subr.bf16.mxu0 0
      %3145 = vmatpush1.bf16.msra.mxu0 0
      %3146 = vmatprep.subr.bf16.mxu0 0
      %3147 = vmatpush1.bf16.msra.mxu0 0
      %3148 = vmatprep.subr.bf16.mxu0 0
      %3149 = vmatpush1.bf16.msra.mxu0 0
      %3150 = vmatprep.subr.bf16.mxu0 0
      %3151 = vmatpush1.bf16.msra.mxu0 0
      %3152 = vmatprep.subr.bf16.mxu0 0
      %3153 = vmatpush1.bf16.msra.mxu0 0
      %3154 = vmatprep.subr.bf16.mxu0 0
      %3155 = vmatpush1.bf16.msra.mxu0 0
      %3156 = vmatprep.subr.bf16.mxu0 0
      %3157 = vmatpush1.bf16.msra.mxu0 0
      %3158 = vmatprep.mubr.bf16.mxu0 0
      %3159 = vmatmul.mubr.bf16.gmra.mrb[0].mxu0 %v2864
      %v3160 = vpop.f32.mrb[0].mxu0
      %v3161 = vadd.f32 %v3105, %v3160
      %v3162 = vpop.f32.mrb[0].mxu0
      %v3163 = vpop.f32.mrb[0].mxu0
      %v3164 = vadd.f32 %v3108, %v3163
      %v3165 = vpop.f32.mrb[0].mxu0
      %3166 = vmatprep.mubr.bf16.mxu0 0
      %3167 = vmatmul.mubr.bf16.gmra.mrb[0].mxu0 %v2867
      %v3168 = vpop.f32.mrb[0].mxu0
      %v3169 = vadd.f32 %v3113, %v3168
      %v3170 = vpop.f32.mrb[0].mxu0
      %v3171 = vpop.f32.mrb[0].mxu0
      %v3172 = vadd.f32 %v3116, %v3171
      %v3173 = vpop.f32.mrb[0].mxu0
      %3174 = vmatprep.mubr.bf16.mxu0 0
      %3175 = vmatmul.mubr.bf16.gmra.mrb[0].mxu0 %v2870
      %v3176 = vpop.f32.mrb[0].mxu0
      %v3177 = vadd.f32 %v3121, %v3176
      %v3178 = vpop.f32.mrb[0].mxu0
      %v3179 = vpop.f32.mrb[0].mxu0
      %v3180 = vpop.f32.mrb[0].mxu0
      %3181 = vdwg.mxu0
      %v3182 = vadd.f32 %v2367, %v3161
      %v3183 = vadd.f32 %v2368, %v3164
      %v3184 = vadd.f32 %v2369, %v3169
      %v3185 = vadd.f32 %v2370, %v3172
      %v3186 = vadd.f32 %v2371, %v3177
      %v3187 = vsel %vm871, %v3182, 0.0
      %v3188 = vsel %vm871, %v3183, 0.0
      %v3189 = vadd.f32 %v3187, %v3188
      %v3190 = vsel %vm871, %v3184, 0.0
      %v3191 = vadd.f32 %v3189, %v3190
      %v3192 = vsel %vm871, %v3185, 0.0
      %v3193 = vadd.f32 %v3191, %v3192
      %v3194 = vsel %vm884, %v3186, 0.0
      %v3195 = vadd.f32 %v3193, %v3194
      %v3196 = vrot.slane %v3195, 4
      %v3197 = vadd.f32 %v3195, %v3196
      %v3198 = vrot.slane %v3197, 2
      %v3199 = vadd.f32 %v3197, %v3198
      %v3200 = vrot.slane %v3199, 1
      %v3201 = vadd.f32 %v3199, %v3200
      %v3202 = vrcp.pop 36.0
      %v3203 = vmul.f32 %v3201, %v3202
      %v3204 = vsel %vm871, %v3203, 0.0
      %3205 = vadd.xlane.f32.xlu0 %v3204
      %v3206 = vpop.xlane.xlu0 %3205
      %v3207 = vmul.f32 %v3206, %v888
      %v3208 = vsub.f32 %v3203, %v3207
      %v3209 = vmul.f32 %v3208, %v3208
      %v3210 = vsel %vm871, %v3209, 0.0
      %3211 = vadd.xlane.f32.xlu0 %v3210
      %v3212 = vpop.xlane.xlu0 %3211
      %v3213 = vmul.f32 %v3212, %v888
      %v3214 = vadd.f32 %v3213, 1e-06
      %v3215 = vrsqrt.pop %v3214
      %v3216 = vmul.f32 %v3208, %v3215
      %v3217 = vld [vmem:[%s22] sm:$0x1]
      %v3218 = vmul.f32 %v3216, %v3217
      %v3219 = vld [vmem:[%s23] sm:$0x1]
      %v3220 = vadd.f32 %v3218, %v3219
      %v3221 = vpack.c.bf16 %v3220, %v3220
      %v3222 = vld [vmem:[%s24] sm:$0xf]
      %v3223 = vld [vmem:[%s24 + $0x4] sm:$0xf]
      %v3224 = vld [vmem:[%s24 + $0x8] sm:$0xf]
      %v3225 = vld [vmem:[%s24 + $0xc] sm:$0xf]
      %v3226 = vld [vmem:[%s24 + $0x10] sm:$0xf]
      %v3227 = vld [vmem:[%s24 + $0x14] sm:$0xf]
      %v3228 = vld [vmem:[%s24 + $0x18] sm:$0xf]
      %v3229 = vld [vmem:[%s24 + $0x1c] sm:$0xf]
      %v3230 = vld [vmem:[%s24 + $0x20] sm:$0xf]
      %v3231 = vld [vmem:[%s24 + $0x24] sm:$0xf]
      %v3232 = vld [vmem:[%s24 + $0x28] sm:$0xf]
      %v3233 = vld [vmem:[%s24 + $0x2c] sm:$0xf]
      %v3234 = vld [vmem:[%s25] sm:$0x1]
      %v3247 = vunpack.c.l.b16 %v3222
      %v3248 = vunpack.c.l.b16 %v3223
      %v3249 = vunpack.c.l.b16 %v3224
      %v3250 = vunpack.c.l.b16 %v3225
      %v3251 = vunpack.c.l.b16 %v3226
      %v3252 = vunpack.c.l.b16 %v3227
      %v3253 = vunpack.c.l.b16 %v3228
      %v3254 = vunpack.c.l.b16 %v3229
      %v3255 = vunpack.c.l.b16 %v3230
      %v3256 = vunpack.c.l.b16 %v3231
      %v3257 = vunpack.c.l.b16 %v3232
      %v3258 = vunpack.c.l.b16 %v3233
      %v3259 = vpack.c.b16 %v3248, %v3247
      %v3260 = vpack.c.b16 %v3250, %v3249
      %v3261 = vpack.c.b16 %v3252, %v3251
      %v3262 = vpack.c.b16 %v3254, %v3253
      %v3263 = vpack.c.b16 %v3256, %v3255
      %v3264 = vpack.c.b16 %v3258, %v3257
      %v3272 = vsel %vm871, %v3221, 0
      %3274 = vmatprep.subr.bf16.mxu0 0
      %3275 = vmatpush1.bf16.msra.mxu0 %v3259
      %3276 = vmatprep.subr.bf16.mxu0 0
      %3277 = vmatpush1.bf16.msra.mxu0 %v3260
      %3278 = vmatprep.subr.bf16.mxu0 0
      %3279 = vmatpush1.bf16.msra.mxu0 %v3261
      %3280 = vmatprep.subr.bf16.mxu0 0
      %3281 = vmatpush1.bf16.msra.mxu0 %v3262
      %3282 = vmatprep.subr.bf16.mxu0 0
      %3283 = vmatpush1.bf16.msra.mxu0 %v3263
      %3284 = vmatprep.subr.bf16.mxu0 0
      %3285 = vmatpush1.bf16.msra.mxu0 %v3264
      %3286 = vmatprep.subr.bf16.mxu0 0
      %3287 = vmatpush1.bf16.msra.mxu0 0
      %3288 = vmatprep.subr.bf16.mxu0 0
      %3289 = vmatpush1.bf16.msra.mxu0 0
      %3290 = vmatprep.subr.bf16.mxu0 0
      %3291 = vmatpush1.bf16.msra.mxu0 0
      %3292 = vmatprep.subr.bf16.mxu0 0
      %3293 = vmatpush1.bf16.msra.mxu0 0
      %3294 = vmatprep.subr.bf16.mxu0 0
      %3295 = vmatpush1.bf16.msra.mxu0 0
      %3296 = vmatprep.subr.bf16.mxu0 0
      %3297 = vmatpush1.bf16.msra.mxu0 0
      %3298 = vmatprep.subr.bf16.mxu0 0
      %3299 = vmatpush1.bf16.msra.mxu0 0
      %3300 = vmatprep.subr.bf16.mxu0 0
      %3301 = vmatpush1.bf16.msra.mxu0 0
      %3302 = vmatprep.subr.bf16.mxu0 0
      %3303 = vmatpush1.bf16.msra.mxu0 0
      %3304 = vmatprep.subr.bf16.mxu0 0
      %3305 = vmatpush1.bf16.msra.mxu0 0
      %3306 = vmatprep.mubr.bf16.mxu0 0
      %3307 = vmatmul.mubr.bf16.gmra.mrb[0].mxu0 %v3272
      %v3308 = vpop.f32.mrb[0].mxu0
      %v3309 = vadd.f32 %v3234, %v3308
      %v3310 = vpop.f32.mrb[0].mxu0
      %v3311 = vpop.f32.mrb[0].mxu0
      %v3312 = vpop.f32.mrb[0].mxu0
      %3313 = vdwg.mxu0
      %v3314 = vlaneseq
      %v3315 = vshrl.u32 %v3314, 7
      %v3316 = vsub.s32 0, %v3315
      %v3317 = vrot.slane %v3309, %v3316
      %3318 = vst [vmem:[%s849] sm:$0xff] %v3317
      %p3319 = scmp.lt.s32.totalorder %s37, 1
      %s3320 = scalar_select %p3319, %s37, 1
      %s3321 = smul.addr %s3320, 8
      %s3322 = scalar_lea.vmem %s26, %s3321
      // Predicated region
      $region125: #{region_semantic_header_forward.3} parent=123 // pred_check
        %p3323 = pneg %p621
      $region126: #{region_semantic_header_forward.3} parent=123 // pred_check_branch
        %3325 = sbr.rel (%p3323) target = $region128
      $region127: #{region_semantic_header_forward.3} parent=123 // pred_region
        _
      $region128: #{region_semantic_header_forward.3} parent=123 // pred_fallthru
        _
    $region124: #{region_semantic_header_forward.3} parent=5 // pred_fallthru
      _
    %p3326 = scmp.le.s32.totalorder 2, %s32
    // Predicated region
    $region129: #{region_semantic_header_forward.3} parent=5 // pred_check
      %p3327 = pneg %p3326
    $region130: #{region_semantic_header_forward.3} parent=5 // pred_check_branch
      %3329 = sbr.rel (%p3327) target = $region132
    $region131: #{region_semantic_header_forward.3} parent=5 // pred_region
      %s3330 = ssub.s32 %s32, 2
      // Predicated region
      $region133: #{region_semantic_header_forward.3} parent=131 // pred_check
        %p3331 = pneg %p627
      $region134: #{region_semantic_header_forward.3} parent=131 // pred_check_branch
        %3333 = sbr.rel (%p3331) target = $region136
      $region135: #{region_semantic_header_forward.3} parent=131 // pred_region
        %p3334 = scmp.lt.s32.totalorder %s38, 1
        %s3335 = scalar_select %p3334, %s38, 1
        %s3336 = smul.addr %s3335, 8
        %s3337 = scalar_lea.vmem %s26, %s3336
      $region136: #{region_semantic_header_forward.3} parent=131 // pred_fallthru
        _
    $region132: #{region_semantic_header_forward.3} parent=5 // pred_fallthru
      _
  $region6: #{region_semantic_header_forward.3} parent=0 // loop_footer
    %s36 = sadd.s32 1, %s32
  $region7: #{region_semantic_header_forward.3} parent=0 // loop_footer_branch
    %31 = sbr.rel target = $region3
  $region8: #{region_semantic_header_forward.3} parent=0 // loop_exit
    _

</llo_original>
